<compile_context>
chip_gen: v7x
topology: tpu7x:2x2x1
jax: 0.10.0
libtpu: 0.0.40
codegen_flags: <defaults>
</compile_context>

<pallas_src>
import math
import time
from functools import partial

import jax
import jax.numpy as jnp
from jax.experimental import pallas as pl
from jax.experimental.pallas import tpu as pltpu

F32 = jnp.float32


def _round_up(x, m):
    return ((x + m - 1) // m) * m


# -----------------------------------------------------------------------------
# RRCN kernel: grid=(batch,) "parallel"; steps unrolled inside the body.
# -----------------------------------------------------------------------------
def make_rrcn_kernel(H, E_gp, num_steps):
    def kernel(x0_ref, xg_ref, gall_ref, sca_ref, sce_ref,
               w_mlp_ref, b_mlp_ref, w_out_ref, w_hh_ref, h_out_ref):
        h = x0_ref[...]                      # (Cg, H)  current hidden (= rnn_h for s>=1)
        c = jnp.zeros_like(h)                # rnn_c
        xg = xg_ref[...]                     # (Cg, 4H) step-invariant gate term
        g_all = gall_ref[...]                # (4E, Cg) stacked one-hot gather
        s_a = sca_ref[...]                   # (Cg, E)  scatter-add to dst (intra)
        s_e = sce_ref[...]                   # (Cg, E)  scatter-add to dst (inter)
        w_hh = w_hh_ref[...]                 # (H, 4H)

        def msg_gates(gathered, t, base, s_mat):
            # 4-layer message MLP for edge type t.  The last Linear is
            # pre-folded with the LSTM per-message input block, so the scatter
            # directly yields a lane-dense (Cg, 4H) gate contribution.
            wb, bb = 4 * t, 3 * t
            hs = gathered[base:base + E_gp]                 # h[src]  (E, H)
            hd = gathered[base + E_gp:base + 2 * E_gp]      # h[dst]  (E, H)
            z = (jnp.dot(hs, w_mlp_ref[wb + 0], preferred_element_type=F32)
                 + jnp.dot(hd, w_mlp_ref[wb + 1], preferred_element_type=F32)
                 + b_mlp_ref[bb + 0])
            z = jnp.maximum(z, 0.0)
            z = jnp.maximum(jnp.dot(z, w_mlp_ref[wb + 2], preferred_element_type=F32)
                            + b_mlp_ref[bb + 1], 0.0)
            z = jnp.maximum(jnp.dot(z, w_mlp_ref[wb + 3], preferred_element_type=F32)
                            + b_mlp_ref[bb + 2], 0.0)
            z4 = jnp.dot(z, w_out_ref[t], preferred_element_type=F32)      # (E, 4H)
            return jnp.dot(s_mat, z4, preferred_element_type=F32)          # (Cg, 4H)

        for s in range(num_steps):           # static unroll
            # one combined gather for all four endpoint sets of both edge types
            gathered = jnp.dot(g_all, h, preferred_element_type=F32)       # (4E, H)
            gates = (xg
                     + msg_gates(gathered, 0, 0, s_a)
                     + msg_gates(gathered, 1, 2 * E_gp, s_e))
            if s > 0:                        # rnn_h == 0 at step 0, == h afterwards
                gates = gates + jnp.dot(h, w_hh, preferred_element_type=F32)

            # LSTMCell (bias=False) epilogue; gates packed on lanes (i|f|g|o).
            lane = jax.lax.broadcasted_iota(jnp.int32, gates.shape, 1)
            is_g = (lane >= 2 * H) & (lane < 3 * H)
            act = jnp.where(is_g, jnp.tanh(gates), jax.nn.sigmoid(gates))
            i_g = act[:, 0 * H:1 * H]
            f_g = act[:, 1 * H:2 * H]
            g_g = act[:, 2 * H:3 * H]
            o_g = act[:, 3 * H:4 * H]
            c = f_g * c + i_g * g_g
            h = o_g * jnp.tanh(c)
            h_out_ref[s] = h                 # output block stays in VMEM; one HBM
                                             # writeback per graph after the last step
    return kernel


# -----------------------------------------------------------------------------
# Wrapper: weight packing / folding + pallas_call
# -----------------------------------------------------------------------------
@partial(jax.jit, static_argnums=(3, 4, 5))
def run_rrcn(cell_x, graph, params, hidden_dim, num_steps, batch_size):
    H, B = hidden_dim, batch_size
    C = cell_x.shape[0]
    C_g = C // B
    C_gp = graph["g_all"].shape[-1]
    E_gp = graph["scatter_intra"].shape[-1]
    E4 = graph["g_all"].shape[1]

    w_ih, w_hh = params["w_ih"], params["w_hh"]
    Wx, Wm_a, Wm_e = w_ih[:H], w_ih[H:2 * H], w_ih[2 * H:]

    def split_mlp(p):
        w1, b1, w2, b2, w3, b3, w4, b4 = p
        return [w1[:H], w1[H:], w2, w3], [b1, b2, b3], w4, b4

    wa, ba, w4a, b4a = split_mlp(params["mlp_intra"])
    we, be, w4e, b4e = split_mlp(params["mlp_inter"])
    w_mlp = jnp.stack(wa + we, axis=0)                       # (8, H, H)
    b_mlp = jnp.stack(ba + be, axis=0)                       # (6, 1, H)

    # Fold MLP layer 4 with the LSTM per-message input block: m_t @ W_ih[m_t]
    # = S_t @ (relu3 @ (W4_t @ Wm_t)) + deg_t * (b4_t @ Wm_t).
    w_out = jnp.stack([w4a @ Wm_a, w4e @ Wm_e], axis=0)      # (2, H, 4H)
    b4m_a, b4m_e = b4a @ Wm_a, b4e @ Wm_e                    # (1, 4H)

    # Per-graph, sublane-padded cell features.
    x_b = jnp.pad(cell_x.reshape(B, C_g, H), ((0, 0), (0, C_gp - C_g), (0, 0)))
    deg_a = jnp.sum(graph["scatter_intra"], axis=-1, keepdims=True)   # (B, Cg, 1)
    deg_e = jnp.sum(graph["scatter_inter"], axis=-1, keepdims=True)
    # Hoisted step-invariant gate term (x contribution + degree-weighted b4 fold).
    xg_b = (jnp.einsum("bch,hg->bcg", x_b, Wx)
            + deg_a * b4m_a + deg_e * b4m_e)                 # (B, Cg, 4H)

    out = pl.pallas_call(
        make_rrcn_kernel(H, E_gp, num_steps),
        out_shape=jax.ShapeDtypeStruct((B, num_steps, C_gp, H), F32),
        grid=(B,),
        in_specs=[
            pl.BlockSpec((None, C_gp, H), lambda b: (b, 0, 0)),        # x0
            pl.BlockSpec((None, C_gp, 4 * H), lambda b: (b, 0, 0)),    # xg
            pl.BlockSpec((None, E4, C_gp), lambda b: (b, 0, 0)),       # gather (4E, Cg)
            pl.BlockSpec((None, C_gp, E_gp), lambda b: (b, 0, 0)),     # scatter intra
            pl.BlockSpec((None, C_gp, E_gp), lambda b: (b, 0, 0)),     # scatter inter
            pl.BlockSpec((8, H, H), lambda b: (0, 0, 0)),              # MLP W1a..W3 x2
            pl.BlockSpec((6, 1, H), lambda b: (0, 0, 0)),              # MLP b1..b3 x2
            pl.BlockSpec((2, H, 4 * H), lambda b: (0, 0, 0)),          # folded W4@Wm
            pl.BlockSpec((H, 4 * H), lambda b: (0, 0)),                # W_hh
        ],
        out_specs=pl.BlockSpec((None, num_steps, C_gp, H), lambda b: (b, 0, 0, 0)),
        compiler_params=pltpu.CompilerParams(dimension_semantics=("parallel",)),
    )(x_b, xg_b, graph["g_all"], graph["scatter_intra"], graph["scatter_inter"],
      w_mlp, b_mlp, w_out, w_hh)

    # (B, S, Cg_pad, H) -> (S, B, Cg, H), dropping the cell padding.
    return jnp.transpose(out[:, :, :C_g, :], (1, 0, 2, 3))


def gcp_bin_cnn_forward(q, params, graph, *, batch_size, num_nodes, num_colours,
                        hidden_dim, num_steps, logk=False):
    """Mirrors GCP_BIN_CNN.forward for uniform num_nodes / num_colours per graph."""
    H, B, N = hidden_dim, batch_size, num_nodes
    max_levels = (math.floor(math.log2(num_colours)) + 1) if logk else num_colours
    L = max_levels

    # cell_idx = q ; cell_idx += 3 * (cell_idx == -1)    (maps -1 -> 2)
    cell_idx = q + 3 * (q == -1).astype(q.dtype)
    cell_input = params["digit_embed"][cell_idx]          # glue gather: (C, H)
    cell_x = cell_input

    # Warm-up (compile), then report min device time over a few runs.
    cell_outputs = run_rrcn(cell_x, graph, params, H, num_steps, B)
    jax.block_until_ready(cell_outputs)
    times = []
    for _ in range(3):
        t0 = time.perf_counter()
        cell_outputs = run_rrcn(cell_x, graph, params, H, num_steps, B)
        jax.block_until_ready(cell_outputs)
        times.append(time.perf_counter() - t0)
    rrcn_time = min(times)

    # get_padded_tensor: uniform sizes -> pure reshape; cell order within a
    # graph is (level, node); graphs stacked on dim 1.
    padded = cell_outputs.reshape(num_steps, B, L, N, H)
    cell_save = padded

    # embedding2score: Linear(H, 1, bias=False) as a lane-dense contraction in
    # the wrapper (no extra pallas_call, no last-dim==1 masked stores).
    logits = jnp.einsum("sbch,h->sbc", cell_outputs, params["w_score"][:, 0])
    logits = logits.reshape(num_steps, B * N * L)   # == row-major flatten of (B, L, N)

    ret_dict = {"cell_embed": cell_save, "cell_input": cell_input, "cell_x": cell_x}
    return ret_dict, logits, rrcn_time


# -----------------------------------------------------------------------------
# Deterministic parameter / graph construction
# -----------------------------------------------------------------------------
def make_linear(key, fan_in, fan_out):
    kw, kb = jax.random.split(key)
    bound = 1.0 / math.sqrt(fan_in)
    w = jax.random.uniform(kw, (fan_in, fan_out), F32, -bound, bound)
    b = jax.random.uniform(kb, (1, fan_out), F32, -bound, bound)
    return w, b


def make_mlp(key, H):
    ks = jax.random.split(key, 4)
    w1, b1 = make_linear(ks[0], 2 * H, H)
    w2, b2 = make_linear(ks[1], H, H)
    w3, b3 = make_linear(ks[2], H, H)
    w4, b4 = make_linear(ks[3], H, H)
    return [w1, b1, w2, b2, w3, b3, w4, b4]


def make_params(key, H):
    ks = jax.random.split(key, 6)
    bound = 1.0 / math.sqrt(H)
    return {
        "digit_embed": jax.random.normal(ks[0], (3, H), F32),
        "mlp_intra": make_mlp(ks[1], H),
        "mlp_inter": make_mlp(ks[2], H),
        # LSTMCell(3H -> H, bias=False); pre-transposed, gate order i,f,g,o
        "w_ih": jax.random.uniform(ks[3], (3 * H, 4 * H), F32, -bound, bound),
        "w_hh": jax.random.uniform(ks[4], (H, 4 * H), F32, -bound, bound),
        # embedding2score: Linear(H, 1, bias=0)
        "w_score": jax.random.uniform(ks[5], (H, 1), F32, -bound, bound),
    }


def build_graph_matrices(B, N, L):
    """Synthetic 'intra_diff' / 'inter_diff' edges as per-graph one-hot gather /
    scatter matrices, padded to sublane multiples (0/1 values are exact)."""
    C_g = L * N
    C_gp = _round_up(C_g, 8)
    intra_src, intra_dst, inter_src, inter_dst = [], [], [], []
    # intra_diff: same node, different binary levels (both directions)
    for n in range(N):
        for l1 in range(L):
            for l2 in range(L):
                if l1 != l2:
                    intra_src.append(l1 * N + n)
                    intra_dst.append(l2 * N + n)
    # inter_diff: ring among nodes, same level (both directions)
    for n in range(N):
        for d in (1, N - 1):
            v = (n + d) % N
            for l in range(L):
                inter_src.append(l * N + n)
                inter_dst.append(l * N + v)
    E_gp = _round_up(max(len(intra_src), len(inter_src)), 8)

    def onehot(idx):
        m = jnp.zeros((E_gp, C_gp), F32)
        return m.at[jnp.arange(len(idx)), jnp.asarray(idx, jnp.int32)].set(1.0)

    gsa, gda = onehot(intra_src), onehot(intra_dst)
    gse, gde = onehot(inter_src), onehot(inter_dst)
    g_all = jnp.concatenate([gsa, gda, gse, gde], axis=0)    # (4*E_gp, C_gp)
    sca, sce = gda.T, gde.T                                  # (C_gp, E_gp) scatter to dst

    tile = lambda a: jnp.tile(a[None], (B,) + (1,) * a.ndim)
    return {"g_all": tile(g_all),
            "scatter_intra": tile(sca),
            "scatter_inter": tile(sce)}


# -----------------------------------------------------------------------------
if __name__ == "__main__":
    B = 2            # batch_size
    N = 6            # num_nodes per graph (uniform)
    K = 3            # num_colours (uniform); logk=False -> max_levels = K
    H = 32           # hidden_dim
    STEPS = 3        # msg_passing_steps
    L = K
    C = B * L * N    # total number of 'cell' nodes

    key = jax.random.PRNGKey(0)
    kp, kq = jax.random.split(key)
    params = make_params(kp, H)
    graph = build_graph_matrices(B, N, L)

    # g.nodes['cell'].data['q']  in {-1, 0, 1}
    q = jax.random.randint(kq, (C,), -1, 2)

    ret_dict, logits, rrcn_time = gcp_bin_cnn_forward(
        q, params, graph,
        batch_size=B, num_nodes=N, num_colours=K,
        hidden_dim=H, num_steps=STEPS, logk=False,
    )
    jax.block_until_ready((ret_dict, logits))

    assert logits.shape == (STEPS, B * N * L)
    assert ret_dict["cell_embed"].shape == (STEPS, B, L, N, H)
    assert ret_dict["cell_input"].shape == (C, H)
    assert bool(jnp.all(jnp.isfinite(logits)))
    assert bool(jnp.all(jnp.isfinite(ret_dict["cell_embed"])))
    print("KERNEL_OK")
</pallas_src>

<mosaic_0001>
module attributes {stable_mosaic.version = 11 : i64} {
  func.func @kernel(%arg0: i32, %arg1: memref<1x24x32xf32, #tpu.memory_space<vmem>>, %arg2: memref<1x24x128xf32, #tpu.memory_space<vmem>>, %arg3: memref<1x160x24xf32, #tpu.memory_space<vmem>>, %arg4: memref<1x24x40xf32, #tpu.memory_space<vmem>>, %arg5: memref<1x24x40xf32, #tpu.memory_space<vmem>>, %arg6: memref<8x32x32xf32, #tpu.memory_space<vmem>>, %arg7: memref<6x1x32xf32, #tpu.memory_space<vmem>>, %arg8: memref<2x32x128xf32, #tpu.memory_space<vmem>>, %arg9: memref<32x128xf32, #tpu.memory_space<vmem>>, %arg10: memref<1x3x24x32xf32, #tpu.memory_space<vmem>>) attributes {dimension_semantics = [#tpu.dimension_semantics<parallel>], iteration_bounds = array<i64: 2>, scalar_prefetch = 0 : i64, scratch_operands = 0 : i64, tpu.core_type = #tpu.core_type<tc>, window_params = [{transform_indices = @transform_0, window_bounds = array<i64: 1, 24, 32>}, {transform_indices = @transform_1, window_bounds = array<i64: 1, 24, 128>}, {transform_indices = @transform_2, window_bounds = array<i64: 1, 160, 24>}, {transform_indices = @transform_3, window_bounds = array<i64: 1, 24, 40>}, {transform_indices = @transform_4, window_bounds = array<i64: 1, 24, 40>}, {pipeline_mode = #tpu.pipeline_mode<synchronous>, transform_indices = @transform_5, window_bounds = array<i64: 8, 32, 32>}, {pipeline_mode = #tpu.pipeline_mode<synchronous>, transform_indices = @transform_6, window_bounds = array<i64: 6, 1, 32>}, {pipeline_mode = #tpu.pipeline_mode<synchronous>, transform_indices = @transform_7, window_bounds = array<i64: 2, 32, 128>}, {pipeline_mode = #tpu.pipeline_mode<synchronous>, transform_indices = @transform_8, window_bounds = array<i64: 32, 128>}, {transform_indices = @transform_9, window_bounds = array<i64: 1, 3, 24, 32>}]} {
    %c0 = arith.constant 0 : index
    %c0_0 = arith.constant 0 : index
    %c0_1 = arith.constant 0 : index
    %0 = vector.load %arg1[%c0, %c0_0, %c0_1] : memref<1x24x32xf32, #tpu.memory_space<vmem>>, vector<1x24x32xf32>
    %1 = vector.shape_cast %0 : vector<1x24x32xf32> to vector<24x32xf32>
    %cst = arith.constant 0.000000e+00 : f32
    %2 = vector.broadcast %cst : f32 to vector<24x32xf32>
    %c0_2 = arith.constant 0 : index
    %c0_3 = arith.constant 0 : index
    %c0_4 = arith.constant 0 : index
    %3 = vector.load %arg2[%c0_2, %c0_3, %c0_4] : memref<1x24x128xf32, #tpu.memory_space<vmem>>, vector<1x24x128xf32>
    %4 = vector.shape_cast %3 : vector<1x24x128xf32> to vector<24x128xf32>
    %c0_5 = arith.constant 0 : index
    %c0_6 = arith.constant 0 : index
    %c0_7 = arith.constant 0 : index
    %5 = vector.load %arg3[%c0_5, %c0_6, %c0_7] : memref<1x160x24xf32, #tpu.memory_space<vmem>>, vector<1x160x24xf32>
    %6 = vector.shape_cast %5 : vector<1x160x24xf32> to vector<160x24xf32>
    %c0_8 = arith.constant 0 : index
    %c0_9 = arith.constant 0 : index
    %c0_10 = arith.constant 0 : index
    %7 = vector.load %arg4[%c0_8, %c0_9, %c0_10] : memref<1x24x40xf32, #tpu.memory_space<vmem>>, vector<1x24x40xf32>
    %8 = vector.shape_cast %7 : vector<1x24x40xf32> to vector<24x40xf32>
    %c0_11 = arith.constant 0 : index
    %c0_12 = arith.constant 0 : index
    %c0_13 = arith.constant 0 : index
    %9 = vector.load %arg5[%c0_11, %c0_12, %c0_13] : memref<1x24x40xf32, #tpu.memory_space<vmem>>, vector<1x24x40xf32>
    %10 = vector.shape_cast %9 : vector<1x24x40xf32> to vector<24x40xf32>
    %c0_14 = arith.constant 0 : index
    %c0_15 = arith.constant 0 : index
    %11 = vector.load %arg9[%c0_14, %c0_15] : memref<32x128xf32, #tpu.memory_space<vmem>>, vector<32x128xf32>
    %cst_16 = arith.constant dense<0.000000e+00> : vector<160x32xf32>
    %12 = tpu.matmul %6, %1, %cst_16 {dimension_numbers = #tpu.dot_dimension_numbers<[1], [0], [0], [1], [0, 0, 1, 1], [], []>} : vector<160x24xf32>, vector<24x32xf32>, vector<160x32xf32> -> vector<160x32xf32>
    %13 = vector.extract_strided_slice %12 {offsets = [0, 0], sizes = [40, 32], strides = [1, 1]} : vector<160x32xf32> to vector<40x32xf32>
    %14 = vector.extract_strided_slice %12 {offsets = [40, 0], sizes = [40, 32], strides = [1, 1]} : vector<160x32xf32> to vector<40x32xf32>
    %c0_17 = arith.constant 0 : index
    %c0_18 = arith.constant 0 : index
    %c0_19 = arith.constant 0 : index
    %15 = vector.load %arg6[%c0_17, %c0_18, %c0_19] : memref<8x32x32xf32, #tpu.memory_space<vmem>>, vector<1x32x32xf32>
    %16 = vector.shape_cast %15 : vector<1x32x32xf32> to vector<32x32xf32>
    %cst_20 = arith.constant dense<0.000000e+00> : vector<40x32xf32>
    %17 = tpu.matmul %13, %16, %cst_20 {dimension_numbers = #tpu.dot_dimension_numbers<[1], [0], [0], [1], [0, 0, 1, 1], [], []>} : vector<40x32xf32>, vector<32x32xf32>, vector<40x32xf32> -> vector<40x32xf32>
    %c1 = arith.constant 1 : index
    %c0_21 = arith.constant 0 : index
    %c0_22 = arith.constant 0 : index
    %18 = vector.load %arg6[%c1, %c0_21, %c0_22] : memref<8x32x32xf32, #tpu.memory_space<vmem>>, vector<1x32x32xf32>
    %19 = vector.shape_cast %18 : vector<1x32x32xf32> to vector<32x32xf32>
    %cst_23 = arith.constant dense<0.000000e+00> : vector<40x32xf32>
    %20 = tpu.matmul %14, %19, %cst_23 {dimension_numbers = #tpu.dot_dimension_numbers<[1], [0], [0], [1], [0, 0, 1, 1], [], []>} : vector<40x32xf32>, vector<32x32xf32>, vector<40x32xf32> -> vector<40x32xf32>
    %21 = arith.addf %17, %20 : vector<40x32xf32>
    %c0_24 = arith.constant 0 : index
    %c0_25 = arith.constant 0 : index
    %c0_26 = arith.constant 0 : index
    %22 = vector.load %arg7[%c0_24, %c0_25, %c0_26] : memref<6x1x32xf32, #tpu.memory_space<vmem>>, vector<1x1x32xf32>
    %23 = vector.shape_cast %22 : vector<1x1x32xf32> to vector<1x32xf32>
    %24 = vector.broadcast %23 : vector<1x32xf32> to vector<40x32xf32>
    %25 = arith.addf %21, %24 : vector<40x32xf32>
    %cst_27 = arith.constant 0.000000e+00 : f32
    %26 = vector.broadcast %cst_27 : f32 to vector<40x32xf32>
    %27 = arith.maximumf %25, %26 : vector<40x32xf32>
    %c2 = arith.constant 2 : index
    %c0_28 = arith.constant 0 : index
    %c0_29 = arith.constant 0 : index
    %28 = vector.load %arg6[%c2, %c0_28, %c0_29] : memref<8x32x32xf32, #tpu.memory_space<vmem>>, vector<1x32x32xf32>
    %29 = vector.shape_cast %28 : vector<1x32x32xf32> to vector<32x32xf32>
    %cst_30 = arith.constant dense<0.000000e+00> : vector<40x32xf32>
    %30 = tpu.matmul %27, %29, %cst_30 {dimension_numbers = #tpu.dot_dimension_numbers<[1], [0], [0], [1], [0, 0, 1, 1], [], []>} : vector<40x32xf32>, vector<32x32xf32>, vector<40x32xf32> -> vector<40x32xf32>
    %c1_31 = arith.constant 1 : index
    %c0_32 = arith.constant 0 : index
    %c0_33 = arith.constant 0 : index
    %31 = vector.load %arg7[%c1_31, %c0_32, %c0_33] : memref<6x1x32xf32, #tpu.memory_space<vmem>>, vector<1x1x32xf32>
    %32 = vector.shape_cast %31 : vector<1x1x32xf32> to vector<1x32xf32>
    %33 = vector.broadcast %32 : vector<1x32xf32> to vector<40x32xf32>
    %34 = arith.addf %30, %33 : vector<40x32xf32>
    %cst_34 = arith.constant 0.000000e+00 : f32
    %35 = vector.broadcast %cst_34 : f32 to vector<40x32xf32>
    %36 = arith.maximumf %34, %35 : vector<40x32xf32>
    %c3 = arith.constant 3 : index
    %c0_35 = arith.constant 0 : index
    %c0_36 = arith.constant 0 : index
    %37 = vector.load %arg6[%c3, %c0_35, %c0_36] : memref<8x32x32xf32, #tpu.memory_space<vmem>>, vector<1x32x32xf32>
    %38 = vector.shape_cast %37 : vector<1x32x32xf32> to vector<32x32xf32>
    %cst_37 = arith.constant dense<0.000000e+00> : vector<40x32xf32>
    %39 = tpu.matmul %36, %38, %cst_37 {dimension_numbers = #tpu.dot_dimension_numbers<[1], [0], [0], [1], [0, 0, 1, 1], [], []>} : vector<40x32xf32>, vector<32x32xf32>, vector<40x32xf32> -> vector<40x32xf32>
    %c2_38 = arith.constant 2 : index
    %c0_39 = arith.constant 0 : index
    %c0_40 = arith.constant 0 : index
    %40 = vector.load %arg7[%c2_38, %c0_39, %c0_40] : memref<6x1x32xf32, #tpu.memory_space<vmem>>, vector<1x1x32xf32>
    %41 = vector.shape_cast %40 : vector<1x1x32xf32> to vector<1x32xf32>
    %42 = vector.broadcast %41 : vector<1x32xf32> to vector<40x32xf32>
    %43 = arith.addf %39, %42 : vector<40x32xf32>
    %cst_41 = arith.constant 0.000000e+00 : f32
    %44 = vector.broadcast %cst_41 : f32 to vector<40x32xf32>
    %45 = arith.maximumf %43, %44 : vector<40x32xf32>
    %c0_42 = arith.constant 0 : index
    %c0_43 = arith.constant 0 : index
    %c0_44 = arith.constant 0 : index
    %46 = vector.load %arg8[%c0_42, %c0_43, %c0_44] : memref<2x32x128xf32, #tpu.memory_space<vmem>>, vector<1x32x128xf32>
    %47 = vector.shape_cast %46 : vector<1x32x128xf32> to vector<32x128xf32>
    %cst_45 = arith.constant dense<0.000000e+00> : vector<40x128xf32>
    %48 = tpu.matmul %45, %47, %cst_45 {dimension_numbers = #tpu.dot_dimension_numbers<[1], [0], [0], [1], [0, 0, 1, 1], [], []>} : vector<40x32xf32>, vector<32x128xf32>, vector<40x128xf32> -> vector<40x128xf32>
    %cst_46 = arith.constant dense<0.000000e+00> : vector<24x128xf32>
    %49 = tpu.matmul %8, %48, %cst_46 {dimension_numbers = #tpu.dot_dimension_numbers<[1], [0], [0], [1], [0, 0, 1, 1], [], []>} : vector<24x40xf32>, vector<40x128xf32>, vector<24x128xf32> -> vector<24x128xf32>
    %50 = arith.addf %4, %49 : vector<24x128xf32>
    %51 = vector.extract_strided_slice %12 {offsets = [80, 0], sizes = [40, 32], strides = [1, 1]} : vector<160x32xf32> to vector<40x32xf32>
    %52 = vector.extract_strided_slice %12 {offsets = [120, 0], sizes = [40, 32], strides = [1, 1]} : vector<160x32xf32> to vector<40x32xf32>
    %c4 = arith.constant 4 : index
    %c0_47 = arith.constant 0 : index
    %c0_48 = arith.constant 0 : index
    %53 = vector.load %arg6[%c4, %c0_47, %c0_48] : memref<8x32x32xf32, #tpu.memory_space<vmem>>, vector<1x32x32xf32>
    %54 = vector.shape_cast %53 : vector<1x32x32xf32> to vector<32x32xf32>
    %cst_49 = arith.constant dense<0.000000e+00> : vector<40x32xf32>
    %55 = tpu.matmul %51, %54, %cst_49 {dimension_numbers = #tpu.dot_dimension_numbers<[1], [0], [0], [1], [0, 0, 1, 1], [], []>} : vector<40x32xf32>, vector<32x32xf32>, vector<40x32xf32> -> vector<40x32xf32>
    %c5 = arith.constant 5 : index
    %c0_50 = arith.constant 0 : index
    %c0_51 = arith.constant 0 : index
    %56 = vector.load %arg6[%c5, %c0_50, %c0_51] : memref<8x32x32xf32, #tpu.memory_space<vmem>>, vector<1x32x32xf32>
    %57 = vector.shape_cast %56 : vector<1x32x32xf32> to vector<32x32xf32>
    %cst_52 = arith.constant dense<0.000000e+00> : vector<40x32xf32>
    %58 = tpu.matmul %52, %57, %cst_52 {dimension_numbers = #tpu.dot_dimension_numbers<[1], [0], [0], [1], [0, 0, 1, 1], [], []>} : vector<40x32xf32>, vector<32x32xf32>, vector<40x32xf32> -> vector<40x32xf32>
    %59 = arith.addf %55, %58 : vector<40x32xf32>
    %c3_53 = arith.constant 3 : index
    %c0_54 = arith.constant 0 : index
    %c0_55 = arith.constant 0 : index
    %60 = vector.load %arg7[%c3_53, %c0_54, %c0_55] : memref<6x1x32xf32, #tpu.memory_space<vmem>>, vector<1x1x32xf32>
    %61 = vector.shape_cast %60 : vector<1x1x32xf32> to vector<1x32xf32>
    %62 = vector.broadcast %61 : vector<1x32xf32> to vector<40x32xf32>
    %63 = arith.addf %59, %62 : vector<40x32xf32>
    %cst_56 = arith.constant 0.000000e+00 : f32
    %64 = vector.broadcast %cst_56 : f32 to vector<40x32xf32>
    %65 = arith.maximumf %63, %64 : vector<40x32xf32>
    %c6 = arith.constant 6 : index
    %c0_57 = arith.constant 0 : index
    %c0_58 = arith.constant 0 : index
    %66 = vector.load %arg6[%c6, %c0_57, %c0_58] : memref<8x32x32xf32, #tpu.memory_space<vmem>>, vector<1x32x32xf32>
    %67 = vector.shape_cast %66 : vector<1x32x32xf32> to vector<32x32xf32>
    %cst_59 = arith.constant dense<0.000000e+00> : vector<40x32xf32>
    %68 = tpu.matmul %65, %67, %cst_59 {dimension_numbers = #tpu.dot_dimension_numbers<[1], [0], [0], [1], [0, 0, 1, 1], [], []>} : vector<40x32xf32>, vector<32x32xf32>, vector<40x32xf32> -> vector<40x32xf32>
    %c4_60 = arith.constant 4 : index
    %c0_61 = arith.constant 0 : index
    %c0_62 = arith.constant 0 : index
    %69 = vector.load %arg7[%c4_60, %c0_61, %c0_62] : memref<6x1x32xf32, #tpu.memory_space<vmem>>, vector<1x1x32xf32>
    %70 = vector.shape_cast %69 : vector<1x1x32xf32> to vector<1x32xf32>
    %71 = vector.broadcast %70 : vector<1x32xf32> to vector<40x32xf32>
    %72 = arith.addf %68, %71 : vector<40x32xf32>
    %cst_63 = arith.constant 0.000000e+00 : f32
    %73 = vector.broadcast %cst_63 : f32 to vector<40x32xf32>
    %74 = arith.maximumf %72, %73 : vector<40x32xf32>
    %c7 = arith.constant 7 : index
    %c0_64 = arith.constant 0 : index
    %c0_65 = arith.constant 0 : index
    %75 = vector.load %arg6[%c7, %c0_64, %c0_65] : memref<8x32x32xf32, #tpu.memory_space<vmem>>, vector<1x32x32xf32>
    %76 = vector.shape_cast %75 : vector<1x32x32xf32> to vector<32x32xf32>
    %cst_66 = arith.constant dense<0.000000e+00> : vector<40x32xf32>
    %77 = tpu.matmul %74, %76, %cst_66 {dimension_numbers = #tpu.dot_dimension_numbers<[1], [0], [0], [1], [0, 0, 1, 1], [], []>} : vector<40x32xf32>, vector<32x32xf32>, vector<40x32xf32> -> vector<40x32xf32>
    %c5_67 = arith.constant 5 : index
    %c0_68 = arith.constant 0 : index
    %c0_69 = arith.constant 0 : index
    %78 = vector.load %arg7[%c5_67, %c0_68, %c0_69] : memref<6x1x32xf32, #tpu.memory_space<vmem>>, vector<1x1x32xf32>
    %79 = vector.shape_cast %78 : vector<1x1x32xf32> to vector<1x32xf32>
    %80 = vector.broadcast %79 : vector<1x32xf32> to vector<40x32xf32>
    %81 = arith.addf %77, %80 : vector<40x32xf32>
    %cst_70 = arith.constant 0.000000e+00 : f32
    %82 = vector.broadcast %cst_70 : f32 to vector<40x32xf32>
    %83 = arith.maximumf %81, %82 : vector<40x32xf32>
    %c1_71 = arith.constant 1 : index
    %c0_72 = arith.constant 0 : index
    %c0_73 = arith.constant 0 : index
    %84 = vector.load %arg8[%c1_71, %c0_72, %c0_73] : memref<2x32x128xf32, #tpu.memory_space<vmem>>, vector<1x32x128xf32>
    %85 = vector.shape_cast %84 : vector<1x32x128xf32> to vector<32x128xf32>
    %cst_74 = arith.constant dense<0.000000e+00> : vector<40x128xf32>
    %86 = tpu.matmul %83, %85, %cst_74 {dimension_numbers = #tpu.dot_dimension_numbers<[1], [0], [0], [1], [0, 0, 1, 1], [], []>} : vector<40x32xf32>, vector<32x128xf32>, vector<40x128xf32> -> vector<40x128xf32>
    %cst_75 = arith.constant dense<0.000000e+00> : vector<24x128xf32>
    %87 = tpu.matmul %10, %86, %cst_75 {dimension_numbers = #tpu.dot_dimension_numbers<[1], [0], [0], [1], [0, 0, 1, 1], [], []>} : vector<24x40xf32>, vector<40x128xf32>, vector<24x128xf32> -> vector<24x128xf32>
    %88 = arith.addf %50, %87 : vector<24x128xf32>
    %89 = tpu.iota {dimensions = array<i32: 1>} : vector<24x128xi32>
    %c64_i32 = arith.constant 64 : i32
    %90 = vector.broadcast %c64_i32 : i32 to vector<24x128xi32>
    %91 = arith.cmpi sge, %89, %90 : vector<24x128xi32>
    %c96_i32 = arith.constant 96 : i32
    %92 = vector.broadcast %c96_i32 : i32 to vector<24x128xi32>
    %93 = arith.cmpi slt, %89, %92 : vector<24x128xi32>
    %94 = arith.andi %91, %93 : vector<24x128xi1>
    %95 = math.tanh %88 : vector<24x128xf32>
    %96 = arith.negf %88 : vector<24x128xf32>
    %97 = math.exp %96 : vector<24x128xf32>
    %cst_76 = arith.constant 1.000000e+00 : f32
    %98 = vector.broadcast %cst_76 : f32 to vector<24x128xf32>
    %99 = arith.addf %98, %97 : vector<24x128xf32>
    %100 = arith.divf %98, %99 : vector<24x128xf32>
    %101 = arith.select %94, %95, %100 : vector<24x128xi1>, vector<24x128xf32>
    %102 = vector.extract_strided_slice %101 {offsets = [0, 0], sizes = [24, 32], strides = [1, 1]} : vector<24x128xf32> to vector<24x32xf32>
    %103 = vector.extract_strided_slice %101 {offsets = [0, 32], sizes = [24, 32], strides = [1, 1]} : vector<24x128xf32> to vector<24x32xf32>
    %104 = vector.extract_strided_slice %101 {offsets = [0, 64], sizes = [24, 32], strides = [1, 1]} : vector<24x128xf32> to vector<24x32xf32>
    %105 = vector.extract_strided_slice %101 {offsets = [0, 96], sizes = [24, 32], strides = [1, 1]} : vector<24x128xf32> to vector<24x32xf32>
    %106 = arith.mulf %103, %2 : vector<24x32xf32>
    %107 = arith.mulf %102, %104 : vector<24x32xf32>
    %108 = arith.addf %106, %107 : vector<24x32xf32>
    %109 = math.tanh %108 : vector<24x32xf32>
    %110 = arith.mulf %105, %109 : vector<24x32xf32>
    %c0_77 = arith.constant 0 : index
    %c0_78 = arith.constant 0 : index
    %c0_79 = arith.constant 0 : index
    %c0_80 = arith.constant 0 : index
    %111 = vector.load %arg10[%c0_77, %c0_78, %c0_79, %c0_80] : memref<1x3x24x32xf32, #tpu.memory_space<vmem>>, vector<1x1x24x32xf32>
    %112 = vector.shape_cast %111 : vector<1x1x24x32xf32> to vector<24x32xf32>
    %113 = vector.shape_cast %110 : vector<24x32xf32> to vector<1x1x24x32xf32>
    tpu.vector_store %arg10[%c0_77, %c0_78, %c0_79, %c0_80], %113 {strides = array<i32>} : memref<1x3x24x32xf32, #tpu.memory_space<vmem>>, vector<1x1x24x32xf32>,
    %cst_81 = arith.constant dense<0.000000e+00> : vector<160x32xf32>
    %114 = tpu.matmul %6, %110, %cst_81 {dimension_numbers = #tpu.dot_dimension_numbers<[1], [0], [0], [1], [0, 0, 1, 1], [], []>} : vector<160x24xf32>, vector<24x32xf32>, vector<160x32xf32> -> vector<160x32xf32>
    %115 = vector.extract_strided_slice %114 {offsets = [0, 0], sizes = [40, 32], strides = [1, 1]} : vector<160x32xf32> to vector<40x32xf32>
    %116 = vector.extract_strided_slice %114 {offsets = [40, 0], sizes = [40, 32], strides = [1, 1]} : vector<160x32xf32> to vector<40x32xf32>
    %c0_82 = arith.constant 0 : index
    %c0_83 = arith.constant 0 : index
    %c0_84 = arith.constant 0 : index
    %117 = vector.load %arg6[%c0_82, %c0_83, %c0_84] : memref<8x32x32xf32, #tpu.memory_space<vmem>>, vector<1x32x32xf32>
    %118 = vector.shape_cast %117 : vector<1x32x32xf32> to vector<32x32xf32>
    %cst_85 = arith.constant dense<0.000000e+00> : vector<40x32xf32>
    %119 = tpu.matmul %115, %118, %cst_85 {dimension_numbers = #tpu.dot_dimension_numbers<[1], [0], [0], [1], [0, 0, 1, 1], [], []>} : vector<40x32xf32>, vector<32x32xf32>, vector<40x32xf32> -> vector<40x32xf32>
    %c1_86 = arith.constant 1 : index
    %c0_87 = arith.constant 0 : index
    %c0_88 = arith.constant 0 : index
    %120 = vector.load %arg6[%c1_86, %c0_87, %c0_88] : memref<8x32x32xf32, #tpu.memory_space<vmem>>, vector<1x32x32xf32>
    %121 = vector.shape_cast %120 : vector<1x32x32xf32> to vector<32x32xf32>
    %cst_89 = arith.constant dense<0.000000e+00> : vector<40x32xf32>
    %122 = tpu.matmul %116, %121, %cst_89 {dimension_numbers = #tpu.dot_dimension_numbers<[1], [0], [0], [1], [0, 0, 1, 1], [], []>} : vector<40x32xf32>, vector<32x32xf32>, vector<40x32xf32> -> vector<40x32xf32>
    %123 = arith.addf %119, %122 : vector<40x32xf32>
    %c0_90 = arith.constant 0 : index
    %c0_91 = arith.constant 0 : index
    %c0_92 = arith.constant 0 : index
    %124 = vector.load %arg7[%c0_90, %c0_91, %c0_92] : memref<6x1x32xf32, #tpu.memory_space<vmem>>, vector<1x1x32xf32>
    %125 = vector.shape_cast %124 : vector<1x1x32xf32> to vector<1x32xf32>
    %126 = vector.broadcast %125 : vector<1x32xf32> to vector<40x32xf32>
    %127 = arith.addf %123, %126 : vector<40x32xf32>
    %cst_93 = arith.constant 0.000000e+00 : f32
    %128 = vector.broadcast %cst_93 : f32 to vector<40x32xf32>
    %129 = arith.maximumf %127, %128 : vector<40x32xf32>
    %c2_94 = arith.constant 2 : index
    %c0_95 = arith.constant 0 : index
    %c0_96 = arith.constant 0 : index
    %130 = vector.load %arg6[%c2_94, %c0_95, %c0_96] : memref<8x32x32xf32, #tpu.memory_space<vmem>>, vector<1x32x32xf32>
    %131 = vector.shape_cast %130 : vector<1x32x32xf32> to vector<32x32xf32>
    %cst_97 = arith.constant dense<0.000000e+00> : vector<40x32xf32>
    %132 = tpu.matmul %129, %131, %cst_97 {dimension_numbers = #tpu.dot_dimension_numbers<[1], [0], [0], [1], [0, 0, 1, 1], [], []>} : vector<40x32xf32>, vector<32x32xf32>, vector<40x32xf32> -> vector<40x32xf32>
    %c1_98 = arith.constant 1 : index
    %c0_99 = arith.constant 0 : index
    %c0_100 = arith.constant 0 : index
    %133 = vector.load %arg7[%c1_98, %c0_99, %c0_100] : memref<6x1x32xf32, #tpu.memory_space<vmem>>, vector<1x1x32xf32>
    %134 = vector.shape_cast %133 : vector<1x1x32xf32> to vector<1x32xf32>
    %135 = vector.broadcast %134 : vector<1x32xf32> to vector<40x32xf32>
    %136 = arith.addf %132, %135 : vector<40x32xf32>
    %cst_101 = arith.constant 0.000000e+00 : f32
    %137 = vector.broadcast %cst_101 : f32 to vector<40x32xf32>
    %138 = arith.maximumf %136, %137 : vector<40x32xf32>
    %c3_102 = arith.constant 3 : index
    %c0_103 = arith.constant 0 : index
    %c0_104 = arith.constant 0 : index
    %139 = vector.load %arg6[%c3_102, %c0_103, %c0_104] : memref<8x32x32xf32, #tpu.memory_space<vmem>>, vector<1x32x32xf32>
    %140 = vector.shape_cast %139 : vector<1x32x32xf32> to vector<32x32xf32>
    %cst_105 = arith.constant dense<0.000000e+00> : vector<40x32xf32>
    %141 = tpu.matmul %138, %140, %cst_105 {dimension_numbers = #tpu.dot_dimension_numbers<[1], [0], [0], [1], [0, 0, 1, 1], [], []>} : vector<40x32xf32>, vector<32x32xf32>, vector<40x32xf32> -> vector<40x32xf32>
    %c2_106 = arith.constant 2 : index
    %c0_107 = arith.constant 0 : index
    %c0_108 = arith.constant 0 : index
    %142 = vector.load %arg7[%c2_106, %c0_107, %c0_108] : memref<6x1x32xf32, #tpu.memory_space<vmem>>, vector<1x1x32xf32>
    %143 = vector.shape_cast %142 : vector<1x1x32xf32> to vector<1x32xf32>
    %144 = vector.broadcast %143 : vector<1x32xf32> to vector<40x32xf32>
    %145 = arith.addf %141, %144 : vector<40x32xf32>
    %cst_109 = arith.constant 0.000000e+00 : f32
    %146 = vector.broadcast %cst_109 : f32 to vector<40x32xf32>
    %147 = arith.maximumf %145, %146 : vector<40x32xf32>
    %c0_110 = arith.constant 0 : index
    %c0_111 = arith.constant 0 : index
    %c0_112 = arith.constant 0 : index
    %148 = vector.load %arg8[%c0_110, %c0_111, %c0_112] : memref<2x32x128xf32, #tpu.memory_space<vmem>>, vector<1x32x128xf32>
    %149 = vector.shape_cast %148 : vector<1x32x128xf32> to vector<32x128xf32>
    %cst_113 = arith.constant dense<0.000000e+00> : vector<40x128xf32>
    %150 = tpu.matmul %147, %149, %cst_113 {dimension_numbers = #tpu.dot_dimension_numbers<[1], [0], [0], [1], [0, 0, 1, 1], [], []>} : vector<40x32xf32>, vector<32x128xf32>, vector<40x128xf32> -> vector<40x128xf32>
    %cst_114 = arith.constant dense<0.000000e+00> : vector<24x128xf32>
    %151 = tpu.matmul %8, %150, %cst_114 {dimension_numbers = #tpu.dot_dimension_numbers<[1], [0], [0], [1], [0, 0, 1, 1], [], []>} : vector<24x40xf32>, vector<40x128xf32>, vector<24x128xf32> -> vector<24x128xf32>
    %152 = arith.addf %4, %151 : vector<24x128xf32>
    %153 = vector.extract_strided_slice %114 {offsets = [80, 0], sizes = [40, 32], strides = [1, 1]} : vector<160x32xf32> to vector<40x32xf32>
    %154 = vector.extract_strided_slice %114 {offsets = [120, 0], sizes = [40, 32], strides = [1, 1]} : vector<160x32xf32> to vector<40x32xf32>
    %c4_115 = arith.constant 4 : index
    %c0_116 = arith.constant 0 : index
    %c0_117 = arith.constant 0 : index
    %155 = vector.load %arg6[%c4_115, %c0_116, %c0_117] : memref<8x32x32xf32, #tpu.memory_space<vmem>>, vector<1x32x32xf32>
    %156 = vector.shape_cast %155 : vector<1x32x32xf32> to vector<32x32xf32>
    %cst_118 = arith.constant dense<0.000000e+00> : vector<40x32xf32>
    %157 = tpu.matmul %153, %156, %cst_118 {dimension_numbers = #tpu.dot_dimension_numbers<[1], [0], [0], [1], [0, 0, 1, 1], [], []>} : vector<40x32xf32>, vector<32x32xf32>, vector<40x32xf32> -> vector<40x32xf32>
    %c5_119 = arith.constant 5 : index
    %c0_120 = arith.constant 0 : index
    %c0_121 = arith.constant 0 : index
    %158 = vector.load %arg6[%c5_119, %c0_120, %c0_121] : memref<8x32x32xf32, #tpu.memory_space<vmem>>, vector<1x32x32xf32>
    %159 = vector.shape_cast %158 : vector<1x32x32xf32> to vector<32x32xf32>
    %cst_122 = arith.constant dense<0.000000e+00> : vector<40x32xf32>
    %160 = tpu.matmul %154, %159, %cst_122 {dimension_numbers = #tpu.dot_dimension_numbers<[1], [0], [0], [1], [0, 0, 1, 1], [], []>} : vector<40x32xf32>, vector<32x32xf32>, vector<40x32xf32> -> vector<40x32xf32>
    %161 = arith.addf %157, %160 : vector<40x32xf32>
    %c3_123 = arith.constant 3 : index
    %c0_124 = arith.constant 0 : index
    %c0_125 = arith.constant 0 : index
    %162 = vector.load %arg7[%c3_123, %c0_124, %c0_125] : memref<6x1x32xf32, #tpu.memory_space<vmem>>, vector<1x1x32xf32>
    %163 = vector.shape_cast %162 : vector<1x1x32xf32> to vector<1x32xf32>
    %164 = vector.broadcast %163 : vector<1x32xf32> to vector<40x32xf32>
    %165 = arith.addf %161, %164 : vector<40x32xf32>
    %cst_126 = arith.constant 0.000000e+00 : f32
    %166 = vector.broadcast %cst_126 : f32 to vector<40x32xf32>
    %167 = arith.maximumf %165, %166 : vector<40x32xf32>
    %c6_127 = arith.constant 6 : index
    %c0_128 = arith.constant 0 : index
    %c0_129 = arith.constant 0 : index
    %168 = vector.load %arg6[%c6_127, %c0_128, %c0_129] : memref<8x32x32xf32, #tpu.memory_space<vmem>>, vector<1x32x32xf32>
    %169 = vector.shape_cast %168 : vector<1x32x32xf32> to vector<32x32xf32>
    %cst_130 = arith.constant dense<0.000000e+00> : vector<40x32xf32>
    %170 = tpu.matmul %167, %169, %cst_130 {dimension_numbers = #tpu.dot_dimension_numbers<[1], [0], [0], [1], [0, 0, 1, 1], [], []>} : vector<40x32xf32>, vector<32x32xf32>, vector<40x32xf32> -> vector<40x32xf32>
    %c4_131 = arith.constant 4 : index
    %c0_132 = arith.constant 0 : index
    %c0_133 = arith.constant 0 : index
    %171 = vector.load %arg7[%c4_131, %c0_132, %c0_133] : memref<6x1x32xf32, #tpu.memory_space<vmem>>, vector<1x1x32xf32>
    %172 = vector.shape_cast %171 : vector<1x1x32xf32> to vector<1x32xf32>
    %173 = vector.broadcast %172 : vector<1x32xf32> to vector<40x32xf32>
    %174 = arith.addf %170, %173 : vector<40x32xf32>
    %cst_134 = arith.constant 0.000000e+00 : f32
    %175 = vector.broadcast %cst_134 : f32 to vector<40x32xf32>
    %176 = arith.maximumf %174, %175 : vector<40x32xf32>
    %c7_135 = arith.constant 7 : index
    %c0_136 = arith.constant 0 : index
    %c0_137 = arith.constant 0 : index
    %177 = vector.load %arg6[%c7_135, %c0_136, %c0_137] : memref<8x32x32xf32, #tpu.memory_space<vmem>>, vector<1x32x32xf32>
    %178 = vector.shape_cast %177 : vector<1x32x32xf32> to vector<32x32xf32>
    %cst_138 = arith.constant dense<0.000000e+00> : vector<40x32xf32>
    %179 = tpu.matmul %176, %178, %cst_138 {dimension_numbers = #tpu.dot_dimension_numbers<[1], [0], [0], [1], [0, 0, 1, 1], [], []>} : vector<40x32xf32>, vector<32x32xf32>, vector<40x32xf32> -> vector<40x32xf32>
    %c5_139 = arith.constant 5 : index
    %c0_140 = arith.constant 0 : index
    %c0_141 = arith.constant 0 : index
    %180 = vector.load %arg7[%c5_139, %c0_140, %c0_141] : memref<6x1x32xf32, #tpu.memory_space<vmem>>, vector<1x1x32xf32>
    %181 = vector.shape_cast %180 : vector<1x1x32xf32> to vector<1x32xf32>
    %182 = vector.broadcast %181 : vector<1x32xf32> to vector<40x32xf32>
    %183 = arith.addf %179, %182 : vector<40x32xf32>
    %cst_142 = arith.constant 0.000000e+00 : f32
    %184 = vector.broadcast %cst_142 : f32 to vector<40x32xf32>
    %185 = arith.maximumf %183, %184 : vector<40x32xf32>
    %c1_143 = arith.constant 1 : index
    %c0_144 = arith.constant 0 : index
    %c0_145 = arith.constant 0 : index
    %186 = vector.load %arg8[%c1_143, %c0_144, %c0_145] : memref<2x32x128xf32, #tpu.memory_space<vmem>>, vector<1x32x128xf32>
    %187 = vector.shape_cast %186 : vector<1x32x128xf32> to vector<32x128xf32>
    %cst_146 = arith.constant dense<0.000000e+00> : vector<40x128xf32>
    %188 = tpu.matmul %185, %187, %cst_146 {dimension_numbers = #tpu.dot_dimension_numbers<[1], [0], [0], [1], [0, 0, 1, 1], [], []>} : vector<40x32xf32>, vector<32x128xf32>, vector<40x128xf32> -> vector<40x128xf32>
    %cst_147 = arith.constant dense<0.000000e+00> : vector<24x128xf32>
    %189 = tpu.matmul %10, %188, %cst_147 {dimension_numbers = #tpu.dot_dimension_numbers<[1], [0], [0], [1], [0, 0, 1, 1], [], []>} : vector<24x40xf32>, vector<40x128xf32>, vector<24x128xf32> -> vector<24x128xf32>
    %190 = arith.addf %152, %189 : vector<24x128xf32>
    %cst_148 = arith.constant dense<0.000000e+00> : vector<24x128xf32>
    %191 = tpu.matmul %110, %11, %cst_148 {dimension_numbers = #tpu.dot_dimension_numbers<[1], [0], [0], [1], [0, 0, 1, 1], [], []>} : vector<24x32xf32>, vector<32x128xf32>, vector<24x128xf32> -> vector<24x128xf32>
    %192 = arith.addf %190, %191 : vector<24x128xf32>
    %193 = tpu.iota {dimensions = array<i32: 1>} : vector<24x128xi32>
    %c64_i32_149 = arith.constant 64 : i32
    %194 = vector.broadcast %c64_i32_149 : i32 to vector<24x128xi32>
    %195 = arith.cmpi sge, %193, %194 : vector<24x128xi32>
    %c96_i32_150 = arith.constant 96 : i32
    %196 = vector.broadcast %c96_i32_150 : i32 to vector<24x128xi32>
    %197 = arith.cmpi slt, %193, %196 : vector<24x128xi32>
    %198 = arith.andi %195, %197 : vector<24x128xi1>
    %199 = math.tanh %192 : vector<24x128xf32>
    %200 = arith.negf %192 : vector<24x128xf32>
    %201 = math.exp %200 : vector<24x128xf32>
    %cst_151 = arith.constant 1.000000e+00 : f32
    %202 = vector.broadcast %cst_151 : f32 to vector<24x128xf32>
    %203 = arith.addf %202, %201 : vector<24x128xf32>
    %204 = arith.divf %202, %203 : vector<24x128xf32>
    %205 = arith.select %198, %199, %204 : vector<24x128xi1>, vector<24x128xf32>
    %206 = vector.extract_strided_slice %205 {offsets = [0, 0], sizes = [24, 32], strides = [1, 1]} : vector<24x128xf32> to vector<24x32xf32>
    %207 = vector.extract_strided_slice %205 {offsets = [0, 32], sizes = [24, 32], strides = [1, 1]} : vector<24x128xf32> to vector<24x32xf32>
    %208 = vector.extract_strided_slice %205 {offsets = [0, 64], sizes = [24, 32], strides = [1, 1]} : vector<24x128xf32> to vector<24x32xf32>
    %209 = vector.extract_strided_slice %205 {offsets = [0, 96], sizes = [24, 32], strides = [1, 1]} : vector<24x128xf32> to vector<24x32xf32>
    %210 = arith.mulf %207, %108 : vector<24x32xf32>
    %211 = arith.mulf %206, %208 : vector<24x32xf32>
    %212 = arith.addf %210, %211 : vector<24x32xf32>
    %213 = math.tanh %212 : vector<24x32xf32>
    %214 = arith.mulf %209, %213 : vector<24x32xf32>
    %c0_152 = arith.constant 0 : index
    %c1_153 = arith.constant 1 : index
    %c0_154 = arith.constant 0 : index
    %c0_155 = arith.constant 0 : index
    %215 = vector.load %arg10[%c0_152, %c1_153, %c0_154, %c0_155] : memref<1x3x24x32xf32, #tpu.memory_space<vmem>>, vector<1x1x24x32xf32>
    %216 = vector.shape_cast %215 : vector<1x1x24x32xf32> to vector<24x32xf32>
    %217 = vector.shape_cast %214 : vector<24x32xf32> to vector<1x1x24x32xf32>
    tpu.vector_store %arg10[%c0_152, %c1_153, %c0_154, %c0_155], %217 {strides = array<i32>} : memref<1x3x24x32xf32, #tpu.memory_space<vmem>>, vector<1x1x24x32xf32>,
    %cst_156 = arith.constant dense<0.000000e+00> : vector<160x32xf32>
    %218 = tpu.matmul %6, %214, %cst_156 {dimension_numbers = #tpu.dot_dimension_numbers<[1], [0], [0], [1], [0, 0, 1, 1], [], []>} : vector<160x24xf32>, vector<24x32xf32>, vector<160x32xf32> -> vector<160x32xf32>
    %219 = vector.extract_strided_slice %218 {offsets = [0, 0], sizes = [40, 32], strides = [1, 1]} : vector<160x32xf32> to vector<40x32xf32>
    %220 = vector.extract_strided_slice %218 {offsets = [40, 0], sizes = [40, 32], strides = [1, 1]} : vector<160x32xf32> to vector<40x32xf32>
    %c0_157 = arith.constant 0 : index
    %c0_158 = arith.constant 0 : index
    %c0_159 = arith.constant 0 : index
    %221 = vector.load %arg6[%c0_157, %c0_158, %c0_159] : memref<8x32x32xf32, #tpu.memory_space<vmem>>, vector<1x32x32xf32>
    %222 = vector.shape_cast %221 : vector<1x32x32xf32> to vector<32x32xf32>
    %cst_160 = arith.constant dense<0.000000e+00> : vector<40x32xf32>
    %223 = tpu.matmul %219, %222, %cst_160 {dimension_numbers = #tpu.dot_dimension_numbers<[1], [0], [0], [1], [0, 0, 1, 1], [], []>} : vector<40x32xf32>, vector<32x32xf32>, vector<40x32xf32> -> vector<40x32xf32>
    %c1_161 = arith.constant 1 : index
    %c0_162 = arith.constant 0 : index
    %c0_163 = arith.constant 0 : index
    %224 = vector.load %arg6[%c1_161, %c0_162, %c0_163] : memref<8x32x32xf32, #tpu.memory_space<vmem>>, vector<1x32x32xf32>
    %225 = vector.shape_cast %224 : vector<1x32x32xf32> to vector<32x32xf32>
    %cst_164 = arith.constant dense<0.000000e+00> : vector<40x32xf32>
    %226 = tpu.matmul %220, %225, %cst_164 {dimension_numbers = #tpu.dot_dimension_numbers<[1], [0], [0], [1], [0, 0, 1, 1], [], []>} : vector<40x32xf32>, vector<32x32xf32>, vector<40x32xf32> -> vector<40x32xf32>
    %227 = arith.addf %223, %226 : vector<40x32xf32>
    %c0_165 = arith.constant 0 : index
    %c0_166 = arith.constant 0 : index
    %c0_167 = arith.constant 0 : index
    %228 = vector.load %arg7[%c0_165, %c0_166, %c0_167] : memref<6x1x32xf32, #tpu.memory_space<vmem>>, vector<1x1x32xf32>
    %229 = vector.shape_cast %228 : vector<1x1x32xf32> to vector<1x32xf32>
    %230 = vector.broadcast %229 : vector<1x32xf32> to vector<40x32xf32>
    %231 = arith.addf %227, %230 : vector<40x32xf32>
    %cst_168 = arith.constant 0.000000e+00 : f32
    %232 = vector.broadcast %cst_168 : f32 to vector<40x32xf32>
    %233 = arith.maximumf %231, %232 : vector<40x32xf32>
    %c2_169 = arith.constant 2 : index
    %c0_170 = arith.constant 0 : index
    %c0_171 = arith.constant 0 : index
    %234 = vector.load %arg6[%c2_169, %c0_170, %c0_171] : memref<8x32x32xf32, #tpu.memory_space<vmem>>, vector<1x32x32xf32>
    %235 = vector.shape_cast %234 : vector<1x32x32xf32> to vector<32x32xf32>
    %cst_172 = arith.constant dense<0.000000e+00> : vector<40x32xf32>
    %236 = tpu.matmul %233, %235, %cst_172 {dimension_numbers = #tpu.dot_dimension_numbers<[1], [0], [0], [1], [0, 0, 1, 1], [], []>} : vector<40x32xf32>, vector<32x32xf32>, vector<40x32xf32> -> vector<40x32xf32>
    %c1_173 = arith.constant 1 : index
    %c0_174 = arith.constant 0 : index
    %c0_175 = arith.constant 0 : index
    %237 = vector.load %arg7[%c1_173, %c0_174, %c0_175] : memref<6x1x32xf32, #tpu.memory_space<vmem>>, vector<1x1x32xf32>
    %238 = vector.shape_cast %237 : vector<1x1x32xf32> to vector<1x32xf32>
    %239 = vector.broadcast %238 : vector<1x32xf32> to vector<40x32xf32>
    %240 = arith.addf %236, %239 : vector<40x32xf32>
    %cst_176 = arith.constant 0.000000e+00 : f32
    %241 = vector.broadcast %cst_176 : f32 to vector<40x32xf32>
    %242 = arith.maximumf %240, %241 : vector<40x32xf32>
    %c3_177 = arith.constant 3 : index
    %c0_178 = arith.constant 0 : index
    %c0_179 = arith.constant 0 : index
    %243 = vector.load %arg6[%c3_177, %c0_178, %c0_179] : memref<8x32x32xf32, #tpu.memory_space<vmem>>, vector<1x32x32xf32>
    %244 = vector.shape_cast %243 : vector<1x32x32xf32> to vector<32x32xf32>
    %cst_180 = arith.constant dense<0.000000e+00> : vector<40x32xf32>
    %245 = tpu.matmul %242, %244, %cst_180 {dimension_numbers = #tpu.dot_dimension_numbers<[1], [0], [0], [1], [0, 0, 1, 1], [], []>} : vector<40x32xf32>, vector<32x32xf32>, vector<40x32xf32> -> vector<40x32xf32>
    %c2_181 = arith.constant 2 : index
    %c0_182 = arith.constant 0 : index
    %c0_183 = arith.constant 0 : index
    %246 = vector.load %arg7[%c2_181, %c0_182, %c0_183] : memref<6x1x32xf32, #tpu.memory_space<vmem>>, vector<1x1x32xf32>
    %247 = vector.shape_cast %246 : vector<1x1x32xf32> to vector<1x32xf32>
    %248 = vector.broadcast %247 : vector<1x32xf32> to vector<40x32xf32>
    %249 = arith.addf %245, %248 : vector<40x32xf32>
    %cst_184 = arith.constant 0.000000e+00 : f32
    %250 = vector.broadcast %cst_184 : f32 to vector<40x32xf32>
    %251 = arith.maximumf %249, %250 : vector<40x32xf32>
    %c0_185 = arith.constant 0 : index
    %c0_186 = arith.constant 0 : index
    %c0_187 = arith.constant 0 : index
    %252 = vector.load %arg8[%c0_185, %c0_186, %c0_187] : memref<2x32x128xf32, #tpu.memory_space<vmem>>, vector<1x32x128xf32>
    %253 = vector.shape_cast %252 : vector<1x32x128xf32> to vector<32x128xf32>
    %cst_188 = arith.constant dense<0.000000e+00> : vector<40x128xf32>
    %254 = tpu.matmul %251, %253, %cst_188 {dimension_numbers = #tpu.dot_dimension_numbers<[1], [0], [0], [1], [0, 0, 1, 1], [], []>} : vector<40x32xf32>, vector<32x128xf32>, vector<40x128xf32> -> vector<40x128xf32>
    %cst_189 = arith.constant dense<0.000000e+00> : vector<24x128xf32>
    %255 = tpu.matmul %8, %254, %cst_189 {dimension_numbers = #tpu.dot_dimension_numbers<[1], [0], [0], [1], [0, 0, 1, 1], [], []>} : vector<24x40xf32>, vector<40x128xf32>, vector<24x128xf32> -> vector<24x128xf32>
    %256 = arith.addf %4, %255 : vector<24x128xf32>
    %257 = vector.extract_strided_slice %218 {offsets = [80, 0], sizes = [40, 32], strides = [1, 1]} : vector<160x32xf32> to vector<40x32xf32>
    %258 = vector.extract_strided_slice %218 {offsets = [120, 0], sizes = [40, 32], strides = [1, 1]} : vector<160x32xf32> to vector<40x32xf32>
    %c4_190 = arith.constant 4 : index
    %c0_191 = arith.constant 0 : index
    %c0_192 = arith.constant 0 : index
    %259 = vector.load %arg6[%c4_190, %c0_191, %c0_192] : memref<8x32x32xf32, #tpu.memory_space<vmem>>, vector<1x32x32xf32>
    %260 = vector.shape_cast %259 : vector<1x32x32xf32> to vector<32x32xf32>
    %cst_193 = arith.constant dense<0.000000e+00> : vector<40x32xf32>
    %261 = tpu.matmul %257, %260, %cst_193 {dimension_numbers = #tpu.dot_dimension_numbers<[1], [0], [0], [1], [0, 0, 1, 1], [], []>} : vector<40x32xf32>, vector<32x32xf32>, vector<40x32xf32> -> vector<40x32xf32>
    %c5_194 = arith.constant 5 : index
    %c0_195 = arith.constant 0 : index
    %c0_196 = arith.constant 0 : index
    %262 = vector.load %arg6[%c5_194, %c0_195, %c0_196] : memref<8x32x32xf32, #tpu.memory_space<vmem>>, vector<1x32x32xf32>
    %263 = vector.shape_cast %262 : vector<1x32x32xf32> to vector<32x32xf32>
    %cst_197 = arith.constant dense<0.000000e+00> : vector<40x32xf32>
    %264 = tpu.matmul %258, %263, %cst_197 {dimension_numbers = #tpu.dot_dimension_numbers<[1], [0], [0], [1], [0, 0, 1, 1], [], []>} : vector<40x32xf32>, vector<32x32xf32>, vector<40x32xf32> -> vector<40x32xf32>
    %265 = arith.addf %261, %264 : vector<40x32xf32>
    %c3_198 = arith.constant 3 : index
    %c0_199 = arith.constant 0 : index
    %c0_200 = arith.constant 0 : index
    %266 = vector.load %arg7[%c3_198, %c0_199, %c0_200] : memref<6x1x32xf32, #tpu.memory_space<vmem>>, vector<1x1x32xf32>
    %267 = vector.shape_cast %266 : vector<1x1x32xf32> to vector<1x32xf32>
    %268 = vector.broadcast %267 : vector<1x32xf32> to vector<40x32xf32>
    %269 = arith.addf %265, %268 : vector<40x32xf32>
    %cst_201 = arith.constant 0.000000e+00 : f32
    %270 = vector.broadcast %cst_201 : f32 to vector<40x32xf32>
    %271 = arith.maximumf %269, %270 : vector<40x32xf32>
    %c6_202 = arith.constant 6 : index
    %c0_203 = arith.constant 0 : index
    %c0_204 = arith.constant 0 : index
    %272 = vector.load %arg6[%c6_202, %c0_203, %c0_204] : memref<8x32x32xf32, #tpu.memory_space<vmem>>, vector<1x32x32xf32>
    %273 = vector.shape_cast %272 : vector<1x32x32xf32> to vector<32x32xf32>
    %cst_205 = arith.constant dense<0.000000e+00> : vector<40x32xf32>
    %274 = tpu.matmul %271, %273, %cst_205 {dimension_numbers = #tpu.dot_dimension_numbers<[1], [0], [0], [1], [0, 0, 1, 1], [], []>} : vector<40x32xf32>, vector<32x32xf32>, vector<40x32xf32> -> vector<40x32xf32>
    %c4_206 = arith.constant 4 : index
    %c0_207 = arith.constant 0 : index
    %c0_208 = arith.constant 0 : index
    %275 = vector.load %arg7[%c4_206, %c0_207, %c0_208] : memref<6x1x32xf32, #tpu.memory_space<vmem>>, vector<1x1x32xf32>
    %276 = vector.shape_cast %275 : vector<1x1x32xf32> to vector<1x32xf32>
    %277 = vector.broadcast %276 : vector<1x32xf32> to vector<40x32xf32>
    %278 = arith.addf %274, %277 : vector<40x32xf32>
    %cst_209 = arith.constant 0.000000e+00 : f32
    %279 = vector.broadcast %cst_209 : f32 to vector<40x32xf32>
    %280 = arith.maximumf %278, %279 : vector<40x32xf32>
    %c7_210 = arith.constant 7 : index
    %c0_211 = arith.constant 0 : index
    %c0_212 = arith.constant 0 : index
    %281 = vector.load %arg6[%c7_210, %c0_211, %c0_212] : memref<8x32x32xf32, #tpu.memory_space<vmem>>, vector<1x32x32xf32>
    %282 = vector.shape_cast %281 : vector<1x32x32xf32> to vector<32x32xf32>
    %cst_213 = arith.constant dense<0.000000e+00> : vector<40x32xf32>
    %283 = tpu.matmul %280, %282, %cst_213 {dimension_numbers = #tpu.dot_dimension_numbers<[1], [0], [0], [1], [0, 0, 1, 1], [], []>} : vector<40x32xf32>, vector<32x32xf32>, vector<40x32xf32> -> vector<40x32xf32>
    %c5_214 = arith.constant 5 : index
    %c0_215 = arith.constant 0 : index
    %c0_216 = arith.constant 0 : index
    %284 = vector.load %arg7[%c5_214, %c0_215, %c0_216] : memref<6x1x32xf32, #tpu.memory_space<vmem>>, vector<1x1x32xf32>
    %285 = vector.shape_cast %284 : vector<1x1x32xf32> to vector<1x32xf32>
    %286 = vector.broadcast %285 : vector<1x32xf32> to vector<40x32xf32>
    %287 = arith.addf %283, %286 : vector<40x32xf32>
    %cst_217 = arith.constant 0.000000e+00 : f32
    %288 = vector.broadcast %cst_217 : f32 to vector<40x32xf32>
    %289 = arith.maximumf %287, %288 : vector<40x32xf32>
    %c1_218 = arith.constant 1 : index
    %c0_219 = arith.constant 0 : index
    %c0_220 = arith.constant 0 : index
    %290 = vector.load %arg8[%c1_218, %c0_219, %c0_220] : memref<2x32x128xf32, #tpu.memory_space<vmem>>, vector<1x32x128xf32>
    %291 = vector.shape_cast %290 : vector<1x32x128xf32> to vector<32x128xf32>
    %cst_221 = arith.constant dense<0.000000e+00> : vector<40x128xf32>
    %292 = tpu.matmul %289, %291, %cst_221 {dimension_numbers = #tpu.dot_dimension_numbers<[1], [0], [0], [1], [0, 0, 1, 1], [], []>} : vector<40x32xf32>, vector<32x128xf32>, vector<40x128xf32> -> vector<40x128xf32>
    %cst_222 = arith.constant dense<0.000000e+00> : vector<24x128xf32>
    %293 = tpu.matmul %10, %292, %cst_222 {dimension_numbers = #tpu.dot_dimension_numbers<[1], [0], [0], [1], [0, 0, 1, 1], [], []>} : vector<24x40xf32>, vector<40x128xf32>, vector<24x128xf32> -> vector<24x128xf32>
    %294 = arith.addf %256, %293 : vector<24x128xf32>
    %cst_223 = arith.constant dense<0.000000e+00> : vector<24x128xf32>
    %295 = tpu.matmul %214, %11, %cst_223 {dimension_numbers = #tpu.dot_dimension_numbers<[1], [0], [0], [1], [0, 0, 1, 1], [], []>} : vector<24x32xf32>, vector<32x128xf32>, vector<24x128xf32> -> vector<24x128xf32>
    %296 = arith.addf %294, %295 : vector<24x128xf32>
    %297 = tpu.iota {dimensions = array<i32: 1>} : vector<24x128xi32>
    %c64_i32_224 = arith.constant 64 : i32
    %298 = vector.broadcast %c64_i32_224 : i32 to vector<24x128xi32>
    %299 = arith.cmpi sge, %297, %298 : vector<24x128xi32>
    %c96_i32_225 = arith.constant 96 : i32
    %300 = vector.broadcast %c96_i32_225 : i32 to vector<24x128xi32>
    %301 = arith.cmpi slt, %297, %300 : vector<24x128xi32>
    %302 = arith.andi %299, %301 : vector<24x128xi1>
    %303 = math.tanh %296 : vector<24x128xf32>
    %304 = arith.negf %296 : vector<24x128xf32>
    %305 = math.exp %304 : vector<24x128xf32>
    %cst_226 = arith.constant 1.000000e+00 : f32
    %306 = vector.broadcast %cst_226 : f32 to vector<24x128xf32>
    %307 = arith.addf %306, %305 : vector<24x128xf32>
    %308 = arith.divf %306, %307 : vector<24x128xf32>
    %309 = arith.select %302, %303, %308 : vector<24x128xi1>, vector<24x128xf32>
    %310 = vector.extract_strided_slice %309 {offsets = [0, 0], sizes = [24, 32], strides = [1, 1]} : vector<24x128xf32> to vector<24x32xf32>
    %311 = vector.extract_strided_slice %309 {offsets = [0, 32], sizes = [24, 32], strides = [1, 1]} : vector<24x128xf32> to vector<24x32xf32>
    %312 = vector.extract_strided_slice %309 {offsets = [0, 64], sizes = [24, 32], strides = [1, 1]} : vector<24x128xf32> to vector<24x32xf32>
    %313 = vector.extract_strided_slice %309 {offsets = [0, 96], sizes = [24, 32], strides = [1, 1]} : vector<24x128xf32> to vector<24x32xf32>
    %314 = arith.mulf %311, %212 : vector<24x32xf32>
    %315 = arith.mulf %310, %312 : vector<24x32xf32>
    %316 = arith.addf %314, %315 : vector<24x32xf32>
    %317 = math.tanh %316 : vector<24x32xf32>
    %318 = arith.mulf %313, %317 : vector<24x32xf32>
    %c0_227 = arith.constant 0 : index
    %c2_228 = arith.constant 2 : index
    %c0_229 = arith.constant 0 : index
    %c0_230 = arith.constant 0 : index
    %319 = vector.load %arg10[%c0_227, %c2_228, %c0_229, %c0_230] : memref<1x3x24x32xf32, #tpu.memory_space<vmem>>, vector<1x1x24x32xf32>
    %320 = vector.shape_cast %319 : vector<1x1x24x32xf32> to vector<24x32xf32>
    %321 = vector.shape_cast %318 : vector<24x32xf32> to vector<1x1x24x32xf32>
    tpu.vector_store %arg10[%c0_227, %c2_228, %c0_229, %c0_230], %321 {strides = array<i32>} : memref<1x3x24x32xf32, #tpu.memory_space<vmem>>, vector<1x1x24x32xf32>,
    return
  }
  func.func @transform_0(%arg0: i32) -> (i32, i32, i32) {
    %c0_i32 = arith.constant 0 : i32
    %c0_i32_0 = arith.constant 0 : i32
    %c0_i32_1 = arith.constant 0 : i32
    return %arg0, %c0_i32, %c0_i32_0 : i32, i32, i32
  }
  func.func @transform_1(%arg0: i32) -> (i32, i32, i32) {
    %c0_i32 = arith.constant 0 : i32
    %c0_i32_0 = arith.constant 0 : i32
    %c0_i32_1 = arith.constant 0 : i32
    return %arg0, %c0_i32, %c0_i32_0 : i32, i32, i32
  }
  func.func @transform_2(%arg0: i32) -> (i32, i32, i32) {
    %c0_i32 = arith.constant 0 : i32
    %c0_i32_0 = arith.constant 0 : i32
    %c0_i32_1 = arith.constant 0 : i32
    return %arg0, %c0_i32, %c0_i32_0 : i32, i32, i32
  }
  func.func @transform_3(%arg0: i32) -> (i32, i32, i32) {
    %c0_i32 = arith.constant 0 : i32
    %c0_i32_0 = arith.constant 0 : i32
    %c0_i32_1 = arith.constant 0 : i32
    return %arg0, %c0_i32, %c0_i32_0 : i32, i32, i32
  }
  func.func @transform_4(%arg0: i32) -> (i32, i32, i32) {
    %c0_i32 = arith.constant 0 : i32
    %c0_i32_0 = arith.constant 0 : i32
    %c0_i32_1 = arith.constant 0 : i32
    return %arg0, %c0_i32, %c0_i32_0 : i32, i32, i32
  }
  func.func @transform_5(%arg0: i32) -> (i32, i32, i32) {
    %c0_i32 = arith.constant 0 : i32
    %c0_i32_0 = arith.constant 0 : i32
    %c0_i32_1 = arith.constant 0 : i32
    %c0_i32_2 = arith.constant 0 : i32
    return %c0_i32, %c0_i32_0, %c0_i32_1 : i32, i32, i32
  }
  func.func @transform_6(%arg0: i32) -> (i32, i32, i32) {
    %c0_i32 = arith.constant 0 : i32
    %c0_i32_0 = arith.constant 0 : i32
    %c0_i32_1 = arith.constant 0 : i32
    %c0_i32_2 = arith.constant 0 : i32
    return %c0_i32, %c0_i32_0, %c0_i32_1 : i32, i32, i32
  }
  func.func @transform_7(%arg0: i32) -> (i32, i32, i32) {
    %c0_i32 = arith.constant 0 : i32
    %c0_i32_0 = arith.constant 0 : i32
    %c0_i32_1 = arith.constant 0 : i32
    %c0_i32_2 = arith.constant 0 : i32
    return %c0_i32, %c0_i32_0, %c0_i32_1 : i32, i32, i32
  }
  func.func @transform_8(%arg0: i32) -> (i32, i32) {
    %c0_i32 = arith.constant 0 : i32
    %c0_i32_0 = arith.constant 0 : i32
    %c0_i32_1 = arith.constant 0 : i32
    return %c0_i32, %c0_i32_0 : i32, i32
  }
  func.func @transform_9(%arg0: i32) -> (i32, i32, i32, i32) {
    %c0_i32 = arith.constant 0 : i32
    %c0_i32_0 = arith.constant 0 : i32
    %c0_i32_1 = arith.constant 0 : i32
    %c0_i32_2 = arith.constant 0 : i32
    return %arg0, %c0_i32, %c0_i32_0, %c0_i32_1 : i32, i32, i32, i32
  }
}

</mosaic_0001>

<llo_original>
// kernel: run_rrcn.1
$region0: #{run_rrcn.1}
  #allocation0 [shape = 'u32[]', space=smem, size = 0x4, offset = 0x4, fixed_abs, tag = 'smem constant byte address 0x4 - core index']
  #allocation1 [shape = 'u32[144,128]{1,0:T(1,128)}', space=vmem, size = 0x12000, scoped, tag = 'internal scratch']
  %s0 = inlined_call_operand.vmem [shape: f32[2,24,32], index: 0, kind: input, shape index: {}]
  %s1 = inlined_call_operand.vmem [shape: f32[2,24,128], index: 1, kind: input, shape index: {}]
  %s2 = inlined_call_operand.vmem [shape: f32[2,160,24], index: 2, kind: input, shape index: {}]
  %s3 = inlined_call_operand.vmem [shape: f32[2,24,40], index: 3, kind: input, shape index: {}]
  %s4 = inlined_call_operand.vmem [shape: f32[2,24,40], index: 4, kind: input, shape index: {}]
  %s5 = inlined_call_operand.vmem [shape: f32[8,32,32], index: 5, kind: input, shape index: {}]
  %s6 = inlined_call_operand.vmem [shape: f32[6,1,32], index: 6, kind: input, shape index: {}]
  %s7 = inlined_call_operand.vmem [shape: f32[2,32,128], index: 7, kind: input, shape index: {}]
  %s8 = inlined_call_operand.vmem [shape: f32[32,128], index: 8, kind: input, shape index: {}]
  %s9 = inlined_call_operand.vmem [shape: f32[2,3,24,32], index: 9, kind: output, shape index: {}]
  %s10 = sld [smem:[#allocation0]]
  $region69: #{run_rrcn.1} parent=0
    _
  %s12 = ssub.s32 1, %s10
  %s13 = scalar_select 0, %s12, %s10
  loop: start=0, step=1, limit=4
  $region2: #{run_rrcn.1} parent=0 // loop_pre_header
    _
  $region3: #{run_rrcn.1} parent=0 // loop_header
    %s15 = sphi 0, %s19
    %p16 = scmp.ge.s32.totalorder %s15, 4
    %s25 = sphi 0, %s27
    %s28 = sphi 0, %s25
    %s29 = sphi 0, %s28
    %s45 = sphi 0, %s29
    %s51 = sphi 0, %s53
    %s54 = sphi 0, %s51
    %s55 = sphi 0, %s54
    %s71 = sphi 0, %s55
    %s77 = sphi 0, %s79
    %s80 = sphi 0, %s77
    %s81 = sphi 0, %s80
    %s97 = sphi 0, %s81
    %s103 = sphi 0, %s105
    %s106 = sphi 0, %s103
    %s107 = sphi 0, %s106
    %s123 = sphi 0, %s107
    %s129 = sphi 0, %s131
    %s132 = sphi 0, %s129
    %s133 = sphi 0, %s132
    %s149 = sphi 0, %s133
    %s153 = sphi 0, %s153
    %s155 = sphi 0, %s153
    %s156 = sphi 0, %s155
    %s170 = sphi 0, %s156
    %s174 = sphi 0, %s174
    %s176 = sphi 0, %s174
    %s177 = sphi 0, %s176
    %s191 = sphi 0, %s177
    %s195 = sphi 0, %s195
    %s197 = sphi 0, %s195
    %s198 = sphi 0, %s197
    %s212 = sphi 0, %s198
    %s216 = sphi 0, %s216
    %s218 = sphi 0, %s216
    %s219 = sphi 0, %s218
    %s233 = sphi 0, %s219
    %s239 = sphi 0, %s241
    %s242 = sphi 0, %s239
    %s243 = sphi 0, %s242
    %s259 = sphi 0, %s243
  $region4: #{run_rrcn.1} parent=0 // loop_header_branch
    %18 = sbr.rel (%p16) target = $region8
  $region5: #{run_rrcn.1} parent=0 // loop_body
    %s20 = ssub.s32 %s15, 1
    %s21 = ssub.s32 %s15, 2
    %s22 = sadd.s32 %s15, 1
    %s23 = ssub.s32 %s15, %s22
    %p24 = scmp.eq.s32.totalorder %s23, 0
    %s26 = sadd.s32 %s25, 1
    %s27 = scalar_select %p24, %s25, %s26
    %p30 = pneg %p24
    %p31 = scmp.eq.s32.totalorder %s15, 1
    %p32 = por %p30, %p31
    %p33 = scmp.ne.s32.totalorder %s25, %s28
    %p34 = scmp.eq.s32.totalorder %s15, 0
    %p35 = por %p33, %p34
    %p36 = scmp.ne.s32.totalorder %s25, %s28
    %p37 = scmp.eq.s32.totalorder %s20, 1
    %p38 = por %p36, %p37
    %p39 = scmp.ne.s32.totalorder %s28, %s29
    %p40 = scmp.eq.s32.totalorder %s20, 0
    %p41 = por %p39, %p40
    %p42 = scmp.ne.s32.totalorder %s28, %s29
    %p43 = scmp.eq.s32.totalorder %s21, 1
    %p44 = por %p42, %p43
    %p46 = scmp.ne.s32.totalorder %s29, %s45
    %p47 = scmp.eq.s32.totalorder %s21, 0
    %p48 = por %p46, %p47
    %s49 = ssub.s32 %s15, %s22
    %p50 = scmp.eq.s32.totalorder %s49, 0
    %s52 = sadd.s32 %s51, 1
    %s53 = scalar_select %p50, %s51, %s52
    %p56 = pneg %p50
    %p57 = scmp.eq.s32.totalorder %s15, 1
    %p58 = por %p56, %p57
    %p59 = scmp.ne.s32.totalorder %s51, %s54
    %p60 = scmp.eq.s32.totalorder %s15, 0
    %p61 = por %p59, %p60
    %p62 = scmp.ne.s32.totalorder %s51, %s54
    %p63 = scmp.eq.s32.totalorder %s20, 1
    %p64 = por %p62, %p63
    %p65 = scmp.ne.s32.totalorder %s54, %s55
    %p66 = scmp.eq.s32.totalorder %s20, 0
    %p67 = por %p65, %p66
    %p68 = scmp.ne.s32.totalorder %s54, %s55
    %p69 = scmp.eq.s32.totalorder %s21, 1
    %p70 = por %p68, %p69
    %p72 = scmp.ne.s32.totalorder %s55, %s71
    %p73 = scmp.eq.s32.totalorder %s21, 0
    %p74 = por %p72, %p73
    %s75 = ssub.s32 %s15, %s22
    %p76 = scmp.eq.s32.totalorder %s75, 0
    %s78 = sadd.s32 %s77, 1
    %s79 = scalar_select %p76, %s77, %s78
    %p82 = pneg %p76
    %p83 = scmp.eq.s32.totalorder %s15, 1
    %p84 = por %p82, %p83
    %p85 = scmp.ne.s32.totalorder %s77, %s80
    %p86 = scmp.eq.s32.totalorder %s15, 0
    %p87 = por %p85, %p86
    %p88 = scmp.ne.s32.totalorder %s77, %s80
    %p89 = scmp.eq.s32.totalorder %s20, 1
    %p90 = por %p88, %p89
    %p91 = scmp.ne.s32.totalorder %s80, %s81
    %p92 = scmp.eq.s32.totalorder %s20, 0
    %p93 = por %p91, %p92
    %p94 = scmp.ne.s32.totalorder %s80, %s81
    %p95 = scmp.eq.s32.totalorder %s21, 1
    %p96 = por %p94, %p95
    %p98 = scmp.ne.s32.totalorder %s81, %s97
    %p99 = scmp.eq.s32.totalorder %s21, 0
    %p100 = por %p98, %p99
    %s101 = ssub.s32 %s15, %s22
    %p102 = scmp.eq.s32.totalorder %s101, 0
    %s104 = sadd.s32 %s103, 1
    %s105 = scalar_select %p102, %s103, %s104
    %p108 = pneg %p102
    %p109 = scmp.eq.s32.totalorder %s15, 1
    %p110 = por %p108, %p109
    %p111 = scmp.ne.s32.totalorder %s103, %s106
    %p112 = scmp.eq.s32.totalorder %s15, 0
    %p113 = por %p111, %p112
    %p114 = scmp.ne.s32.totalorder %s103, %s106
    %p115 = scmp.eq.s32.totalorder %s20, 1
    %p116 = por %p114, %p115
    %p117 = scmp.ne.s32.totalorder %s106, %s107
    %p118 = scmp.eq.s32.totalorder %s20, 0
    %p119 = por %p117, %p118
    %p120 = scmp.ne.s32.totalorder %s106, %s107
    %p121 = scmp.eq.s32.totalorder %s21, 1
    %p122 = por %p120, %p121
    %p124 = scmp.ne.s32.totalorder %s107, %s123
    %p125 = scmp.eq.s32.totalorder %s21, 0
    %p126 = por %p124, %p125
    %s127 = ssub.s32 %s15, %s22
    %p128 = scmp.eq.s32.totalorder %s127, 0
    %s130 = sadd.s32 %s129, 1
    %s131 = scalar_select %p128, %s129, %s130
    %p134 = pneg %p128
    %p135 = scmp.eq.s32.totalorder %s15, 1
    %p136 = por %p134, %p135
    %p137 = scmp.ne.s32.totalorder %s129, %s132
    %p138 = scmp.eq.s32.totalorder %s15, 0
    %p139 = por %p137, %p138
    %p140 = scmp.ne.s32.totalorder %s129, %s132
    %p141 = scmp.eq.s32.totalorder %s20, 1
    %p142 = por %p140, %p141
    %p143 = scmp.ne.s32.totalorder %s132, %s133
    %p144 = scmp.eq.s32.totalorder %s20, 0
    %p145 = por %p143, %p144
    %p146 = scmp.ne.s32.totalorder %s132, %s133
    %p147 = scmp.eq.s32.totalorder %s21, 1
    %p148 = por %p146, %p147
    %p150 = scmp.ne.s32.totalorder %s133, %s149
    %p151 = scmp.eq.s32.totalorder %s21, 0
    %p152 = por %p150, %p151
    %s154 = sadd.s32 %s153, 1
    %p157 = scmp.eq.s32.totalorder %s15, 1
    %p158 = scmp.ne.s32.totalorder %s153, %s155
    %p159 = scmp.eq.s32.totalorder %s15, 0
    %p160 = por %p158, %p159
    %p161 = scmp.ne.s32.totalorder %s153, %s155
    %p162 = scmp.eq.s32.totalorder %s20, 1
    %p163 = por %p161, %p162
    %p164 = scmp.ne.s32.totalorder %s155, %s156
    %p165 = scmp.eq.s32.totalorder %s20, 0
    %p166 = por %p164, %p165
    %p167 = scmp.ne.s32.totalorder %s155, %s156
    %p168 = scmp.eq.s32.totalorder %s21, 1
    %p169 = por %p167, %p168
    %p171 = scmp.ne.s32.totalorder %s156, %s170
    %p172 = scmp.eq.s32.totalorder %s21, 0
    %p173 = por %p171, %p172
    %s175 = sadd.s32 %s174, 1
    %p178 = scmp.eq.s32.totalorder %s15, 1
    %p179 = scmp.ne.s32.totalorder %s174, %s176
    %p180 = scmp.eq.s32.totalorder %s15, 0
    %p181 = por %p179, %p180
    %p182 = scmp.ne.s32.totalorder %s174, %s176
    %p183 = scmp.eq.s32.totalorder %s20, 1
    %p184 = por %p182, %p183
    %p185 = scmp.ne.s32.totalorder %s176, %s177
    %p186 = scmp.eq.s32.totalorder %s20, 0
    %p187 = por %p185, %p186
    %p188 = scmp.ne.s32.totalorder %s176, %s177
    %p189 = scmp.eq.s32.totalorder %s21, 1
    %p190 = por %p188, %p189
    %p192 = scmp.ne.s32.totalorder %s177, %s191
    %p193 = scmp.eq.s32.totalorder %s21, 0
    %p194 = por %p192, %p193
    %s196 = sadd.s32 %s195, 1
    %p199 = scmp.eq.s32.totalorder %s15, 1
    %p200 = scmp.ne.s32.totalorder %s195, %s197
    %p201 = scmp.eq.s32.totalorder %s15, 0
    %p202 = por %p200, %p201
    %p203 = scmp.ne.s32.totalorder %s195, %s197
    %p204 = scmp.eq.s32.totalorder %s20, 1
    %p205 = por %p203, %p204
    %p206 = scmp.ne.s32.totalorder %s197, %s198
    %p207 = scmp.eq.s32.totalorder %s20, 0
    %p208 = por %p206, %p207
    %p209 = scmp.ne.s32.totalorder %s197, %s198
    %p210 = scmp.eq.s32.totalorder %s21, 1
    %p211 = por %p209, %p210
    %p213 = scmp.ne.s32.totalorder %s198, %s212
    %p214 = scmp.eq.s32.totalorder %s21, 0
    %p215 = por %p213, %p214
    %s217 = sadd.s32 %s216, 1
    %p220 = scmp.eq.s32.totalorder %s15, 1
    %p221 = scmp.ne.s32.totalorder %s216, %s218
    %p222 = scmp.eq.s32.totalorder %s15, 0
    %p223 = por %p221, %p222
    %p224 = scmp.ne.s32.totalorder %s216, %s218
    %p225 = scmp.eq.s32.totalorder %s20, 1
    %p226 = por %p224, %p225
    %p227 = scmp.ne.s32.totalorder %s218, %s219
    %p228 = scmp.eq.s32.totalorder %s20, 0
    %p229 = por %p227, %p228
    %p230 = scmp.ne.s32.totalorder %s218, %s219
    %p231 = scmp.eq.s32.totalorder %s21, 1
    %p232 = por %p230, %p231
    %p234 = scmp.ne.s32.totalorder %s219, %s233
    %p235 = scmp.eq.s32.totalorder %s21, 0
    %p236 = por %p234, %p235
    %s237 = ssub.s32 %s15, %s22
    %p238 = scmp.eq.s32.totalorder %s237, 0
    %s240 = sadd.s32 %s239, 1
    %s241 = scalar_select %p238, %s239, %s240
    %p244 = pneg %p238
    %p245 = scmp.eq.s32.totalorder %s15, 1
    %p246 = por %p244, %p245
    %p247 = scmp.ne.s32.totalorder %s239, %s242
    %p248 = scmp.eq.s32.totalorder %s15, 0
    %p249 = por %p247, %p248
    %p250 = scmp.ne.s32.totalorder %s239, %s242
    %p251 = scmp.eq.s32.totalorder %s20, 1
    %p252 = por %p250, %p251
    %p253 = scmp.ne.s32.totalorder %s242, %s243
    %p254 = scmp.eq.s32.totalorder %s20, 0
    %p255 = por %p253, %p254
    %p256 = scmp.ne.s32.totalorder %s242, %s243
    %p257 = scmp.eq.s32.totalorder %s21, 1
    %p258 = por %p256, %p257
    %p260 = scmp.ne.s32.totalorder %s243, %s259
    %p261 = scmp.eq.s32.totalorder %s21, 0
    %p262 = por %p260, %p261
    %p263 = scmp.le.s32.totalorder 1, %s15
    %p264 = scmp.lt.s32.totalorder %s15, 3
    %p265 = pnand %p263, %p264
    %p266 = pneg %p265
    // Predicated region
    $region9: #{run_rrcn.1} parent=5 // pred_check
      _
    $region10: #{run_rrcn.1} parent=5 // pred_check_branch
      %268 = sbr.rel (%p265) target = $region12
    $region11: #{run_rrcn.1} parent=5 // pred_region
      %s269 = ssub.s32 %s15, 1
      // Predicated region
      $region13: #{run_rrcn.1} parent=11 // pred_check
        %p270 = pneg %p166
      $region14: #{run_rrcn.1} parent=11 // pred_check_branch
        %272 = sbr.rel (%p270) target = $region16
      $region15: #{run_rrcn.1} parent=11 // pred_region
        _
      $region16: #{run_rrcn.1} parent=11 // pred_fallthru
        _
      // Predicated region
      $region17: #{run_rrcn.1} parent=11 // pred_check
        %p273 = pneg %p187
      $region18: #{run_rrcn.1} parent=11 // pred_check_branch
        %275 = sbr.rel (%p273) target = $region20
      $region19: #{run_rrcn.1} parent=11 // pred_region
        _
      $region20: #{run_rrcn.1} parent=11 // pred_fallthru
        _
      // Predicated region
      $region21: #{run_rrcn.1} parent=11 // pred_check
        %p276 = pneg %p208
      $region22: #{run_rrcn.1} parent=11 // pred_check_branch
        %278 = sbr.rel (%p276) target = $region24
      $region23: #{run_rrcn.1} parent=11 // pred_region
        _
      $region24: #{run_rrcn.1} parent=11 // pred_fallthru
        _
      // Predicated region
      $region25: #{run_rrcn.1} parent=11 // pred_check
        %p279 = pneg %p229
      $region26: #{run_rrcn.1} parent=11 // pred_check_branch
        %281 = sbr.rel (%p279) target = $region28
      $region27: #{run_rrcn.1} parent=11 // pred_region
        _
      $region28: #{run_rrcn.1} parent=11 // pred_fallthru
        _
    $region12: #{run_rrcn.1} parent=5 // pred_fallthru
      _
    %p282 = scmp.lt.s32.totalorder %s15, 2
    // Predicated region
    $region29: #{run_rrcn.1} parent=5 // pred_check
      %p283 = pneg %p282
    $region30: #{run_rrcn.1} parent=5 // pred_check_branch
      %285 = sbr.rel (%p283) target = $region32
    $region31: #{run_rrcn.1} parent=5 // pred_region
      // Predicated region
      $region33: #{run_rrcn.1} parent=31 // pred_check
        %p286 = pneg %p35
      $region34: #{run_rrcn.1} parent=31 // pred_check_branch
        %288 = sbr.rel (%p286) target = $region36
      $region35: #{run_rrcn.1} parent=31 // pred_region
        %p289 = scmp.lt.s32.totalorder %s15, 1
        %s290 = scalar_select %p289, %s15, 1
        %s291 = smul.addr %s290, 3
        %s292 = smul.addr %s291, 8
        %s293 = scalar_lea.vmem %s0, %s292
      $region36: #{run_rrcn.1} parent=31 // pred_fallthru
        _
      // Predicated region
      $region37: #{run_rrcn.1} parent=31 // pred_check
        %p294 = pneg %p61
      $region38: #{run_rrcn.1} parent=31 // pred_check_branch
        %296 = sbr.rel (%p294) target = $region40
      $region39: #{run_rrcn.1} parent=31 // pred_region
        %p297 = scmp.lt.s32.totalorder %s15, 1
        %s298 = scalar_select %p297, %s15, 1
        %s299 = smul.addr %s298, 3
        %s300 = smul.addr %s299, 8
        %s301 = scalar_lea.vmem %s1, %s300
      $region40: #{run_rrcn.1} parent=31 // pred_fallthru
        _
      // Predicated region
      $region41: #{run_rrcn.1} parent=31 // pred_check
        %p302 = pneg %p87
      $region42: #{run_rrcn.1} parent=31 // pred_check_branch
        %304 = sbr.rel (%p302) target = $region44
      $region43: #{run_rrcn.1} parent=31 // pred_region
        %p305 = scmp.lt.s32.totalorder %s15, 1
        %s306 = scalar_select %p305, %s15, 1
        %s307 = smul.addr %s306, 20
        %s308 = smul.addr %s307, 8
        %s309 = scalar_lea.vmem %s2, %s308
      $region44: #{run_rrcn.1} parent=31 // pred_fallthru
        _
      // Predicated region
      $region45: #{run_rrcn.1} parent=31 // pred_check
        %p310 = pneg %p113
      $region46: #{run_rrcn.1} parent=31 // pred_check_branch
        %312 = sbr.rel (%p310) target = $region48
      $region47: #{run_rrcn.1} parent=31 // pred_region
        %p313 = scmp.lt.s32.totalorder %s15, 1
        %s314 = scalar_select %p313, %s15, 1
        %s315 = smul.addr %s314, 3
        %s316 = smul.addr %s315, 8
        %s317 = scalar_lea.vmem %s3, %s316
      $region48: #{run_rrcn.1} parent=31 // pred_fallthru
        _
      // Predicated region
      $region49: #{run_rrcn.1} parent=31 // pred_check
        %p318 = pneg %p139
      $region50: #{run_rrcn.1} parent=31 // pred_check_branch
        %320 = sbr.rel (%p318) target = $region52
      $region51: #{run_rrcn.1} parent=31 // pred_region
        %p321 = scmp.lt.s32.totalorder %s15, 1
        %s322 = scalar_select %p321, %s15, 1
        %s323 = smul.addr %s322, 3
        %s324 = smul.addr %s323, 8
        %s325 = scalar_lea.vmem %s4, %s324
      $region52: #{run_rrcn.1} parent=31 // pred_fallthru
        _
    $region32: #{run_rrcn.1} parent=5 // pred_fallthru
      _
    %p326 = scmp.le.s32.totalorder 1, %s15
    %p327 = scmp.lt.s32.totalorder %s15, 3
    %p328 = pnand %p326, %p327
    %p329 = pneg %p328
    // Predicated region
    $region53: #{run_rrcn.1} parent=5 // pred_check
      _
    $region54: #{run_rrcn.1} parent=5 // pred_check_branch
      %331 = sbr.rel (%p328) target = $region56
    $region55: #{run_rrcn.1} parent=5 // pred_region
      %s332 = ssub.s32 %s15, 1
      %p333 = scmp.lt.s32.totalorder %s20, 1
      %s334 = scalar_select %p333, %s20, 1
      %s335 = smul.addr %s334, 3
      %s336 = smul.addr %s335, 8
      %s337 = scalar_lea.vmem %s0, %s336
      %p338 = pneg %p41
      %p339 = pneg %p38
      %p340 = scmp.lt.s32.totalorder %s20, 1
      %s341 = scalar_select %p340, %s20, 1
      %s342 = smul.addr %s341, 3
      %s343 = smul.addr %s342, 8
      %s344 = scalar_lea.vmem %s1, %s343
      %p345 = pneg %p67
      %p346 = pneg %p64
      %p347 = scmp.lt.s32.totalorder %s20, 1
      %s348 = scalar_select %p347, %s20, 1
      %s349 = smul.addr %s348, 20
      %s350 = smul.addr %s349, 8
      %s351 = scalar_lea.vmem %s2, %s350
      %p352 = pneg %p93
      %p353 = pneg %p90
      %p354 = scmp.lt.s32.totalorder %s20, 1
      %s355 = scalar_select %p354, %s20, 1
      %s356 = smul.addr %s355, 3
      %s357 = smul.addr %s356, 8
      %s358 = scalar_lea.vmem %s3, %s357
      %p359 = pneg %p119
      %p360 = pneg %p116
      %p361 = scmp.lt.s32.totalorder %s20, 1
      %s362 = scalar_select %p361, %s20, 1
      %s363 = smul.addr %s362, 3
      %s364 = smul.addr %s363, 8
      %s365 = scalar_lea.vmem %s4, %s364
      %p366 = pneg %p145
      %p367 = pneg %p142
      %p368 = pneg %p166
      %p369 = pneg %p163
      %p370 = pneg %p187
      %p371 = pneg %p184
      %p372 = pneg %p208
      %p373 = pneg %p205
      %p374 = pneg %p229
      %p375 = pneg %p226
      %p376 = pneg %p255
      %p377 = pneg %p252
      %p378 = scmp.lt.s32.totalorder %s20, 1
      %s379 = scalar_select %p378, %s20, 1
      %s380 = smul.addr %s379, 9
      %s381 = smul.addr %s380, 8
      %s382 = scalar_lea.vmem %s9, %s381
      %p383 = scmp.lt.s32.totalorder %s20, 1
      %s384 = scalar_select %p383, %s20, 1
      %s385 = smul.addr %s384, 3
      %s386 = smul.addr %s385, 8
      %s387 = scalar_lea.vmem %s0, %s386
      %p388 = scmp.lt.s32.totalorder %s20, 1
      %s389 = scalar_select %p388, %s20, 1
      %s390 = smul.addr %s389, 3
      %s391 = smul.addr %s390, 8
      %s392 = scalar_lea.vmem %s1, %s391
      %p393 = scmp.lt.s32.totalorder %s20, 1
      %s394 = scalar_select %p393, %s20, 1
      %s395 = smul.addr %s394, 20
      %s396 = smul.addr %s395, 8
      %s397 = scalar_lea.vmem %s2, %s396
      %p398 = scmp.lt.s32.totalorder %s20, 1
      %s399 = scalar_select %p398, %s20, 1
      %s400 = smul.addr %s399, 3
      %s401 = smul.addr %s400, 8
      %s402 = scalar_lea.vmem %s3, %s401
      %p403 = scmp.lt.s32.totalorder %s20, 1
      %s404 = scalar_select %p403, %s20, 1
      %s405 = smul.addr %s404, 3
      %s406 = smul.addr %s405, 8
      %s407 = scalar_lea.vmem %s4, %s406
      %p408 = scmp.lt.s32.totalorder %s20, 1
      %s409 = scalar_select %p408, %s20, 1
      %s410 = smul.addr %s409, 9
      %s411 = smul.addr %s410, 8
      %s412 = scalar_lea.vmem %s9, %s411
      %v413 = vld [vmem:[%s387] sm:$0xff]
      %v414 = vld [vmem:[%s387 + $0x8] sm:$0xff]
      %v415 = vld [vmem:[%s387 + $0x10] sm:$0xff]
      %v416 = vld [vmem:[%s392] sm:$0xff]
      %v417 = vld [vmem:[%s392 + $0x8] sm:$0xff]
      %v418 = vld [vmem:[%s392 + $0x10] sm:$0xff]
      %v419 = vld [vmem:[%s397] sm:$0xff]
      %v420 = vld [vmem:[%s397 + $0x8] sm:$0xff]
      %v421 = vld [vmem:[%s397 + $0x10] sm:$0xff]
      %v422 = vld [vmem:[%s397 + $0x18] sm:$0xff]
      %v423 = vld [vmem:[%s397 + $0x20] sm:$0xff]
      %v424 = vld [vmem:[%s397 + $0x28] sm:$0xff]
      %v425 = vld [vmem:[%s397 + $0x30] sm:$0xff]
      %v426 = vld [vmem:[%s397 + $0x38] sm:$0xff]
      %v427 = vld [vmem:[%s397 + $0x40] sm:$0xff]
      %v428 = vld [vmem:[%s397 + $0x48] sm:$0xff]
      %v429 = vld [vmem:[%s397 + $0x50] sm:$0xff]
      %v430 = vld [vmem:[%s397 + $0x58] sm:$0xff]
      %v431 = vld [vmem:[%s397 + $0x60] sm:$0xff]
      %v432 = vld [vmem:[%s397 + $0x68] sm:$0xff]
      %v433 = vld [vmem:[%s397 + $0x70] sm:$0xff]
      %v434 = vld [vmem:[%s397 + $0x78] sm:$0xff]
      %v435 = vld [vmem:[%s397 + $0x80] sm:$0xff]
      %v436 = vld [vmem:[%s397 + $0x88] sm:$0xff]
      %v437 = vld [vmem:[%s397 + $0x90] sm:$0xff]
      %v438 = vld [vmem:[%s397 + $0x98] sm:$0xff]
      %v439 = vld [vmem:[%s402] sm:$0xff]
      %v440 = vld [vmem:[%s402 + $0x8] sm:$0xff]
      %v441 = vld [vmem:[%s402 + $0x10] sm:$0xff]
      %v442 = vld [vmem:[%s407] sm:$0xff]
      %v443 = vld [vmem:[%s407 + $0x8] sm:$0xff]
      %v444 = vld [vmem:[%s407 + $0x10] sm:$0xff]
      %v445 = vld [vmem:[%s8] sm:$0xff]
      %v446 = vld [vmem:[%s8 + $0x8] sm:$0xff]
      %v447 = vld [vmem:[%s8 + $0x10] sm:$0xff]
      %v448 = vld [vmem:[%s8 + $0x18] sm:$0xff]
      %vm449 = vcmask 195584
      %v451 = vsel %vm449, %v419, 0
      %v454 = vsel %vm449, %v420, 0
      %v457 = vsel %vm449, %v421, 0
      %v460 = vsel %vm449, %v422, 0
      %v463 = vsel %vm449, %v423, 0
      %v466 = vsel %vm449, %v424, 0
      %v469 = vsel %vm449, %v425, 0
      %v472 = vsel %vm449, %v426, 0
      %v475 = vsel %vm449, %v427, 0
      %v478 = vsel %vm449, %v428, 0
      %v481 = vsel %vm449, %v429, 0
      %v484 = vsel %vm449, %v430, 0
      %v487 = vsel %vm449, %v431, 0
      %v490 = vsel %vm449, %v432, 0
      %v493 = vsel %vm449, %v433, 0
      %v496 = vsel %vm449, %v434, 0
      %v499 = vsel %vm449, %v435, 0
      %v502 = vsel %vm449, %v436, 0
      %v505 = vsel %vm449, %v437, 0
      %v508 = vsel %vm449, %v438, 0
      %510 = vmatprep.subr.mxu0 0.0
      %511 = vmatpush1.msra.mxu0 %v413
      %512 = vmatprep.subr.mxu0 0.0
      %513 = vmatpush1.msra.mxu0 %v414
      %514 = vmatprep.subr.mxu0 0.0
      %515 = vmatpush1.msra.mxu0 %v415
      %516 = vmatprep.subr.mxu0 0.0
      %517 = vmatpush1.msra.mxu0 0.0
      %518 = vmatprep.subr.mxu0 0.0
      %519 = vmatpush1.msra.mxu0 0.0
      %520 = vmatprep.subr.mxu0 0.0
      %521 = vmatpush1.msra.mxu0 0.0
      %522 = vmatprep.subr.mxu0 0.0
      %523 = vmatpush1.msra.mxu0 0.0
      %524 = vmatprep.subr.mxu0 0.0
      %525 = vmatpush1.msra.mxu0 0.0
      %526 = vmatprep.subr.mxu0 0.0
      %527 = vmatpush1.msra.mxu0 0.0
      %528 = vmatprep.subr.mxu0 0.0
      %529 = vmatpush1.msra.mxu0 0.0
      %530 = vmatprep.subr.mxu0 0.0
      %531 = vmatpush1.msra.mxu0 0.0
      %532 = vmatprep.subr.mxu0 0.0
      %533 = vmatpush1.msra.mxu0 0.0
      %534 = vmatprep.subr.mxu0 0.0
      %535 = vmatpush1.msra.mxu0 0.0
      %536 = vmatprep.subr.mxu0 0.0
      %537 = vmatpush1.msra.mxu0 0.0
      %538 = vmatprep.subr.mxu0 0.0
      %539 = vmatpush1.msra.mxu0 0.0
      %540 = vmatprep.subr.mxu0 0.0
      %541 = vmatpush1.msra.mxu0 0.0
      %542 = vmatprep.subr.mxu0 0.0
      %543 = vmatpush1.msra.mxu0 0.0
      %544 = vmatprep.subr.mxu0 0.0
      %545 = vmatpush1.msra.mxu0 0.0
      %546 = vmatprep.subr.mxu0 0.0
      %547 = vmatpush1.msra.mxu0 0.0
      %548 = vmatprep.subr.mxu0 0.0
      %549 = vmatpush1.msra.mxu0 0.0
      %550 = vmatprep.subr.mxu0 0.0
      %551 = vmatpush1.msra.mxu0 0.0
      %552 = vmatprep.subr.mxu0 0.0
      %553 = vmatpush1.msra.mxu0 0.0
      %554 = vmatprep.subr.mxu0 0.0
      %555 = vmatpush1.msra.mxu0 0.0
      %556 = vmatprep.subr.mxu0 0.0
      %557 = vmatpush1.msra.mxu0 0.0
      %558 = vmatprep.subr.mxu0 0.0
      %559 = vmatpush1.msra.mxu0 0.0
      %560 = vmatprep.subr.mxu0 0.0
      %561 = vmatpush1.msra.mxu0 0.0
      %562 = vmatprep.subr.mxu0 0.0
      %563 = vmatpush1.msra.mxu0 0.0
      %564 = vmatprep.subr.mxu0 0.0
      %565 = vmatpush1.msra.mxu0 0.0
      %566 = vmatprep.subr.mxu0 0.0
      %567 = vmatpush1.msra.mxu0 0.0
      %568 = vmatprep.subr.mxu0 0.0
      %569 = vmatpush1.msra.mxu0 0.0
      %570 = vmatprep.subr.mxu0 0.0
      %571 = vmatpush1.msra.mxu0 0.0
      %572 = vmatprep.subr.mxu0 0.0
      %573 = vmatpush1.msra.mxu0 0.0
      %574 = vmatprep.mubr.f32.mxu0 0.0
      %575 = vmatmul.mubr.f32.gmra.mrb[0].mxu0 %v451
      %v576 = vpop.f32.mrb[0].mxu0
      %v577 = vadd.f32 0.0, %v576
      %v578 = vpop.f32.mrb[0].mxu0
      %579 = vmatprep.mubr.f32.mxu0 0.0
      %580 = vmatmul.mubr.f32.gmra.mrb[0].mxu0 %v454
      %v581 = vpop.f32.mrb[0].mxu0
      %v582 = vadd.f32 0.0, %v581
      %v583 = vpop.f32.mrb[0].mxu0
      %584 = vmatprep.mubr.f32.mxu0 0.0
      %585 = vmatmul.mubr.f32.gmra.mrb[0].mxu0 %v457
      %v586 = vpop.f32.mrb[0].mxu0
      %v587 = vadd.f32 0.0, %v586
      %v588 = vpop.f32.mrb[0].mxu0
      %589 = vmatprep.mubr.f32.mxu0 0.0
      %590 = vmatmul.mubr.f32.gmra.mrb[0].mxu0 %v460
      %v591 = vpop.f32.mrb[0].mxu0
      %v592 = vadd.f32 0.0, %v591
      %v593 = vpop.f32.mrb[0].mxu0
      %594 = vmatprep.mubr.f32.mxu0 0.0
      %595 = vmatmul.mubr.f32.gmra.mrb[0].mxu0 %v463
      %v596 = vpop.f32.mrb[0].mxu0
      %v597 = vadd.f32 0.0, %v596
      %v598 = vpop.f32.mrb[0].mxu0
      %599 = vmatprep.mubr.f32.mxu0 0.0
      %600 = vmatmul.mubr.f32.gmra.mrb[0].mxu0 %v466
      %v601 = vpop.f32.mrb[0].mxu0
      %v602 = vadd.f32 0.0, %v601
      %v603 = vpop.f32.mrb[0].mxu0
      %604 = vmatprep.mubr.f32.mxu0 0.0
      %605 = vmatmul.mubr.f32.gmra.mrb[0].mxu0 %v469
      %v606 = vpop.f32.mrb[0].mxu0
      %v607 = vadd.f32 0.0, %v606
      %v608 = vpop.f32.mrb[0].mxu0
      %609 = vmatprep.mubr.f32.mxu0 0.0
      %610 = vmatmul.mubr.f32.gmra.mrb[0].mxu0 %v472
      %v611 = vpop.f32.mrb[0].mxu0
      %v612 = vadd.f32 0.0, %v611
      %v613 = vpop.f32.mrb[0].mxu0
      %614 = vmatprep.mubr.f32.mxu0 0.0
      %615 = vmatmul.mubr.f32.gmra.mrb[0].mxu0 %v475
      %v616 = vpop.f32.mrb[0].mxu0
      %v617 = vadd.f32 0.0, %v616
      %v618 = vpop.f32.mrb[0].mxu0
      %619 = vmatprep.mubr.f32.mxu0 0.0
      %620 = vmatmul.mubr.f32.gmra.mrb[0].mxu0 %v478
      %v621 = vpop.f32.mrb[0].mxu0
      %v622 = vadd.f32 0.0, %v621
      %v623 = vpop.f32.mrb[0].mxu0
      %624 = vmatprep.mubr.f32.mxu0 0.0
      %625 = vmatmul.mubr.f32.gmra.mrb[0].mxu0 %v481
      %v626 = vpop.f32.mrb[0].mxu0
      %v627 = vadd.f32 0.0, %v626
      %v628 = vpop.f32.mrb[0].mxu0
      %629 = vmatprep.mubr.f32.mxu0 0.0
      %630 = vmatmul.mubr.f32.gmra.mrb[0].mxu0 %v484
      %v631 = vpop.f32.mrb[0].mxu0
      %v632 = vadd.f32 0.0, %v631
      %v633 = vpop.f32.mrb[0].mxu0
      %634 = vmatprep.mubr.f32.mxu0 0.0
      %635 = vmatmul.mubr.f32.gmra.mrb[0].mxu0 %v487
      %v636 = vpop.f32.mrb[0].mxu0
      %v637 = vadd.f32 0.0, %v636
      %v638 = vpop.f32.mrb[0].mxu0
      %639 = vmatprep.mubr.f32.mxu0 0.0
      %640 = vmatmul.mubr.f32.gmra.mrb[0].mxu0 %v490
      %v641 = vpop.f32.mrb[0].mxu0
      %v642 = vadd.f32 0.0, %v641
      %v643 = vpop.f32.mrb[0].mxu0
      %644 = vmatprep.mubr.f32.mxu0 0.0
      %645 = vmatmul.mubr.f32.gmra.mrb[0].mxu0 %v493
      %v646 = vpop.f32.mrb[0].mxu0
      %v647 = vadd.f32 0.0, %v646
      %v648 = vpop.f32.mrb[0].mxu0
      %649 = vmatprep.mubr.f32.mxu0 0.0
      %650 = vmatmul.mubr.f32.gmra.mrb[0].mxu0 %v496
      %v651 = vpop.f32.mrb[0].mxu0
      %v652 = vadd.f32 0.0, %v651
      %v653 = vpop.f32.mrb[0].mxu0
      %654 = vmatprep.mubr.f32.mxu0 0.0
      %655 = vmatmul.mubr.f32.gmra.mrb[0].mxu0 %v499
      %v656 = vpop.f32.mrb[0].mxu0
      %v657 = vadd.f32 0.0, %v656
      %v658 = vpop.f32.mrb[0].mxu0
      %659 = vmatprep.mubr.f32.mxu0 0.0
      %660 = vmatmul.mubr.f32.gmra.mrb[0].mxu0 %v502
      %v661 = vpop.f32.mrb[0].mxu0
      %v662 = vadd.f32 0.0, %v661
      %v663 = vpop.f32.mrb[0].mxu0
      %664 = vmatprep.mubr.f32.mxu0 0.0
      %665 = vmatmul.mubr.f32.gmra.mrb[0].mxu0 %v505
      %v666 = vpop.f32.mrb[0].mxu0
      %v667 = vadd.f32 0.0, %v666
      %v668 = vpop.f32.mrb[0].mxu0
      %669 = vmatprep.mubr.f32.mxu0 0.0
      %670 = vmatmul.mubr.f32.gmra.mrb[0].mxu0 %v508
      %v671 = vpop.f32.mrb[0].mxu0
      %v672 = vadd.f32 0.0, %v671
      %v673 = vpop.f32.mrb[0].mxu0
      %674 = vdwg.mxu0
      %v675 = vld [vmem:[%s5] sm:$0xff]
      %v676 = vld [vmem:[%s5 + $0x8] sm:$0xff]
      %v677 = vld [vmem:[%s5 + $0x10] sm:$0xff]
      %v678 = vld [vmem:[%s5 + $0x18] sm:$0xff]
      %s679 = scalar_lea.vmem %s5, 32
      %v680 = vld [vmem:[%s679] sm:$0xff]
      %v681 = vld [vmem:[%s679 + $0x8] sm:$0xff]
      %v682 = vld [vmem:[%s679 + $0x10] sm:$0xff]
      %v683 = vld [vmem:[%s679 + $0x18] sm:$0xff]
      %vm684 = vcmask 261120
      %v686 = vsel %vm684, %v602, 0
      %v689 = vsel %vm684, %v607, 0
      %v692 = vsel %vm684, %v612, 0
      %v695 = vsel %vm684, %v617, 0
      %v698 = vsel %vm684, %v622, 0
      %700 = vmatprep.subr.mxu0 0.0
      %701 = vmatpush1.msra.mxu0 %v680
      %702 = vmatprep.subr.mxu0 0.0
      %703 = vmatpush1.msra.mxu0 %v681
      %704 = vmatprep.subr.mxu0 0.0
      %705 = vmatpush1.msra.mxu0 %v682
      %706 = vmatprep.subr.mxu0 0.0
      %707 = vmatpush1.msra.mxu0 %v683
      %708 = vmatprep.subr.mxu0 0.0
      %709 = vmatpush1.msra.mxu0 0.0
      %710 = vmatprep.subr.mxu0 0.0
      %711 = vmatpush1.msra.mxu0 0.0
      %712 = vmatprep.subr.mxu0 0.0
      %713 = vmatpush1.msra.mxu0 0.0
      %714 = vmatprep.subr.mxu0 0.0
      %715 = vmatpush1.msra.mxu0 0.0
      %716 = vmatprep.subr.mxu0 0.0
      %717 = vmatpush1.msra.mxu0 0.0
      %718 = vmatprep.subr.mxu0 0.0
      %719 = vmatpush1.msra.mxu0 0.0
      %720 = vmatprep.subr.mxu0 0.0
      %721 = vmatpush1.msra.mxu0 0.0
      %722 = vmatprep.subr.mxu0 0.0
      %723 = vmatpush1.msra.mxu0 0.0
      %724 = vmatprep.subr.mxu0 0.0
      %725 = vmatpush1.msra.mxu0 0.0
      %726 = vmatprep.subr.mxu0 0.0
      %727 = vmatpush1.msra.mxu0 0.0
      %728 = vmatprep.subr.mxu0 0.0
      %729 = vmatpush1.msra.mxu0 0.0
      %730 = vmatprep.subr.mxu0 0.0
      %731 = vmatpush1.msra.mxu0 0.0
      %732 = vmatprep.subr.mxu0 0.0
      %733 = vmatpush1.msra.mxu0 0.0
      %734 = vmatprep.subr.mxu0 0.0
      %735 = vmatpush1.msra.mxu0 0.0
      %736 = vmatprep.subr.mxu0 0.0
      %737 = vmatpush1.msra.mxu0 0.0
      %738 = vmatprep.subr.mxu0 0.0
      %739 = vmatpush1.msra.mxu0 0.0
      %740 = vmatprep.subr.mxu0 0.0
      %741 = vmatpush1.msra.mxu0 0.0
      %742 = vmatprep.subr.mxu0 0.0
      %743 = vmatpush1.msra.mxu0 0.0
      %744 = vmatprep.subr.mxu0 0.0
      %745 = vmatpush1.msra.mxu0 0.0
      %746 = vmatprep.subr.mxu0 0.0
      %747 = vmatpush1.msra.mxu0 0.0
      %748 = vmatprep.subr.mxu0 0.0
      %749 = vmatpush1.msra.mxu0 0.0
      %750 = vmatprep.subr.mxu0 0.0
      %751 = vmatpush1.msra.mxu0 0.0
      %752 = vmatprep.subr.mxu0 0.0
      %753 = vmatpush1.msra.mxu0 0.0
      %754 = vmatprep.subr.mxu0 0.0
      %755 = vmatpush1.msra.mxu0 0.0
      %756 = vmatprep.subr.mxu0 0.0
      %757 = vmatpush1.msra.mxu0 0.0
      %758 = vmatprep.subr.mxu0 0.0
      %759 = vmatpush1.msra.mxu0 0.0
      %760 = vmatprep.subr.mxu0 0.0
      %761 = vmatpush1.msra.mxu0 0.0
      %762 = vmatprep.subr.mxu0 0.0
      %763 = vmatpush1.msra.mxu0 0.0
      %764 = vmatprep.mubr.f32.mxu0 0.0
      %765 = vmatmul.mubr.f32.gmra.mrb[0].mxu0 %v686
      %v766 = vpop.f32.mrb[0].mxu0
      %v767 = vadd.f32 0.0, %v766
      %v768 = vpop.f32.mrb[0].mxu0
      %769 = vmatprep.mubr.f32.mxu0 0.0
      %770 = vmatmul.mubr.f32.gmra.mrb[0].mxu0 %v689
      %v771 = vpop.f32.mrb[0].mxu0
      %v772 = vadd.f32 0.0, %v771
      %v773 = vpop.f32.mrb[0].mxu0
      %774 = vmatprep.mubr.f32.mxu0 0.0
      %775 = vmatmul.mubr.f32.gmra.mrb[0].mxu0 %v692
      %v776 = vpop.f32.mrb[0].mxu0
      %v777 = vadd.f32 0.0, %v776
      %v778 = vpop.f32.mrb[0].mxu0
      %779 = vmatprep.mubr.f32.mxu0 0.0
      %780 = vmatmul.mubr.f32.gmra.mrb[0].mxu0 %v695
      %v781 = vpop.f32.mrb[0].mxu0
      %v782 = vadd.f32 0.0, %v781
      %v783 = vpop.f32.mrb[0].mxu0
      %784 = vmatprep.mubr.f32.mxu0 0.0
      %785 = vmatmul.mubr.f32.gmra.mrb[0].mxu0 %v698
      %v786 = vpop.f32.mrb[0].mxu0
      %v787 = vadd.f32 0.0, %v786
      %v788 = vpop.f32.mrb[0].mxu0
      %789 = vdwg.mxu0
      %v791 = vsel %vm684, %v577, 0
      %v794 = vsel %vm684, %v582, 0
      %v797 = vsel %vm684, %v587, 0
      %v800 = vsel %vm684, %v592, 0
      %v803 = vsel %vm684, %v597, 0
      %805 = vmatprep.subr.mxu0 0.0
      %806 = vmatpush1.msra.mxu0 %v675
      %807 = vmatprep.subr.mxu0 0.0
      %808 = vmatpush1.msra.mxu0 %v676
      %809 = vmatprep.subr.mxu0 0.0
      %810 = vmatpush1.msra.mxu0 %v677
      %811 = vmatprep.subr.mxu0 0.0
      %812 = vmatpush1.msra.mxu0 %v678
      %813 = vmatprep.subr.mxu0 0.0
      %814 = vmatpush1.msra.mxu0 0.0
      %815 = vmatprep.subr.mxu0 0.0
      %816 = vmatpush1.msra.mxu0 0.0
      %817 = vmatprep.subr.mxu0 0.0
      %818 = vmatpush1.msra.mxu0 0.0
      %819 = vmatprep.subr.mxu0 0.0
      %820 = vmatpush1.msra.mxu0 0.0
      %821 = vmatprep.subr.mxu0 0.0
      %822 = vmatpush1.msra.mxu0 0.0
      %823 = vmatprep.subr.mxu0 0.0
      %824 = vmatpush1.msra.mxu0 0.0
      %825 = vmatprep.subr.mxu0 0.0
      %826 = vmatpush1.msra.mxu0 0.0
      %827 = vmatprep.subr.mxu0 0.0
      %828 = vmatpush1.msra.mxu0 0.0
      %829 = vmatprep.subr.mxu0 0.0
      %830 = vmatpush1.msra.mxu0 0.0
      %831 = vmatprep.subr.mxu0 0.0
      %832 = vmatpush1.msra.mxu0 0.0
      %833 = vmatprep.subr.mxu0 0.0
      %834 = vmatpush1.msra.mxu0 0.0
      %835 = vmatprep.subr.mxu0 0.0
      %836 = vmatpush1.msra.mxu0 0.0
      %837 = vmatprep.subr.mxu0 0.0
      %838 = vmatpush1.msra.mxu0 0.0
      %839 = vmatprep.subr.mxu0 0.0
      %840 = vmatpush1.msra.mxu0 0.0
      %841 = vmatprep.subr.mxu0 0.0
      %842 = vmatpush1.msra.mxu0 0.0
      %843 = vmatprep.subr.mxu0 0.0
      %844 = vmatpush1.msra.mxu0 0.0
      %845 = vmatprep.subr.mxu0 0.0
      %846 = vmatpush1.msra.mxu0 0.0
      %847 = vmatprep.subr.mxu0 0.0
      %848 = vmatpush1.msra.mxu0 0.0
      %849 = vmatprep.subr.mxu0 0.0
      %850 = vmatpush1.msra.mxu0 0.0
      %851 = vmatprep.subr.mxu0 0.0
      %852 = vmatpush1.msra.mxu0 0.0
      %853 = vmatprep.subr.mxu0 0.0
      %854 = vmatpush1.msra.mxu0 0.0
      %855 = vmatprep.subr.mxu0 0.0
      %856 = vmatpush1.msra.mxu0 0.0
      %857 = vmatprep.subr.mxu0 0.0
      %858 = vmatpush1.msra.mxu0 0.0
      %859 = vmatprep.subr.mxu0 0.0
      %860 = vmatpush1.msra.mxu0 0.0
      %861 = vmatprep.subr.mxu0 0.0
      %862 = vmatpush1.msra.mxu0 0.0
      %863 = vmatprep.subr.mxu0 0.0
      %864 = vmatpush1.msra.mxu0 0.0
      %865 = vmatprep.subr.mxu0 0.0
      %866 = vmatpush1.msra.mxu0 0.0
      %867 = vmatprep.subr.mxu0 0.0
      %868 = vmatpush1.msra.mxu0 0.0
      %869 = vmatprep.mubr.f32.mxu0 0.0
      %870 = vmatmul.mubr.f32.gmra.mrb[0].mxu0 %v791
      %v871 = vpop.f32.mrb[0].mxu0
      %v872 = vadd.f32 %v767, %v871
      %v873 = vpop.f32.mrb[0].mxu0
      %874 = vmatprep.mubr.f32.mxu0 0.0
      %875 = vmatmul.mubr.f32.gmra.mrb[0].mxu0 %v794
      %v876 = vpop.f32.mrb[0].mxu0
      %v877 = vadd.f32 %v772, %v876
      %v878 = vpop.f32.mrb[0].mxu0
      %879 = vmatprep.mubr.f32.mxu0 0.0
      %880 = vmatmul.mubr.f32.gmra.mrb[0].mxu0 %v797
      %v881 = vpop.f32.mrb[0].mxu0
      %v882 = vadd.f32 %v777, %v881
      %v883 = vpop.f32.mrb[0].mxu0
      %884 = vmatprep.mubr.f32.mxu0 0.0
      %885 = vmatmul.mubr.f32.gmra.mrb[0].mxu0 %v800
      %v886 = vpop.f32.mrb[0].mxu0
      %v887 = vadd.f32 %v782, %v886
      %v888 = vpop.f32.mrb[0].mxu0
      %889 = vmatprep.mubr.f32.mxu0 0.0
      %890 = vmatmul.mubr.f32.gmra.mrb[0].mxu0 %v803
      %v891 = vpop.f32.mrb[0].mxu0
      %v892 = vadd.f32 %v787, %v891
      %v893 = vpop.f32.mrb[0].mxu0
      %894 = vdwg.mxu0
      %v895 = vld [vmem:[%s6] sm:$0x1]
      %v897 = vlaneseq
      %v898 = vshrl.u32 %v897, 7
      %v899 = vsub.s32 0, %v898
      %v900 = vrot.slane %v895, %v899
      %v902 = vadd.f32 %v872, %v900
      %v903 = vadd.f32 %v877, %v900
      %v904 = vadd.f32 %v882, %v900
      %v905 = vadd.f32 %v887, %v900
      %v906 = vadd.f32 %v892, %v900
      %v907 = vmax.f32 %v902, 0.0
      %v908 = vmax.f32 %v903, 0.0
      %v909 = vmax.f32 %v904, 0.0
      %v910 = vmax.f32 %v905, 0.0
      %v911 = vmax.f32 %v906, 0.0
      %s912 = scalar_lea.vmem %s5, 64
      %v913 = vld [vmem:[%s912] sm:$0xff]
      %v914 = vld [vmem:[%s912 + $0x8] sm:$0xff]
      %v915 = vld [vmem:[%s912 + $0x10] sm:$0xff]
      %v916 = vld [vmem:[%s912 + $0x18] sm:$0xff]
      %s917 = scalar_lea.vmem %s6, 1
      %v918 = vld [vmem:[%s917] sm:$0x1]
      %v920 = vlaneseq
      %v921 = vshrl.u32 %v920, 7
      %v922 = vsub.s32 0, %v921
      %v923 = vrot.slane %v918, %v922
      %v926 = vsel %vm684, %v907, 0
      %v929 = vsel %vm684, %v908, 0
      %v932 = vsel %vm684, %v909, 0
      %v935 = vsel %vm684, %v910, 0
      %v938 = vsel %vm684, %v911, 0
      %940 = vmatprep.subr.mxu0 0.0
      %941 = vmatpush1.msra.mxu0 %v913
      %942 = vmatprep.subr.mxu0 0.0
      %943 = vmatpush1.msra.mxu0 %v914
      %944 = vmatprep.subr.mxu0 0.0
      %945 = vmatpush1.msra.mxu0 %v915
      %946 = vmatprep.subr.mxu0 0.0
      %947 = vmatpush1.msra.mxu0 %v916
      %948 = vmatprep.subr.mxu0 0.0
      %949 = vmatpush1.msra.mxu0 0.0
      %950 = vmatprep.subr.mxu0 0.0
      %951 = vmatpush1.msra.mxu0 0.0
      %952 = vmatprep.subr.mxu0 0.0
      %953 = vmatpush1.msra.mxu0 0.0
      %954 = vmatprep.subr.mxu0 0.0
      %955 = vmatpush1.msra.mxu0 0.0
      %956 = vmatprep.subr.mxu0 0.0
      %957 = vmatpush1.msra.mxu0 0.0
      %958 = vmatprep.subr.mxu0 0.0
      %959 = vmatpush1.msra.mxu0 0.0
      %960 = vmatprep.subr.mxu0 0.0
      %961 = vmatpush1.msra.mxu0 0.0
      %962 = vmatprep.subr.mxu0 0.0
      %963 = vmatpush1.msra.mxu0 0.0
      %964 = vmatprep.subr.mxu0 0.0
      %965 = vmatpush1.msra.mxu0 0.0
      %966 = vmatprep.subr.mxu0 0.0
      %967 = vmatpush1.msra.mxu0 0.0
      %968 = vmatprep.subr.mxu0 0.0
      %969 = vmatpush1.msra.mxu0 0.0
      %970 = vmatprep.subr.mxu0 0.0
      %971 = vmatpush1.msra.mxu0 0.0
      %972 = vmatprep.subr.mxu0 0.0
      %973 = vmatpush1.msra.mxu0 0.0
      %974 = vmatprep.subr.mxu0 0.0
      %975 = vmatpush1.msra.mxu0 0.0
      %976 = vmatprep.subr.mxu0 0.0
      %977 = vmatpush1.msra.mxu0 0.0
      %978 = vmatprep.subr.mxu0 0.0
      %979 = vmatpush1.msra.mxu0 0.0
      %980 = vmatprep.subr.mxu0 0.0
      %981 = vmatpush1.msra.mxu0 0.0
      %982 = vmatprep.subr.mxu0 0.0
      %983 = vmatpush1.msra.mxu0 0.0
      %984 = vmatprep.subr.mxu0 0.0
      %985 = vmatpush1.msra.mxu0 0.0
      %986 = vmatprep.subr.mxu0 0.0
      %987 = vmatpush1.msra.mxu0 0.0
      %988 = vmatprep.subr.mxu0 0.0
      %989 = vmatpush1.msra.mxu0 0.0
      %990 = vmatprep.subr.mxu0 0.0
      %991 = vmatpush1.msra.mxu0 0.0
      %992 = vmatprep.subr.mxu0 0.0
      %993 = vmatpush1.msra.mxu0 0.0
      %994 = vmatprep.subr.mxu0 0.0
      %995 = vmatpush1.msra.mxu0 0.0
      %996 = vmatprep.subr.mxu0 0.0
      %997 = vmatpush1.msra.mxu0 0.0
      %998 = vmatprep.subr.mxu0 0.0
      %999 = vmatpush1.msra.mxu0 0.0
      %1000 = vmatprep.subr.mxu0 0.0
      %1001 = vmatpush1.msra.mxu0 0.0
      %1002 = vmatprep.subr.mxu0 0.0
      %1003 = vmatpush1.msra.mxu0 0.0
      %1004 = vmatprep.mubr.f32.mxu0 0.0
      %1005 = vmatmul.mubr.f32.gmra.mrb[0].mxu0 %v926
      %v1006 = vpop.f32.mrb[0].mxu0
      %v1007 = vadd.f32 %v923, %v1006
      %v1008 = vpop.f32.mrb[0].mxu0
      %1009 = vmatprep.mubr.f32.mxu0 0.0
      %1010 = vmatmul.mubr.f32.gmra.mrb[0].mxu0 %v929
      %v1011 = vpop.f32.mrb[0].mxu0
      %v1012 = vadd.f32 %v923, %v1011
      %v1013 = vpop.f32.mrb[0].mxu0
      %1014 = vmatprep.mubr.f32.mxu0 0.0
      %1015 = vmatmul.mubr.f32.gmra.mrb[0].mxu0 %v932
      %v1016 = vpop.f32.mrb[0].mxu0
      %v1017 = vadd.f32 %v923, %v1016
      %v1018 = vpop.f32.mrb[0].mxu0
      %1019 = vmatprep.mubr.f32.mxu0 0.0
      %1020 = vmatmul.mubr.f32.gmra.mrb[0].mxu0 %v935
      %v1021 = vpop.f32.mrb[0].mxu0
      %v1022 = vadd.f32 %v923, %v1021
      %v1023 = vpop.f32.mrb[0].mxu0
      %1024 = vmatprep.mubr.f32.mxu0 0.0
      %1025 = vmatmul.mubr.f32.gmra.mrb[0].mxu0 %v938
      %v1026 = vpop.f32.mrb[0].mxu0
      %v1027 = vadd.f32 %v923, %v1026
      %v1028 = vpop.f32.mrb[0].mxu0
      %1029 = vdwg.mxu0
      %v1030 = vmax.f32 %v1007, 0.0
      %v1031 = vmax.f32 %v1012, 0.0
      %v1032 = vmax.f32 %v1017, 0.0
      %v1033 = vmax.f32 %v1022, 0.0
      %v1034 = vmax.f32 %v1027, 0.0
      %s1035 = scalar_lea.vmem %s5, 96
      %v1036 = vld [vmem:[%s1035] sm:$0xff]
      %v1037 = vld [vmem:[%s1035 + $0x8] sm:$0xff]
      %v1038 = vld [vmem:[%s1035 + $0x10] sm:$0xff]
      %v1039 = vld [vmem:[%s1035 + $0x18] sm:$0xff]
      %s1040 = scalar_lea.vmem %s6, 2
      %v1041 = vld [vmem:[%s1040] sm:$0x1]
      %v1043 = vlaneseq
      %v1044 = vshrl.u32 %v1043, 7
      %v1045 = vsub.s32 0, %v1044
      %v1046 = vrot.slane %v1041, %v1045
      %v1049 = vsel %vm684, %v1030, 0
      %v1052 = vsel %vm684, %v1031, 0
      %v1055 = vsel %vm684, %v1032, 0
      %v1058 = vsel %vm684, %v1033, 0
      %v1061 = vsel %vm684, %v1034, 0
      %1063 = vmatprep.subr.mxu0 0.0
      %1064 = vmatpush1.msra.mxu0 %v1036
      %1065 = vmatprep.subr.mxu0 0.0
      %1066 = vmatpush1.msra.mxu0 %v1037
      %1067 = vmatprep.subr.mxu0 0.0
      %1068 = vmatpush1.msra.mxu0 %v1038
      %1069 = vmatprep.subr.mxu0 0.0
      %1070 = vmatpush1.msra.mxu0 %v1039
      %1071 = vmatprep.subr.mxu0 0.0
      %1072 = vmatpush1.msra.mxu0 0.0
      %1073 = vmatprep.subr.mxu0 0.0
      %1074 = vmatpush1.msra.mxu0 0.0
      %1075 = vmatprep.subr.mxu0 0.0
      %1076 = vmatpush1.msra.mxu0 0.0
      %1077 = vmatprep.subr.mxu0 0.0
      %1078 = vmatpush1.msra.mxu0 0.0
      %1079 = vmatprep.subr.mxu0 0.0
      %1080 = vmatpush1.msra.mxu0 0.0
      %1081 = vmatprep.subr.mxu0 0.0
      %1082 = vmatpush1.msra.mxu0 0.0
      %1083 = vmatprep.subr.mxu0 0.0
      %1084 = vmatpush1.msra.mxu0 0.0
      %1085 = vmatprep.subr.mxu0 0.0
      %1086 = vmatpush1.msra.mxu0 0.0
      %1087 = vmatprep.subr.mxu0 0.0
      %1088 = vmatpush1.msra.mxu0 0.0
      %1089 = vmatprep.subr.mxu0 0.0
      %1090 = vmatpush1.msra.mxu0 0.0
      %1091 = vmatprep.subr.mxu0 0.0
      %1092 = vmatpush1.msra.mxu0 0.0
      %1093 = vmatprep.subr.mxu0 0.0
      %1094 = vmatpush1.msra.mxu0 0.0
      %1095 = vmatprep.subr.mxu0 0.0
      %1096 = vmatpush1.msra.mxu0 0.0
      %1097 = vmatprep.subr.mxu0 0.0
      %1098 = vmatpush1.msra.mxu0 0.0
      %1099 = vmatprep.subr.mxu0 0.0
      %1100 = vmatpush1.msra.mxu0 0.0
      %1101 = vmatprep.subr.mxu0 0.0
      %1102 = vmatpush1.msra.mxu0 0.0
      %1103 = vmatprep.subr.mxu0 0.0
      %1104 = vmatpush1.msra.mxu0 0.0
      %1105 = vmatprep.subr.mxu0 0.0
      %1106 = vmatpush1.msra.mxu0 0.0
      %1107 = vmatprep.subr.mxu0 0.0
      %1108 = vmatpush1.msra.mxu0 0.0
      %1109 = vmatprep.subr.mxu0 0.0
      %1110 = vmatpush1.msra.mxu0 0.0
      %1111 = vmatprep.subr.mxu0 0.0
      %1112 = vmatpush1.msra.mxu0 0.0
      %1113 = vmatprep.subr.mxu0 0.0
      %1114 = vmatpush1.msra.mxu0 0.0
      %1115 = vmatprep.subr.mxu0 0.0
      %1116 = vmatpush1.msra.mxu0 0.0
      %1117 = vmatprep.subr.mxu0 0.0
      %1118 = vmatpush1.msra.mxu0 0.0
      %1119 = vmatprep.subr.mxu0 0.0
      %1120 = vmatpush1.msra.mxu0 0.0
      %1121 = vmatprep.subr.mxu0 0.0
      %1122 = vmatpush1.msra.mxu0 0.0
      %1123 = vmatprep.subr.mxu0 0.0
      %1124 = vmatpush1.msra.mxu0 0.0
      %1125 = vmatprep.subr.mxu0 0.0
      %1126 = vmatpush1.msra.mxu0 0.0
      %1127 = vmatprep.mubr.f32.mxu0 0.0
      %1128 = vmatmul.mubr.f32.gmra.mrb[0].mxu0 %v1049
      %v1129 = vpop.f32.mrb[0].mxu0
      %v1130 = vadd.f32 %v1046, %v1129
      %v1131 = vpop.f32.mrb[0].mxu0
      %1132 = vmatprep.mubr.f32.mxu0 0.0
      %1133 = vmatmul.mubr.f32.gmra.mrb[0].mxu0 %v1052
      %v1134 = vpop.f32.mrb[0].mxu0
      %v1135 = vadd.f32 %v1046, %v1134
      %v1136 = vpop.f32.mrb[0].mxu0
      %1137 = vmatprep.mubr.f32.mxu0 0.0
      %1138 = vmatmul.mubr.f32.gmra.mrb[0].mxu0 %v1055
      %v1139 = vpop.f32.mrb[0].mxu0
      %v1140 = vadd.f32 %v1046, %v1139
      %v1141 = vpop.f32.mrb[0].mxu0
      %1142 = vmatprep.mubr.f32.mxu0 0.0
      %1143 = vmatmul.mubr.f32.gmra.mrb[0].mxu0 %v1058
      %v1144 = vpop.f32.mrb[0].mxu0
      %v1145 = vadd.f32 %v1046, %v1144
      %v1146 = vpop.f32.mrb[0].mxu0
      %1147 = vmatprep.mubr.f32.mxu0 0.0
      %1148 = vmatmul.mubr.f32.gmra.mrb[0].mxu0 %v1061
      %v1149 = vpop.f32.mrb[0].mxu0
      %v1150 = vadd.f32 %v1046, %v1149
      %v1151 = vpop.f32.mrb[0].mxu0
      %1152 = vdwg.mxu0
      %v1153 = vmax.f32 %v1130, 0.0
      %v1154 = vmax.f32 %v1135, 0.0
      %v1155 = vmax.f32 %v1140, 0.0
      %v1156 = vmax.f32 %v1145, 0.0
      %v1157 = vmax.f32 %v1150, 0.0
      %v1158 = vld [vmem:[%s7] sm:$0xff]
      %v1159 = vld [vmem:[%s7 + $0x8] sm:$0xff]
      %v1160 = vld [vmem:[%s7 + $0x10] sm:$0xff]
      %v1161 = vld [vmem:[%s7 + $0x18] sm:$0xff]
      %v1163 = vsel %vm684, %v1153, 0
      %v1166 = vsel %vm684, %v1154, 0
      %v1169 = vsel %vm684, %v1155, 0
      %v1172 = vsel %vm684, %v1156, 0
      %v1175 = vsel %vm684, %v1157, 0
      %1177 = vmatprep.subr.mxu0 0.0
      %1178 = vmatpush1.msra.mxu0 %v1158
      %1179 = vmatprep.subr.mxu0 0.0
      %1180 = vmatpush1.msra.mxu0 %v1159
      %1181 = vmatprep.subr.mxu0 0.0
      %1182 = vmatpush1.msra.mxu0 %v1160
      %1183 = vmatprep.subr.mxu0 0.0
      %1184 = vmatpush1.msra.mxu0 %v1161
      %1185 = vmatprep.subr.mxu0 0.0
      %1186 = vmatpush1.msra.mxu0 0.0
      %1187 = vmatprep.subr.mxu0 0.0
      %1188 = vmatpush1.msra.mxu0 0.0
      %1189 = vmatprep.subr.mxu0 0.0
      %1190 = vmatpush1.msra.mxu0 0.0
      %1191 = vmatprep.subr.mxu0 0.0
      %1192 = vmatpush1.msra.mxu0 0.0
      %1193 = vmatprep.subr.mxu0 0.0
      %1194 = vmatpush1.msra.mxu0 0.0
      %1195 = vmatprep.subr.mxu0 0.0
      %1196 = vmatpush1.msra.mxu0 0.0
      %1197 = vmatprep.subr.mxu0 0.0
      %1198 = vmatpush1.msra.mxu0 0.0
      %1199 = vmatprep.subr.mxu0 0.0
      %1200 = vmatpush1.msra.mxu0 0.0
      %1201 = vmatprep.subr.mxu0 0.0
      %1202 = vmatpush1.msra.mxu0 0.0
      %1203 = vmatprep.subr.mxu0 0.0
      %1204 = vmatpush1.msra.mxu0 0.0
      %1205 = vmatprep.subr.mxu0 0.0
      %1206 = vmatpush1.msra.mxu0 0.0
      %1207 = vmatprep.subr.mxu0 0.0
      %1208 = vmatpush1.msra.mxu0 0.0
      %1209 = vmatprep.subr.mxu0 0.0
      %1210 = vmatpush1.msra.mxu0 0.0
      %1211 = vmatprep.subr.mxu0 0.0
      %1212 = vmatpush1.msra.mxu0 0.0
      %1213 = vmatprep.subr.mxu0 0.0
      %1214 = vmatpush1.msra.mxu0 0.0
      %1215 = vmatprep.subr.mxu0 0.0
      %1216 = vmatpush1.msra.mxu0 0.0
      %1217 = vmatprep.subr.mxu0 0.0
      %1218 = vmatpush1.msra.mxu0 0.0
      %1219 = vmatprep.subr.mxu0 0.0
      %1220 = vmatpush1.msra.mxu0 0.0
      %1221 = vmatprep.subr.mxu0 0.0
      %1222 = vmatpush1.msra.mxu0 0.0
      %1223 = vmatprep.subr.mxu0 0.0
      %1224 = vmatpush1.msra.mxu0 0.0
      %1225 = vmatprep.subr.mxu0 0.0
      %1226 = vmatpush1.msra.mxu0 0.0
      %1227 = vmatprep.subr.mxu0 0.0
      %1228 = vmatpush1.msra.mxu0 0.0
      %1229 = vmatprep.subr.mxu0 0.0
      %1230 = vmatpush1.msra.mxu0 0.0
      %1231 = vmatprep.subr.mxu0 0.0
      %1232 = vmatpush1.msra.mxu0 0.0
      %1233 = vmatprep.subr.mxu0 0.0
      %1234 = vmatpush1.msra.mxu0 0.0
      %1235 = vmatprep.subr.mxu0 0.0
      %1236 = vmatpush1.msra.mxu0 0.0
      %1237 = vmatprep.subr.mxu0 0.0
      %1238 = vmatpush1.msra.mxu0 0.0
      %1239 = vmatprep.subr.mxu0 0.0
      %1240 = vmatpush1.msra.mxu0 0.0
      %1241 = vmatprep.mubr.f32.mxu0 0.0
      %1242 = vmatmul.mubr.f32.gmra.mrb[0].mxu0 %v1163
      %v1243 = vpop.f32.mrb[0].mxu0
      %v1244 = vadd.f32 0.0, %v1243
      %v1245 = vpop.f32.mrb[0].mxu0
      %1246 = vmatprep.mubr.f32.mxu0 0.0
      %1247 = vmatmul.mubr.f32.gmra.mrb[0].mxu0 %v1166
      %v1248 = vpop.f32.mrb[0].mxu0
      %v1249 = vadd.f32 0.0, %v1248
      %v1250 = vpop.f32.mrb[0].mxu0
      %1251 = vmatprep.mubr.f32.mxu0 0.0
      %1252 = vmatmul.mubr.f32.gmra.mrb[0].mxu0 %v1169
      %v1253 = vpop.f32.mrb[0].mxu0
      %v1254 = vadd.f32 0.0, %v1253
      %v1255 = vpop.f32.mrb[0].mxu0
      %1256 = vmatprep.mubr.f32.mxu0 0.0
      %1257 = vmatmul.mubr.f32.gmra.mrb[0].mxu0 %v1172
      %v1258 = vpop.f32.mrb[0].mxu0
      %v1259 = vadd.f32 0.0, %v1258
      %v1260 = vpop.f32.mrb[0].mxu0
      %1261 = vmatprep.mubr.f32.mxu0 0.0
      %1262 = vmatmul.mubr.f32.gmra.mrb[0].mxu0 %v1175
      %v1263 = vpop.f32.mrb[0].mxu0
      %v1264 = vadd.f32 0.0, %v1263
      %v1265 = vpop.f32.mrb[0].mxu0
      %1266 = vdwg.mxu0
      %vm1267 = vcmask 326656
      %v1269 = vsel %vm1267, %v439, 0
      %v1272 = vsel %vm1267, %v440, 0
      %v1275 = vsel %vm1267, %v441, 0
      %1277 = vmatprep.subr.mxu0 0.0
      %1278 = vmatpush1.msra.mxu0 %v1244
      %1279 = vmatprep.subr.mxu0 0.0
      %1280 = vmatpush1.msra.mxu0 %v1249
      %1281 = vmatprep.subr.mxu0 0.0
      %1282 = vmatpush1.msra.mxu0 %v1254
      %1283 = vmatprep.subr.mxu0 0.0
      %1284 = vmatpush1.msra.mxu0 %v1259
      %1285 = vmatprep.subr.mxu0 0.0
      %1286 = vmatpush1.msra.mxu0 %v1264
      %1287 = vmatprep.subr.mxu0 0.0
      %1288 = vmatpush1.msra.mxu0 0.0
      %1289 = vmatprep.subr.mxu0 0.0
      %1290 = vmatpush1.msra.mxu0 0.0
      %1291 = vmatprep.subr.mxu0 0.0
      %1292 = vmatpush1.msra.mxu0 0.0
      %1293 = vmatprep.subr.mxu0 0.0
      %1294 = vmatpush1.msra.mxu0 0.0
      %1295 = vmatprep.subr.mxu0 0.0
      %1296 = vmatpush1.msra.mxu0 0.0
      %1297 = vmatprep.subr.mxu0 0.0
      %1298 = vmatpush1.msra.mxu0 0.0
      %1299 = vmatprep.subr.mxu0 0.0
      %1300 = vmatpush1.msra.mxu0 0.0
      %1301 = vmatprep.subr.mxu0 0.0
      %1302 = vmatpush1.msra.mxu0 0.0
      %1303 = vmatprep.subr.mxu0 0.0
      %1304 = vmatpush1.msra.mxu0 0.0
      %1305 = vmatprep.subr.mxu0 0.0
      %1306 = vmatpush1.msra.mxu0 0.0
      %1307 = vmatprep.subr.mxu0 0.0
      %1308 = vmatpush1.msra.mxu0 0.0
      %1309 = vmatprep.subr.mxu0 0.0
      %1310 = vmatpush1.msra.mxu0 0.0
      %1311 = vmatprep.subr.mxu0 0.0
      %1312 = vmatpush1.msra.mxu0 0.0
      %1313 = vmatprep.subr.mxu0 0.0
      %1314 = vmatpush1.msra.mxu0 0.0
      %1315 = vmatprep.subr.mxu0 0.0
      %1316 = vmatpush1.msra.mxu0 0.0
      %1317 = vmatprep.subr.mxu0 0.0
      %1318 = vmatpush1.msra.mxu0 0.0
      %1319 = vmatprep.subr.mxu0 0.0
      %1320 = vmatpush1.msra.mxu0 0.0
      %1321 = vmatprep.subr.mxu0 0.0
      %1322 = vmatpush1.msra.mxu0 0.0
      %1323 = vmatprep.subr.mxu0 0.0
      %1324 = vmatpush1.msra.mxu0 0.0
      %1325 = vmatprep.subr.mxu0 0.0
      %1326 = vmatpush1.msra.mxu0 0.0
      %1327 = vmatprep.subr.mxu0 0.0
      %1328 = vmatpush1.msra.mxu0 0.0
      %1329 = vmatprep.subr.mxu0 0.0
      %1330 = vmatpush1.msra.mxu0 0.0
      %1331 = vmatprep.subr.mxu0 0.0
      %1332 = vmatpush1.msra.mxu0 0.0
      %1333 = vmatprep.subr.mxu0 0.0
      %1334 = vmatpush1.msra.mxu0 0.0
      %1335 = vmatprep.subr.mxu0 0.0
      %1336 = vmatpush1.msra.mxu0 0.0
      %1337 = vmatprep.subr.mxu0 0.0
      %1338 = vmatpush1.msra.mxu0 0.0
      %1339 = vmatprep.subr.mxu0 0.0
      %1340 = vmatpush1.msra.mxu0 0.0
      %1341 = vmatprep.mubr.f32.mxu0 0.0
      %1342 = vmatmul.mubr.f32.gmra.mrb[0].mxu0 %v1269
      %v1343 = vpop.f32.mrb[0].mxu0
      %v1344 = vadd.f32 0.0, %v1343
      %v1345 = vpop.f32.mrb[0].mxu0
      %1346 = vmatprep.mubr.f32.mxu0 0.0
      %1347 = vmatmul.mubr.f32.gmra.mrb[0].mxu0 %v1272
      %v1348 = vpop.f32.mrb[0].mxu0
      %v1349 = vadd.f32 0.0, %v1348
      %v1350 = vpop.f32.mrb[0].mxu0
      %1351 = vmatprep.mubr.f32.mxu0 0.0
      %1352 = vmatmul.mubr.f32.gmra.mrb[0].mxu0 %v1275
      %v1353 = vpop.f32.mrb[0].mxu0
      %v1354 = vadd.f32 0.0, %v1353
      %v1355 = vpop.f32.mrb[0].mxu0
      %1356 = vdwg.mxu0
      %v1357 = vadd.f32 %v416, %v1344
      %v1358 = vadd.f32 %v417, %v1349
      %v1359 = vadd.f32 %v418, %v1354
      %s1360 = scalar_lea.vmem %s5, 128
      %v1361 = vld [vmem:[%s1360] sm:$0xff]
      %v1362 = vld [vmem:[%s1360 + $0x8] sm:$0xff]
      %v1363 = vld [vmem:[%s1360 + $0x10] sm:$0xff]
      %v1364 = vld [vmem:[%s1360 + $0x18] sm:$0xff]
      %s1365 = scalar_lea.vmem %s5, 160
      %v1366 = vld [vmem:[%s1365] sm:$0xff]
      %v1367 = vld [vmem:[%s1365 + $0x8] sm:$0xff]
      %v1368 = vld [vmem:[%s1365 + $0x10] sm:$0xff]
      %v1369 = vld [vmem:[%s1365 + $0x18] sm:$0xff]
      %v1371 = vsel %vm684, %v652, 0
      %v1374 = vsel %vm684, %v657, 0
      %v1377 = vsel %vm684, %v662, 0
      %v1380 = vsel %vm684, %v667, 0
      %v1383 = vsel %vm684, %v672, 0
      %1385 = vmatprep.subr.mxu0 0.0
      %1386 = vmatpush1.msra.mxu0 %v1366
      %1387 = vmatprep.subr.mxu0 0.0
      %1388 = vmatpush1.msra.mxu0 %v1367
      %1389 = vmatprep.subr.mxu0 0.0
      %1390 = vmatpush1.msra.mxu0 %v1368
      %1391 = vmatprep.subr.mxu0 0.0
      %1392 = vmatpush1.msra.mxu0 %v1369
      %1393 = vmatprep.subr.mxu0 0.0
      %1394 = vmatpush1.msra.mxu0 0.0
      %1395 = vmatprep.subr.mxu0 0.0
      %1396 = vmatpush1.msra.mxu0 0.0
      %1397 = vmatprep.subr.mxu0 0.0
      %1398 = vmatpush1.msra.mxu0 0.0
      %1399 = vmatprep.subr.mxu0 0.0
      %1400 = vmatpush1.msra.mxu0 0.0
      %1401 = vmatprep.subr.mxu0 0.0
      %1402 = vmatpush1.msra.mxu0 0.0
      %1403 = vmatprep.subr.mxu0 0.0
      %1404 = vmatpush1.msra.mxu0 0.0
      %1405 = vmatprep.subr.mxu0 0.0
      %1406 = vmatpush1.msra.mxu0 0.0
      %1407 = vmatprep.subr.mxu0 0.0
      %1408 = vmatpush1.msra.mxu0 0.0
      %1409 = vmatprep.subr.mxu0 0.0
      %1410 = vmatpush1.msra.mxu0 0.0
      %1411 = vmatprep.subr.mxu0 0.0
      %1412 = vmatpush1.msra.mxu0 0.0
      %1413 = vmatprep.subr.mxu0 0.0
      %1414 = vmatpush1.msra.mxu0 0.0
      %1415 = vmatprep.subr.mxu0 0.0
      %1416 = vmatpush1.msra.mxu0 0.0
      %1417 = vmatprep.subr.mxu0 0.0
      %1418 = vmatpush1.msra.mxu0 0.0
      %1419 = vmatprep.subr.mxu0 0.0
      %1420 = vmatpush1.msra.mxu0 0.0
      %1421 = vmatprep.subr.mxu0 0.0
      %1422 = vmatpush1.msra.mxu0 0.0
      %1423 = vmatprep.subr.mxu0 0.0
      %1424 = vmatpush1.msra.mxu0 0.0
      %1425 = vmatprep.subr.mxu0 0.0
      %1426 = vmatpush1.msra.mxu0 0.0
      %1427 = vmatprep.subr.mxu0 0.0
      %1428 = vmatpush1.msra.mxu0 0.0
      %1429 = vmatprep.subr.mxu0 0.0
      %1430 = vmatpush1.msra.mxu0 0.0
      %1431 = vmatprep.subr.mxu0 0.0
      %1432 = vmatpush1.msra.mxu0 0.0
      %1433 = vmatprep.subr.mxu0 0.0
      %1434 = vmatpush1.msra.mxu0 0.0
      %1435 = vmatprep.subr.mxu0 0.0
      %1436 = vmatpush1.msra.mxu0 0.0
      %1437 = vmatprep.subr.mxu0 0.0
      %1438 = vmatpush1.msra.mxu0 0.0
      %1439 = vmatprep.subr.mxu0 0.0
      %1440 = vmatpush1.msra.mxu0 0.0
      %1441 = vmatprep.subr.mxu0 0.0
      %1442 = vmatpush1.msra.mxu0 0.0
      %1443 = vmatprep.subr.mxu0 0.0
      %1444 = vmatpush1.msra.mxu0 0.0
      %1445 = vmatprep.subr.mxu0 0.0
      %1446 = vmatpush1.msra.mxu0 0.0
      %1447 = vmatprep.subr.mxu0 0.0
      %1448 = vmatpush1.msra.mxu0 0.0
      %1449 = vmatprep.mubr.f32.mxu0 0.0
      %1450 = vmatmul.mubr.f32.gmra.mrb[0].mxu0 %v1371
      %v1451 = vpop.f32.mrb[0].mxu0
      %v1452 = vadd.f32 0.0, %v1451
      %v1453 = vpop.f32.mrb[0].mxu0
      %1454 = vmatprep.mubr.f32.mxu0 0.0
      %1455 = vmatmul.mubr.f32.gmra.mrb[0].mxu0 %v1374
      %v1456 = vpop.f32.mrb[0].mxu0
      %v1457 = vadd.f32 0.0, %v1456
      %v1458 = vpop.f32.mrb[0].mxu0
      %1459 = vmatprep.mubr.f32.mxu0 0.0
      %1460 = vmatmul.mubr.f32.gmra.mrb[0].mxu0 %v1377
      %v1461 = vpop.f32.mrb[0].mxu0
      %v1462 = vadd.f32 0.0, %v1461
      %v1463 = vpop.f32.mrb[0].mxu0
      %1464 = vmatprep.mubr.f32.mxu0 0.0
      %1465 = vmatmul.mubr.f32.gmra.mrb[0].mxu0 %v1380
      %v1466 = vpop.f32.mrb[0].mxu0
      %v1467 = vadd.f32 0.0, %v1466
      %v1468 = vpop.f32.mrb[0].mxu0
      %1469 = vmatprep.mubr.f32.mxu0 0.0
      %1470 = vmatmul.mubr.f32.gmra.mrb[0].mxu0 %v1383
      %v1471 = vpop.f32.mrb[0].mxu0
      %v1472 = vadd.f32 0.0, %v1471
      %v1473 = vpop.f32.mrb[0].mxu0
      %1474 = vdwg.mxu0
      %v1476 = vsel %vm684, %v627, 0
      %v1479 = vsel %vm684, %v632, 0
      %v1482 = vsel %vm684, %v637, 0
      %v1485 = vsel %vm684, %v642, 0
      %v1488 = vsel %vm684, %v647, 0
      %1490 = vmatprep.subr.mxu0 0.0
      %1491 = vmatpush1.msra.mxu0 %v1361
      %1492 = vmatprep.subr.mxu0 0.0
      %1493 = vmatpush1.msra.mxu0 %v1362
      %1494 = vmatprep.subr.mxu0 0.0
      %1495 = vmatpush1.msra.mxu0 %v1363
      %1496 = vmatprep.subr.mxu0 0.0
      %1497 = vmatpush1.msra.mxu0 %v1364
      %1498 = vmatprep.subr.mxu0 0.0
      %1499 = vmatpush1.msra.mxu0 0.0
      %1500 = vmatprep.subr.mxu0 0.0
      %1501 = vmatpush1.msra.mxu0 0.0
      %1502 = vmatprep.subr.mxu0 0.0
      %1503 = vmatpush1.msra.mxu0 0.0
      %1504 = vmatprep.subr.mxu0 0.0
      %1505 = vmatpush1.msra.mxu0 0.0
      %1506 = vmatprep.subr.mxu0 0.0
      %1507 = vmatpush1.msra.mxu0 0.0
      %1508 = vmatprep.subr.mxu0 0.0
      %1509 = vmatpush1.msra.mxu0 0.0
      %1510 = vmatprep.subr.mxu0 0.0
      %1511 = vmatpush1.msra.mxu0 0.0
      %1512 = vmatprep.subr.mxu0 0.0
      %1513 = vmatpush1.msra.mxu0 0.0
      %1514 = vmatprep.subr.mxu0 0.0
      %1515 = vmatpush1.msra.mxu0 0.0
      %1516 = vmatprep.subr.mxu0 0.0
      %1517 = vmatpush1.msra.mxu0 0.0
      %1518 = vmatprep.subr.mxu0 0.0
      %1519 = vmatpush1.msra.mxu0 0.0
      %1520 = vmatprep.subr.mxu0 0.0
      %1521 = vmatpush1.msra.mxu0 0.0
      %1522 = vmatprep.subr.mxu0 0.0
      %1523 = vmatpush1.msra.mxu0 0.0
      %1524 = vmatprep.subr.mxu0 0.0
      %1525 = vmatpush1.msra.mxu0 0.0
      %1526 = vmatprep.subr.mxu0 0.0
      %1527 = vmatpush1.msra.mxu0 0.0
      %1528 = vmatprep.subr.mxu0 0.0
      %1529 = vmatpush1.msra.mxu0 0.0
      %1530 = vmatprep.subr.mxu0 0.0
      %1531 = vmatpush1.msra.mxu0 0.0
      %1532 = vmatprep.subr.mxu0 0.0
      %1533 = vmatpush1.msra.mxu0 0.0
      %1534 = vmatprep.subr.mxu0 0.0
      %1535 = vmatpush1.msra.mxu0 0.0
      %1536 = vmatprep.subr.mxu0 0.0
      %1537 = vmatpush1.msra.mxu0 0.0
      %1538 = vmatprep.subr.mxu0 0.0
      %1539 = vmatpush1.msra.mxu0 0.0
      %1540 = vmatprep.subr.mxu0 0.0
      %1541 = vmatpush1.msra.mxu0 0.0
      %1542 = vmatprep.subr.mxu0 0.0
      %1543 = vmatpush1.msra.mxu0 0.0
      %1544 = vmatprep.subr.mxu0 0.0
      %1545 = vmatpush1.msra.mxu0 0.0
      %1546 = vmatprep.subr.mxu0 0.0
      %1547 = vmatpush1.msra.mxu0 0.0
      %1548 = vmatprep.subr.mxu0 0.0
      %1549 = vmatpush1.msra.mxu0 0.0
      %1550 = vmatprep.subr.mxu0 0.0
      %1551 = vmatpush1.msra.mxu0 0.0
      %1552 = vmatprep.subr.mxu0 0.0
      %1553 = vmatpush1.msra.mxu0 0.0
      %1554 = vmatprep.mubr.f32.mxu0 0.0
      %1555 = vmatmul.mubr.f32.gmra.mrb[0].mxu0 %v1476
      %v1556 = vpop.f32.mrb[0].mxu0
      %v1557 = vadd.f32 %v1452, %v1556
      %v1558 = vpop.f32.mrb[0].mxu0
      %1559 = vmatprep.mubr.f32.mxu0 0.0
      %1560 = vmatmul.mubr.f32.gmra.mrb[0].mxu0 %v1479
      %v1561 = vpop.f32.mrb[0].mxu0
      %v1562 = vadd.f32 %v1457, %v1561
      %v1563 = vpop.f32.mrb[0].mxu0
      %1564 = vmatprep.mubr.f32.mxu0 0.0
      %1565 = vmatmul.mubr.f32.gmra.mrb[0].mxu0 %v1482
      %v1566 = vpop.f32.mrb[0].mxu0
      %v1567 = vadd.f32 %v1462, %v1566
      %v1568 = vpop.f32.mrb[0].mxu0
      %1569 = vmatprep.mubr.f32.mxu0 0.0
      %1570 = vmatmul.mubr.f32.gmra.mrb[0].mxu0 %v1485
      %v1571 = vpop.f32.mrb[0].mxu0
      %v1572 = vadd.f32 %v1467, %v1571
      %v1573 = vpop.f32.mrb[0].mxu0
      %1574 = vmatprep.mubr.f32.mxu0 0.0
      %1575 = vmatmul.mubr.f32.gmra.mrb[0].mxu0 %v1488
      %v1576 = vpop.f32.mrb[0].mxu0
      %v1577 = vadd.f32 %v1472, %v1576
      %v1578 = vpop.f32.mrb[0].mxu0
      %1579 = vdwg.mxu0
      %s1580 = scalar_lea.vmem %s6, 3
      %v1581 = vld [vmem:[%s1580] sm:$0x1]
      %v1583 = vlaneseq
      %v1584 = vshrl.u32 %v1583, 7
      %v1585 = vsub.s32 0, %v1584
      %v1586 = vrot.slane %v1581, %v1585
      %v1588 = vadd.f32 %v1557, %v1586
      %v1589 = vadd.f32 %v1562, %v1586
      %v1590 = vadd.f32 %v1567, %v1586
      %v1591 = vadd.f32 %v1572, %v1586
      %v1592 = vadd.f32 %v1577, %v1586
      %v1593 = vmax.f32 %v1588, 0.0
      %v1594 = vmax.f32 %v1589, 0.0
      %v1595 = vmax.f32 %v1590, 0.0
      %v1596 = vmax.f32 %v1591, 0.0
      %v1597 = vmax.f32 %v1592, 0.0
      %s1598 = scalar_lea.vmem %s5, 192
      %v1599 = vld [vmem:[%s1598] sm:$0xff]
      %v1600 = vld [vmem:[%s1598 + $0x8] sm:$0xff]
      %v1601 = vld [vmem:[%s1598 + $0x10] sm:$0xff]
      %v1602 = vld [vmem:[%s1598 + $0x18] sm:$0xff]
      %s1603 = scalar_lea.vmem %s6, 4
      %v1604 = vld [vmem:[%s1603] sm:$0x1]
      %v1606 = vlaneseq
      %v1607 = vshrl.u32 %v1606, 7
      %v1608 = vsub.s32 0, %v1607
      %v1609 = vrot.slane %v1604, %v1608
      %v1612 = vsel %vm684, %v1593, 0
      %v1615 = vsel %vm684, %v1594, 0
      %v1618 = vsel %vm684, %v1595, 0
      %v1621 = vsel %vm684, %v1596, 0
      %v1624 = vsel %vm684, %v1597, 0
      %1626 = vmatprep.subr.mxu0 0.0
      %1627 = vmatpush1.msra.mxu0 %v1599
      %1628 = vmatprep.subr.mxu0 0.0
      %1629 = vmatpush1.msra.mxu0 %v1600
      %1630 = vmatprep.subr.mxu0 0.0
      %1631 = vmatpush1.msra.mxu0 %v1601
      %1632 = vmatprep.subr.mxu0 0.0
      %1633 = vmatpush1.msra.mxu0 %v1602
      %1634 = vmatprep.subr.mxu0 0.0
      %1635 = vmatpush1.msra.mxu0 0.0
      %1636 = vmatprep.subr.mxu0 0.0
      %1637 = vmatpush1.msra.mxu0 0.0
      %1638 = vmatprep.subr.mxu0 0.0
      %1639 = vmatpush1.msra.mxu0 0.0
      %1640 = vmatprep.subr.mxu0 0.0
      %1641 = vmatpush1.msra.mxu0 0.0
      %1642 = vmatprep.subr.mxu0 0.0
      %1643 = vmatpush1.msra.mxu0 0.0
      %1644 = vmatprep.subr.mxu0 0.0
      %1645 = vmatpush1.msra.mxu0 0.0
      %1646 = vmatprep.subr.mxu0 0.0
      %1647 = vmatpush1.msra.mxu0 0.0
      %1648 = vmatprep.subr.mxu0 0.0
      %1649 = vmatpush1.msra.mxu0 0.0
      %1650 = vmatprep.subr.mxu0 0.0
      %1651 = vmatpush1.msra.mxu0 0.0
      %1652 = vmatprep.subr.mxu0 0.0
      %1653 = vmatpush1.msra.mxu0 0.0
      %1654 = vmatprep.subr.mxu0 0.0
      %1655 = vmatpush1.msra.mxu0 0.0
      %1656 = vmatprep.subr.mxu0 0.0
      %1657 = vmatpush1.msra.mxu0 0.0
      %1658 = vmatprep.subr.mxu0 0.0
      %1659 = vmatpush1.msra.mxu0 0.0
      %1660 = vmatprep.subr.mxu0 0.0
      %1661 = vmatpush1.msra.mxu0 0.0
      %1662 = vmatprep.subr.mxu0 0.0
      %1663 = vmatpush1.msra.mxu0 0.0
      %1664 = vmatprep.subr.mxu0 0.0
      %1665 = vmatpush1.msra.mxu0 0.0
      %1666 = vmatprep.subr.mxu0 0.0
      %1667 = vmatpush1.msra.mxu0 0.0
      %1668 = vmatprep.subr.mxu0 0.0
      %1669 = vmatpush1.msra.mxu0 0.0
      %1670 = vmatprep.subr.mxu0 0.0
      %1671 = vmatpush1.msra.mxu0 0.0
      %1672 = vmatprep.subr.mxu0 0.0
      %1673 = vmatpush1.msra.mxu0 0.0
      %1674 = vmatprep.subr.mxu0 0.0
      %1675 = vmatpush1.msra.mxu0 0.0
      %1676 = vmatprep.subr.mxu0 0.0
      %1677 = vmatpush1.msra.mxu0 0.0
      %1678 = vmatprep.subr.mxu0 0.0
      %1679 = vmatpush1.msra.mxu0 0.0
      %1680 = vmatprep.subr.mxu0 0.0
      %1681 = vmatpush1.msra.mxu0 0.0
      %1682 = vmatprep.subr.mxu0 0.0
      %1683 = vmatpush1.msra.mxu0 0.0
      %1684 = vmatprep.subr.mxu0 0.0
      %1685 = vmatpush1.msra.mxu0 0.0
      %1686 = vmatprep.subr.mxu0 0.0
      %1687 = vmatpush1.msra.mxu0 0.0
      %1688 = vmatprep.subr.mxu0 0.0
      %1689 = vmatpush1.msra.mxu0 0.0
      %1690 = vmatprep.mubr.f32.mxu0 0.0
      %1691 = vmatmul.mubr.f32.gmra.mrb[0].mxu0 %v1612
      %v1692 = vpop.f32.mrb[0].mxu0
      %v1693 = vadd.f32 %v1609, %v1692
      %v1694 = vpop.f32.mrb[0].mxu0
      %1695 = vmatprep.mubr.f32.mxu0 0.0
      %1696 = vmatmul.mubr.f32.gmra.mrb[0].mxu0 %v1615
      %v1697 = vpop.f32.mrb[0].mxu0
      %v1698 = vadd.f32 %v1609, %v1697
      %v1699 = vpop.f32.mrb[0].mxu0
      %1700 = vmatprep.mubr.f32.mxu0 0.0
      %1701 = vmatmul.mubr.f32.gmra.mrb[0].mxu0 %v1618
      %v1702 = vpop.f32.mrb[0].mxu0
      %v1703 = vadd.f32 %v1609, %v1702
      %v1704 = vpop.f32.mrb[0].mxu0
      %1705 = vmatprep.mubr.f32.mxu0 0.0
      %1706 = vmatmul.mubr.f32.gmra.mrb[0].mxu0 %v1621
      %v1707 = vpop.f32.mrb[0].mxu0
      %v1708 = vadd.f32 %v1609, %v1707
      %v1709 = vpop.f32.mrb[0].mxu0
      %1710 = vmatprep.mubr.f32.mxu0 0.0
      %1711 = vmatmul.mubr.f32.gmra.mrb[0].mxu0 %v1624
      %v1712 = vpop.f32.mrb[0].mxu0
      %v1713 = vadd.f32 %v1609, %v1712
      %v1714 = vpop.f32.mrb[0].mxu0
      %1715 = vdwg.mxu0
      %v1716 = vmax.f32 %v1693, 0.0
      %v1717 = vmax.f32 %v1698, 0.0
      %v1718 = vmax.f32 %v1703, 0.0
      %v1719 = vmax.f32 %v1708, 0.0
      %v1720 = vmax.f32 %v1713, 0.0
      %s1721 = scalar_lea.vmem %s5, 224
      %v1722 = vld [vmem:[%s1721] sm:$0xff]
      %v1723 = vld [vmem:[%s1721 + $0x8] sm:$0xff]
      %v1724 = vld [vmem:[%s1721 + $0x10] sm:$0xff]
      %v1725 = vld [vmem:[%s1721 + $0x18] sm:$0xff]
      %s1726 = scalar_lea.vmem %s6, 5
      %v1727 = vld [vmem:[%s1726] sm:$0x1]
      %v1729 = vlaneseq
      %v1730 = vshrl.u32 %v1729, 7
      %v1731 = vsub.s32 0, %v1730
      %v1732 = vrot.slane %v1727, %v1731
      %v1735 = vsel %vm684, %v1716, 0
      %v1738 = vsel %vm684, %v1717, 0
      %v1741 = vsel %vm684, %v1718, 0
      %v1744 = vsel %vm684, %v1719, 0
      %v1747 = vsel %vm684, %v1720, 0
      %1749 = vmatprep.subr.mxu0 0.0
      %1750 = vmatpush1.msra.mxu0 %v1722
      %1751 = vmatprep.subr.mxu0 0.0
      %1752 = vmatpush1.msra.mxu0 %v1723
      %1753 = vmatprep.subr.mxu0 0.0
      %1754 = vmatpush1.msra.mxu0 %v1724
      %1755 = vmatprep.subr.mxu0 0.0
      %1756 = vmatpush1.msra.mxu0 %v1725
      %1757 = vmatprep.subr.mxu0 0.0
      %1758 = vmatpush1.msra.mxu0 0.0
      %1759 = vmatprep.subr.mxu0 0.0
      %1760 = vmatpush1.msra.mxu0 0.0
      %1761 = vmatprep.subr.mxu0 0.0
      %1762 = vmatpush1.msra.mxu0 0.0
      %1763 = vmatprep.subr.mxu0 0.0
      %1764 = vmatpush1.msra.mxu0 0.0
      %1765 = vmatprep.subr.mxu0 0.0
      %1766 = vmatpush1.msra.mxu0 0.0
      %1767 = vmatprep.subr.mxu0 0.0
      %1768 = vmatpush1.msra.mxu0 0.0
      %1769 = vmatprep.subr.mxu0 0.0
      %1770 = vmatpush1.msra.mxu0 0.0
      %1771 = vmatprep.subr.mxu0 0.0
      %1772 = vmatpush1.msra.mxu0 0.0
      %1773 = vmatprep.subr.mxu0 0.0
      %1774 = vmatpush1.msra.mxu0 0.0
      %1775 = vmatprep.subr.mxu0 0.0
      %1776 = vmatpush1.msra.mxu0 0.0
      %1777 = vmatprep.subr.mxu0 0.0
      %1778 = vmatpush1.msra.mxu0 0.0
      %1779 = vmatprep.subr.mxu0 0.0
      %1780 = vmatpush1.msra.mxu0 0.0
      %1781 = vmatprep.subr.mxu0 0.0
      %1782 = vmatpush1.msra.mxu0 0.0
      %1783 = vmatprep.subr.mxu0 0.0
      %1784 = vmatpush1.msra.mxu0 0.0
      %1785 = vmatprep.subr.mxu0 0.0
      %1786 = vmatpush1.msra.mxu0 0.0
      %1787 = vmatprep.subr.mxu0 0.0
      %1788 = vmatpush1.msra.mxu0 0.0
      %1789 = vmatprep.subr.mxu0 0.0
      %1790 = vmatpush1.msra.mxu0 0.0
      %1791 = vmatprep.subr.mxu0 0.0
      %1792 = vmatpush1.msra.mxu0 0.0
      %1793 = vmatprep.subr.mxu0 0.0
      %1794 = vmatpush1.msra.mxu0 0.0
      %1795 = vmatprep.subr.mxu0 0.0
      %1796 = vmatpush1.msra.mxu0 0.0
      %1797 = vmatprep.subr.mxu0 0.0
      %1798 = vmatpush1.msra.mxu0 0.0
      %1799 = vmatprep.subr.mxu0 0.0
      %1800 = vmatpush1.msra.mxu0 0.0
      %1801 = vmatprep.subr.mxu0 0.0
      %1802 = vmatpush1.msra.mxu0 0.0
      %1803 = vmatprep.subr.mxu0 0.0
      %1804 = vmatpush1.msra.mxu0 0.0
      %1805 = vmatprep.subr.mxu0 0.0
      %1806 = vmatpush1.msra.mxu0 0.0
      %1807 = vmatprep.subr.mxu0 0.0
      %1808 = vmatpush1.msra.mxu0 0.0
      %1809 = vmatprep.subr.mxu0 0.0
      %1810 = vmatpush1.msra.mxu0 0.0
      %1811 = vmatprep.subr.mxu0 0.0
      %1812 = vmatpush1.msra.mxu0 0.0
      %1813 = vmatprep.mubr.f32.mxu0 0.0
      %1814 = vmatmul.mubr.f32.gmra.mrb[0].mxu0 %v1735
      %v1815 = vpop.f32.mrb[0].mxu0
      %v1816 = vadd.f32 %v1732, %v1815
      %v1817 = vpop.f32.mrb[0].mxu0
      %1818 = vmatprep.mubr.f32.mxu0 0.0
      %1819 = vmatmul.mubr.f32.gmra.mrb[0].mxu0 %v1738
      %v1820 = vpop.f32.mrb[0].mxu0
      %v1821 = vadd.f32 %v1732, %v1820
      %v1822 = vpop.f32.mrb[0].mxu0
      %1823 = vmatprep.mubr.f32.mxu0 0.0
      %1824 = vmatmul.mubr.f32.gmra.mrb[0].mxu0 %v1741
      %v1825 = vpop.f32.mrb[0].mxu0
      %v1826 = vadd.f32 %v1732, %v1825
      %v1827 = vpop.f32.mrb[0].mxu0
      %1828 = vmatprep.mubr.f32.mxu0 0.0
      %1829 = vmatmul.mubr.f32.gmra.mrb[0].mxu0 %v1744
      %v1830 = vpop.f32.mrb[0].mxu0
      %v1831 = vadd.f32 %v1732, %v1830
      %v1832 = vpop.f32.mrb[0].mxu0
      %1833 = vmatprep.mubr.f32.mxu0 0.0
      %1834 = vmatmul.mubr.f32.gmra.mrb[0].mxu0 %v1747
      %v1835 = vpop.f32.mrb[0].mxu0
      %v1836 = vadd.f32 %v1732, %v1835
      %v1837 = vpop.f32.mrb[0].mxu0
      %1838 = vdwg.mxu0
      %v1839 = vmax.f32 %v1816, 0.0
      %v1840 = vmax.f32 %v1821, 0.0
      %v1841 = vmax.f32 %v1826, 0.0
      %v1842 = vmax.f32 %v1831, 0.0
      %v1843 = vmax.f32 %v1836, 0.0
      %s1844 = scalar_lea.vmem %s7, 32
      %v1845 = vld [vmem:[%s1844] sm:$0xff]
      %v1846 = vld [vmem:[%s1844 + $0x8] sm:$0xff]
      %v1847 = vld [vmem:[%s1844 + $0x10] sm:$0xff]
      %v1848 = vld [vmem:[%s1844 + $0x18] sm:$0xff]
      %v1850 = vsel %vm684, %v1839, 0
      %v1853 = vsel %vm684, %v1840, 0
      %v1856 = vsel %vm684, %v1841, 0
      %v1859 = vsel %vm684, %v1842, 0
      %v1862 = vsel %vm684, %v1843, 0
      %1864 = vmatprep.subr.mxu0 0.0
      %1865 = vmatpush1.msra.mxu0 %v1845
      %1866 = vmatprep.subr.mxu0 0.0
      %1867 = vmatpush1.msra.mxu0 %v1846
      %1868 = vmatprep.subr.mxu0 0.0
      %1869 = vmatpush1.msra.mxu0 %v1847
      %1870 = vmatprep.subr.mxu0 0.0
      %1871 = vmatpush1.msra.mxu0 %v1848
      %1872 = vmatprep.subr.mxu0 0.0
      %1873 = vmatpush1.msra.mxu0 0.0
      %1874 = vmatprep.subr.mxu0 0.0
      %1875 = vmatpush1.msra.mxu0 0.0
      %1876 = vmatprep.subr.mxu0 0.0
      %1877 = vmatpush1.msra.mxu0 0.0
      %1878 = vmatprep.subr.mxu0 0.0
      %1879 = vmatpush1.msra.mxu0 0.0
      %1880 = vmatprep.subr.mxu0 0.0
      %1881 = vmatpush1.msra.mxu0 0.0
      %1882 = vmatprep.subr.mxu0 0.0
      %1883 = vmatpush1.msra.mxu0 0.0
      %1884 = vmatprep.subr.mxu0 0.0
      %1885 = vmatpush1.msra.mxu0 0.0
      %1886 = vmatprep.subr.mxu0 0.0
      %1887 = vmatpush1.msra.mxu0 0.0
      %1888 = vmatprep.subr.mxu0 0.0
      %1889 = vmatpush1.msra.mxu0 0.0
      %1890 = vmatprep.subr.mxu0 0.0
      %1891 = vmatpush1.msra.mxu0 0.0
      %1892 = vmatprep.subr.mxu0 0.0
      %1893 = vmatpush1.msra.mxu0 0.0
      %1894 = vmatprep.subr.mxu0 0.0
      %1895 = vmatpush1.msra.mxu0 0.0
      %1896 = vmatprep.subr.mxu0 0.0
      %1897 = vmatpush1.msra.mxu0 0.0
      %1898 = vmatprep.subr.mxu0 0.0
      %1899 = vmatpush1.msra.mxu0 0.0
      %1900 = vmatprep.subr.mxu0 0.0
      %1901 = vmatpush1.msra.mxu0 0.0
      %1902 = vmatprep.subr.mxu0 0.0
      %1903 = vmatpush1.msra.mxu0 0.0
      %1904 = vmatprep.subr.mxu0 0.0
      %1905 = vmatpush1.msra.mxu0 0.0
      %1906 = vmatprep.subr.mxu0 0.0
      %1907 = vmatpush1.msra.mxu0 0.0
      %1908 = vmatprep.subr.mxu0 0.0
      %1909 = vmatpush1.msra.mxu0 0.0
      %1910 = vmatprep.subr.mxu0 0.0
      %1911 = vmatpush1.msra.mxu0 0.0
      %1912 = vmatprep.subr.mxu0 0.0
      %1913 = vmatpush1.msra.mxu0 0.0
      %1914 = vmatprep.subr.mxu0 0.0
      %1915 = vmatpush1.msra.mxu0 0.0
      %1916 = vmatprep.subr.mxu0 0.0
      %1917 = vmatpush1.msra.mxu0 0.0
      %1918 = vmatprep.subr.mxu0 0.0
      %1919 = vmatpush1.msra.mxu0 0.0
      %1920 = vmatprep.subr.mxu0 0.0
      %1921 = vmatpush1.msra.mxu0 0.0
      %1922 = vmatprep.subr.mxu0 0.0
      %1923 = vmatpush1.msra.mxu0 0.0
      %1924 = vmatprep.subr.mxu0 0.0
      %1925 = vmatpush1.msra.mxu0 0.0
      %1926 = vmatprep.subr.mxu0 0.0
      %1927 = vmatpush1.msra.mxu0 0.0
      %1928 = vmatprep.mubr.f32.mxu0 0.0
      %1929 = vmatmul.mubr.f32.gmra.mrb[0].mxu0 %v1850
      %v1930 = vpop.f32.mrb[0].mxu0
      %v1931 = vadd.f32 0.0, %v1930
      %v1932 = vpop.f32.mrb[0].mxu0
      %1933 = vmatprep.mubr.f32.mxu0 0.0
      %1934 = vmatmul.mubr.f32.gmra.mrb[0].mxu0 %v1853
      %v1935 = vpop.f32.mrb[0].mxu0
      %v1936 = vadd.f32 0.0, %v1935
      %v1937 = vpop.f32.mrb[0].mxu0
      %1938 = vmatprep.mubr.f32.mxu0 0.0
      %1939 = vmatmul.mubr.f32.gmra.mrb[0].mxu0 %v1856
      %v1940 = vpop.f32.mrb[0].mxu0
      %v1941 = vadd.f32 0.0, %v1940
      %v1942 = vpop.f32.mrb[0].mxu0
      %1943 = vmatprep.mubr.f32.mxu0 0.0
      %1944 = vmatmul.mubr.f32.gmra.mrb[0].mxu0 %v1859
      %v1945 = vpop.f32.mrb[0].mxu0
      %v1946 = vadd.f32 0.0, %v1945
      %v1947 = vpop.f32.mrb[0].mxu0
      %1948 = vmatprep.mubr.f32.mxu0 0.0
      %1949 = vmatmul.mubr.f32.gmra.mrb[0].mxu0 %v1862
      %v1950 = vpop.f32.mrb[0].mxu0
      %v1951 = vadd.f32 0.0, %v1950
      %v1952 = vpop.f32.mrb[0].mxu0
      %1953 = vdwg.mxu0
      %v1955 = vsel %vm1267, %v442, 0
      %v1958 = vsel %vm1267, %v443, 0
      %v1961 = vsel %vm1267, %v444, 0
      %1963 = vmatprep.subr.mxu0 0.0
      %1964 = vmatpush1.msra.mxu0 %v1931
      %1965 = vmatprep.subr.mxu0 0.0
      %1966 = vmatpush1.msra.mxu0 %v1936
      %1967 = vmatprep.subr.mxu0 0.0
      %1968 = vmatpush1.msra.mxu0 %v1941
      %1969 = vmatprep.subr.mxu0 0.0
      %1970 = vmatpush1.msra.mxu0 %v1946
      %1971 = vmatprep.subr.mxu0 0.0
      %1972 = vmatpush1.msra.mxu0 %v1951
      %1973 = vmatprep.subr.mxu0 0.0
      %1974 = vmatpush1.msra.mxu0 0.0
      %1975 = vmatprep.subr.mxu0 0.0
      %1976 = vmatpush1.msra.mxu0 0.0
      %1977 = vmatprep.subr.mxu0 0.0
      %1978 = vmatpush1.msra.mxu0 0.0
      %1979 = vmatprep.subr.mxu0 0.0
      %1980 = vmatpush1.msra.mxu0 0.0
      %1981 = vmatprep.subr.mxu0 0.0
      %1982 = vmatpush1.msra.mxu0 0.0
      %1983 = vmatprep.subr.mxu0 0.0
      %1984 = vmatpush1.msra.mxu0 0.0
      %1985 = vmatprep.subr.mxu0 0.0
      %1986 = vmatpush1.msra.mxu0 0.0
      %1987 = vmatprep.subr.mxu0 0.0
      %1988 = vmatpush1.msra.mxu0 0.0
      %1989 = vmatprep.subr.mxu0 0.0
      %1990 = vmatpush1.msra.mxu0 0.0
      %1991 = vmatprep.subr.mxu0 0.0
      %1992 = vmatpush1.msra.mxu0 0.0
      %1993 = vmatprep.subr.mxu0 0.0
      %1994 = vmatpush1.msra.mxu0 0.0
      %1995 = vmatprep.subr.mxu0 0.0
      %1996 = vmatpush1.msra.mxu0 0.0
      %1997 = vmatprep.subr.mxu0 0.0
      %1998 = vmatpush1.msra.mxu0 0.0
      %1999 = vmatprep.subr.mxu0 0.0
      %2000 = vmatpush1.msra.mxu0 0.0
      %2001 = vmatprep.subr.mxu0 0.0
      %2002 = vmatpush1.msra.mxu0 0.0
      %2003 = vmatprep.subr.mxu0 0.0
      %2004 = vmatpush1.msra.mxu0 0.0
      %2005 = vmatprep.subr.mxu0 0.0
      %2006 = vmatpush1.msra.mxu0 0.0
      %2007 = vmatprep.subr.mxu0 0.0
      %2008 = vmatpush1.msra.mxu0 0.0
      %2009 = vmatprep.subr.mxu0 0.0
      %2010 = vmatpush1.msra.mxu0 0.0
      %2011 = vmatprep.subr.mxu0 0.0
      %2012 = vmatpush1.msra.mxu0 0.0
      %2013 = vmatprep.subr.mxu0 0.0
      %2014 = vmatpush1.msra.mxu0 0.0
      %2015 = vmatprep.subr.mxu0 0.0
      %2016 = vmatpush1.msra.mxu0 0.0
      %2017 = vmatprep.subr.mxu0 0.0
      %2018 = vmatpush1.msra.mxu0 0.0
      %2019 = vmatprep.subr.mxu0 0.0
      %2020 = vmatpush1.msra.mxu0 0.0
      %2021 = vmatprep.subr.mxu0 0.0
      %2022 = vmatpush1.msra.mxu0 0.0
      %2023 = vmatprep.subr.mxu0 0.0
      %2024 = vmatpush1.msra.mxu0 0.0
      %2025 = vmatprep.subr.mxu0 0.0
      %2026 = vmatpush1.msra.mxu0 0.0
      %2027 = vmatprep.mubr.f32.mxu0 0.0
      %2028 = vmatmul.mubr.f32.gmra.mrb[0].mxu0 %v1955
      %v2029 = vpop.f32.mrb[0].mxu0
      %v2030 = vadd.f32 0.0, %v2029
      %v2031 = vpop.f32.mrb[0].mxu0
      %2032 = vmatprep.mubr.f32.mxu0 0.0
      %2033 = vmatmul.mubr.f32.gmra.mrb[0].mxu0 %v1958
      %v2034 = vpop.f32.mrb[0].mxu0
      %v2035 = vadd.f32 0.0, %v2034
      %v2036 = vpop.f32.mrb[0].mxu0
      %2037 = vmatprep.mubr.f32.mxu0 0.0
      %2038 = vmatmul.mubr.f32.gmra.mrb[0].mxu0 %v1961
      %v2039 = vpop.f32.mrb[0].mxu0
      %v2040 = vadd.f32 0.0, %v2039
      %v2041 = vpop.f32.mrb[0].mxu0
      %2042 = vdwg.mxu0
      %v2043 = vadd.f32 %v1357, %v2030
      %v2044 = vadd.f32 %v1358, %v2035
      %v2045 = vadd.f32 %v1359, %v2040
      %v2046 = vlaneseq
      %v2047 = vand.u32 %v2046, 127
      %vm2048 = vcmp.ge.s32.totalorder %v2047, 64
      %vm2049 = vcmp.lt.s32.totalorder %v2047, 96
      %vm2050 = vmand %vm2048, %vm2049
      %v2051 = vtanh.pop %v2043
      %v2052 = vtanh.pop %v2044
      %v2053 = vtanh.pop %v2045
      %v2054 = vxor.u32 %v2043, 2147483648
      %v2055 = vxor.u32 %v2044, 2147483648
      %v2056 = vxor.u32 %v2045, 2147483648
      %v2057 = vmul.f32 %v2054, 1.442695
      %v2058 = vpow.pop %v2057
      %v2059 = vmul.f32 %v2055, 1.442695
      %v2060 = vpow.pop %v2059
      %v2061 = vmul.f32 %v2056, 1.442695
      %v2062 = vpow.pop %v2061
      %v2063 = vadd.f32 %v2058, 1.0
      %v2064 = vadd.f32 %v2060, 1.0
      %v2065 = vadd.f32 %v2062, 1.0
      %v2066 = vrcp.pop %v2063
      %v2067 = vmul.f32 1.0, %v2066
      %v2068 = vrcp.pop %v2064
      %v2069 = vmul.f32 1.0, %v2068
      %v2070 = vrcp.pop %v2065
      %v2071 = vmul.f32 1.0, %v2070
      %v2072 = vsel %vm2050, %v2051, %v2067
      %v2073 = vsel %vm2050, %v2052, %v2069
      %v2074 = vsel %vm2050, %v2053, %v2071
      %v2075 = vmul.f32 %v2072, 0.0
      %v2076 = vmul.f32 %v2073, 0.0
      %v2077 = vmul.f32 %v2074, 0.0
      %2081 = vrot.lane.b32.xlu0 %v2072, 64
      %v2082 = vpop.permute.xlu0 %2081
      %2083 = vrot.lane.b32.xlu0 %v2073, 64
      %v2084 = vpop.permute.xlu0 %2083
      %2085 = vrot.lane.b32.xlu0 %v2074, 64
      %v2086 = vpop.permute.xlu0 %2085
      %v2090 = vmul.f32 %v2072, %v2082
      %v2091 = vmul.f32 %v2073, %v2084
      %v2092 = vmul.f32 %v2074, %v2086
      %2096 = vrot.lane.b32.xlu0 %v2090, 32
      %v2097 = vpop.permute.xlu0 %2096
      %2098 = vrot.lane.b32.xlu0 %v2091, 32
      %v2099 = vpop.permute.xlu0 %2098
      %2100 = vrot.lane.b32.xlu0 %v2092, 32
      %v2101 = vpop.permute.xlu0 %2100
      %v2105 = vadd.f32 %v2075, %v2097
      %v2106 = vadd.f32 %v2076, %v2099
      %v2107 = vadd.f32 %v2077, %v2101
      %v2108 = vtanh.pop %v2105
      %v2109 = vtanh.pop %v2106
      %v2110 = vtanh.pop %v2107
      %2114 = vrot.lane.b32.xlu0 %v2108, 64
      %v2115 = vpop.permute.xlu0 %2114
      %2116 = vrot.lane.b32.xlu0 %v2109, 64
      %v2117 = vpop.permute.xlu0 %2116
      %2118 = vrot.lane.b32.xlu0 %v2110, 64
      %v2119 = vpop.permute.xlu0 %2118
      %v2123 = vmul.f32 %v2072, %v2115
      %v2124 = vmul.f32 %v2073, %v2117
      %v2125 = vmul.f32 %v2074, %v2119
      %2129 = vrot.lane.b32.xlu0 %v2123, 32
      %v2130 = vpop.permute.xlu0 %2129
      %2131 = vrot.lane.b32.xlu0 %v2124, 32
      %v2132 = vpop.permute.xlu0 %2131
      %2133 = vrot.lane.b32.xlu0 %v2125, 32
      %v2134 = vpop.permute.xlu0 %2133
      %2138 = vst.msk [vmem:[%s412] sm:$0xff] %vm684, %v2130
      %2139 = vst.msk [vmem:[%s412 + $0x8] sm:$0xff] %vm684, %v2132
      %2140 = vst.msk [vmem:[%s412 + $0x10] sm:$0xff] %vm684, %v2134
      %2141 = vmatprep.subr.mxu0 0.0
      %2142 = vmatpush1.msra.mxu0 %v2130
      %2143 = vmatprep.subr.mxu0 0.0
      %2144 = vmatpush1.msra.mxu0 %v2132
      %2145 = vmatprep.subr.mxu0 0.0
      %2146 = vmatpush1.msra.mxu0 %v2134
      %2147 = vmatprep.subr.mxu0 0.0
      %2148 = vmatpush1.msra.mxu0 0.0
      %2149 = vmatprep.subr.mxu0 0.0
      %2150 = vmatpush1.msra.mxu0 0.0
      %2151 = vmatprep.subr.mxu0 0.0
      %2152 = vmatpush1.msra.mxu0 0.0
      %2153 = vmatprep.subr.mxu0 0.0
      %2154 = vmatpush1.msra.mxu0 0.0
      %2155 = vmatprep.subr.mxu0 0.0
      %2156 = vmatpush1.msra.mxu0 0.0
      %2157 = vmatprep.subr.mxu0 0.0
      %2158 = vmatpush1.msra.mxu0 0.0
      %2159 = vmatprep.subr.mxu0 0.0
      %2160 = vmatpush1.msra.mxu0 0.0
      %2161 = vmatprep.subr.mxu0 0.0
      %2162 = vmatpush1.msra.mxu0 0.0
      %2163 = vmatprep.subr.mxu0 0.0
      %2164 = vmatpush1.msra.mxu0 0.0
      %2165 = vmatprep.subr.mxu0 0.0
      %2166 = vmatpush1.msra.mxu0 0.0
      %2167 = vmatprep.subr.mxu0 0.0
      %2168 = vmatpush1.msra.mxu0 0.0
      %2169 = vmatprep.subr.mxu0 0.0
      %2170 = vmatpush1.msra.mxu0 0.0
      %2171 = vmatprep.subr.mxu0 0.0
      %2172 = vmatpush1.msra.mxu0 0.0
      %2173 = vmatprep.subr.mxu0 0.0
      %2174 = vmatpush1.msra.mxu0 0.0
      %2175 = vmatprep.subr.mxu0 0.0
      %2176 = vmatpush1.msra.mxu0 0.0
      %2177 = vmatprep.subr.mxu0 0.0
      %2178 = vmatpush1.msra.mxu0 0.0
      %2179 = vmatprep.subr.mxu0 0.0
      %2180 = vmatpush1.msra.mxu0 0.0
      %2181 = vmatprep.subr.mxu0 0.0
      %2182 = vmatpush1.msra.mxu0 0.0
      %2183 = vmatprep.subr.mxu0 0.0
      %2184 = vmatpush1.msra.mxu0 0.0
      %2185 = vmatprep.subr.mxu0 0.0
      %2186 = vmatpush1.msra.mxu0 0.0
      %2187 = vmatprep.subr.mxu0 0.0
      %2188 = vmatpush1.msra.mxu0 0.0
      %2189 = vmatprep.subr.mxu0 0.0
      %2190 = vmatpush1.msra.mxu0 0.0
      %2191 = vmatprep.subr.mxu0 0.0
      %2192 = vmatpush1.msra.mxu0 0.0
      %2193 = vmatprep.subr.mxu0 0.0
      %2194 = vmatpush1.msra.mxu0 0.0
      %2195 = vmatprep.subr.mxu0 0.0
      %2196 = vmatpush1.msra.mxu0 0.0
      %2197 = vmatprep.subr.mxu0 0.0
      %2198 = vmatpush1.msra.mxu0 0.0
      %2199 = vmatprep.subr.mxu0 0.0
      %2200 = vmatpush1.msra.mxu0 0.0
      %2201 = vmatprep.subr.mxu0 0.0
      %2202 = vmatpush1.msra.mxu0 0.0
      %2203 = vmatprep.subr.mxu0 0.0
      %2204 = vmatpush1.msra.mxu0 0.0
      %2205 = vmatprep.mubr.f32.mxu0 0.0
      %2206 = vmatmul.mubr.f32.gmra.mrb[0].mxu0 %v451
      %v2207 = vpop.f32.mrb[0].mxu0
      %v2208 = vadd.f32 0.0, %v2207
      %v2209 = vpop.f32.mrb[0].mxu0
      %2210 = vmatprep.mubr.f32.mxu0 0.0
      %2211 = vmatmul.mubr.f32.gmra.mrb[0].mxu0 %v454
      %v2212 = vpop.f32.mrb[0].mxu0
      %v2213 = vadd.f32 0.0, %v2212
      %v2214 = vpop.f32.mrb[0].mxu0
      %2215 = vmatprep.mubr.f32.mxu0 0.0
      %2216 = vmatmul.mubr.f32.gmra.mrb[0].mxu0 %v457
      %v2217 = vpop.f32.mrb[0].mxu0
      %v2218 = vadd.f32 0.0, %v2217
      %v2219 = vpop.f32.mrb[0].mxu0
      %2220 = vmatprep.mubr.f32.mxu0 0.0
      %2221 = vmatmul.mubr.f32.gmra.mrb[0].mxu0 %v460
      %v2222 = vpop.f32.mrb[0].mxu0
      %v2223 = vadd.f32 0.0, %v2222
      %v2224 = vpop.f32.mrb[0].mxu0
      %2225 = vmatprep.mubr.f32.mxu0 0.0
      %2226 = vmatmul.mubr.f32.gmra.mrb[0].mxu0 %v463
      %v2227 = vpop.f32.mrb[0].mxu0
      %v2228 = vadd.f32 0.0, %v2227
      %v2229 = vpop.f32.mrb[0].mxu0
      %2230 = vmatprep.mubr.f32.mxu0 0.0
      %2231 = vmatmul.mubr.f32.gmra.mrb[0].mxu0 %v466
      %v2232 = vpop.f32.mrb[0].mxu0
      %v2233 = vadd.f32 0.0, %v2232
      %v2234 = vpop.f32.mrb[0].mxu0
      %2235 = vmatprep.mubr.f32.mxu0 0.0
      %2236 = vmatmul.mubr.f32.gmra.mrb[0].mxu0 %v469
      %v2237 = vpop.f32.mrb[0].mxu0
      %v2238 = vadd.f32 0.0, %v2237
      %v2239 = vpop.f32.mrb[0].mxu0
      %2240 = vmatprep.mubr.f32.mxu0 0.0
      %2241 = vmatmul.mubr.f32.gmra.mrb[0].mxu0 %v472
      %v2242 = vpop.f32.mrb[0].mxu0
      %v2243 = vadd.f32 0.0, %v2242
      %v2244 = vpop.f32.mrb[0].mxu0
      %2245 = vmatprep.mubr.f32.mxu0 0.0
      %2246 = vmatmul.mubr.f32.gmra.mrb[0].mxu0 %v475
      %v2247 = vpop.f32.mrb[0].mxu0
      %v2248 = vadd.f32 0.0, %v2247
      %v2249 = vpop.f32.mrb[0].mxu0
      %2250 = vmatprep.mubr.f32.mxu0 0.0
      %2251 = vmatmul.mubr.f32.gmra.mrb[0].mxu0 %v478
      %v2252 = vpop.f32.mrb[0].mxu0
      %v2253 = vadd.f32 0.0, %v2252
      %v2254 = vpop.f32.mrb[0].mxu0
      %2255 = vmatprep.mubr.f32.mxu0 0.0
      %2256 = vmatmul.mubr.f32.gmra.mrb[0].mxu0 %v481
      %v2257 = vpop.f32.mrb[0].mxu0
      %v2258 = vadd.f32 0.0, %v2257
      %v2259 = vpop.f32.mrb[0].mxu0
      %2260 = vmatprep.mubr.f32.mxu0 0.0
      %2261 = vmatmul.mubr.f32.gmra.mrb[0].mxu0 %v484
      %v2262 = vpop.f32.mrb[0].mxu0
      %v2263 = vadd.f32 0.0, %v2262
      %v2264 = vpop.f32.mrb[0].mxu0
      %2265 = vmatprep.mubr.f32.mxu0 0.0
      %2266 = vmatmul.mubr.f32.gmra.mrb[0].mxu0 %v487
      %v2267 = vpop.f32.mrb[0].mxu0
      %v2268 = vadd.f32 0.0, %v2267
      %v2269 = vpop.f32.mrb[0].mxu0
      %2270 = vmatprep.mubr.f32.mxu0 0.0
      %2271 = vmatmul.mubr.f32.gmra.mrb[0].mxu0 %v490
      %v2272 = vpop.f32.mrb[0].mxu0
      %v2273 = vadd.f32 0.0, %v2272
      %v2274 = vpop.f32.mrb[0].mxu0
      %2275 = vmatprep.mubr.f32.mxu0 0.0
      %2276 = vmatmul.mubr.f32.gmra.mrb[0].mxu0 %v493
      %v2277 = vpop.f32.mrb[0].mxu0
      %v2278 = vadd.f32 0.0, %v2277
      %v2279 = vpop.f32.mrb[0].mxu0
      %2280 = vmatprep.mubr.f32.mxu0 0.0
      %2281 = vmatmul.mubr.f32.gmra.mrb[0].mxu0 %v496
      %v2282 = vpop.f32.mrb[0].mxu0
      %v2283 = vadd.f32 0.0, %v2282
      %v2284 = vpop.f32.mrb[0].mxu0
      %2285 = vmatprep.mubr.f32.mxu0 0.0
      %2286 = vmatmul.mubr.f32.gmra.mrb[0].mxu0 %v499
      %v2287 = vpop.f32.mrb[0].mxu0
      %v2288 = vadd.f32 0.0, %v2287
      %v2289 = vpop.f32.mrb[0].mxu0
      %2290 = vmatprep.mubr.f32.mxu0 0.0
      %2291 = vmatmul.mubr.f32.gmra.mrb[0].mxu0 %v502
      %v2292 = vpop.f32.mrb[0].mxu0
      %v2293 = vadd.f32 0.0, %v2292
      %v2294 = vpop.f32.mrb[0].mxu0
      %2295 = vmatprep.mubr.f32.mxu0 0.0
      %2296 = vmatmul.mubr.f32.gmra.mrb[0].mxu0 %v505
      %v2297 = vpop.f32.mrb[0].mxu0
      %v2298 = vadd.f32 0.0, %v2297
      %v2299 = vpop.f32.mrb[0].mxu0
      %2300 = vmatprep.mubr.f32.mxu0 0.0
      %2301 = vmatmul.mubr.f32.gmra.mrb[0].mxu0 %v508
      %v2302 = vpop.f32.mrb[0].mxu0
      %v2303 = vadd.f32 0.0, %v2302
      %v2304 = vpop.f32.mrb[0].mxu0
      %2305 = vdwg.mxu0
      %v2306 = vld [vmem:[%s5] sm:$0xff]
      %v2307 = vld [vmem:[%s5 + $0x8] sm:$0xff]
      %v2308 = vld [vmem:[%s5 + $0x10] sm:$0xff]
      %v2309 = vld [vmem:[%s5 + $0x18] sm:$0xff]
      %v2310 = vld [vmem:[%s679] sm:$0xff]
      %v2311 = vld [vmem:[%s679 + $0x8] sm:$0xff]
      %v2312 = vld [vmem:[%s679 + $0x10] sm:$0xff]
      %v2313 = vld [vmem:[%s679 + $0x18] sm:$0xff]
      %v2315 = vsel %vm684, %v2233, 0
      %v2318 = vsel %vm684, %v2238, 0
      %v2321 = vsel %vm684, %v2243, 0
      %v2324 = vsel %vm684, %v2248, 0
      %v2327 = vsel %vm684, %v2253, 0
      %2329 = vmatprep.subr.mxu0 0.0
      %2330 = vmatpush1.msra.mxu0 %v2310
      %2331 = vmatprep.subr.mxu0 0.0
      %2332 = vmatpush1.msra.mxu0 %v2311
      %2333 = vmatprep.subr.mxu0 0.0
      %2334 = vmatpush1.msra.mxu0 %v2312
      %2335 = vmatprep.subr.mxu0 0.0
      %2336 = vmatpush1.msra.mxu0 %v2313
      %2337 = vmatprep.subr.mxu0 0.0
      %2338 = vmatpush1.msra.mxu0 0.0
      %2339 = vmatprep.subr.mxu0 0.0
      %2340 = vmatpush1.msra.mxu0 0.0
      %2341 = vmatprep.subr.mxu0 0.0
      %2342 = vmatpush1.msra.mxu0 0.0
      %2343 = vmatprep.subr.mxu0 0.0
      %2344 = vmatpush1.msra.mxu0 0.0
      %2345 = vmatprep.subr.mxu0 0.0
      %2346 = vmatpush1.msra.mxu0 0.0
      %2347 = vmatprep.subr.mxu0 0.0
      %2348 = vmatpush1.msra.mxu0 0.0
      %2349 = vmatprep.subr.mxu0 0.0
      %2350 = vmatpush1.msra.mxu0 0.0
      %2351 = vmatprep.subr.mxu0 0.0
      %2352 = vmatpush1.msra.mxu0 0.0
      %2353 = vmatprep.subr.mxu0 0.0
      %2354 = vmatpush1.msra.mxu0 0.0
      %2355 = vmatprep.subr.mxu0 0.0
      %2356 = vmatpush1.msra.mxu0 0.0
      %2357 = vmatprep.subr.mxu0 0.0
      %2358 = vmatpush1.msra.mxu0 0.0
      %2359 = vmatprep.subr.mxu0 0.0
      %2360 = vmatpush1.msra.mxu0 0.0
      %2361 = vmatprep.subr.mxu0 0.0
      %2362 = vmatpush1.msra.mxu0 0.0
      %2363 = vmatprep.subr.mxu0 0.0
      %2364 = vmatpush1.msra.mxu0 0.0
      %2365 = vmatprep.subr.mxu0 0.0
      %2366 = vmatpush1.msra.mxu0 0.0
      %2367 = vmatprep.subr.mxu0 0.0
      %2368 = vmatpush1.msra.mxu0 0.0
      %2369 = vmatprep.subr.mxu0 0.0
      %2370 = vmatpush1.msra.mxu0 0.0
      %2371 = vmatprep.subr.mxu0 0.0
      %2372 = vmatpush1.msra.mxu0 0.0
      %2373 = vmatprep.subr.mxu0 0.0
      %2374 = vmatpush1.msra.mxu0 0.0
      %2375 = vmatprep.subr.mxu0 0.0
      %2376 = vmatpush1.msra.mxu0 0.0
      %2377 = vmatprep.subr.mxu0 0.0
      %2378 = vmatpush1.msra.mxu0 0.0
      %2379 = vmatprep.subr.mxu0 0.0
      %2380 = vmatpush1.msra.mxu0 0.0
      %2381 = vmatprep.subr.mxu0 0.0
      %2382 = vmatpush1.msra.mxu0 0.0
      %2383 = vmatprep.subr.mxu0 0.0
      %2384 = vmatpush1.msra.mxu0 0.0
      %2385 = vmatprep.subr.mxu0 0.0
      %2386 = vmatpush1.msra.mxu0 0.0
      %2387 = vmatprep.subr.mxu0 0.0
      %2388 = vmatpush1.msra.mxu0 0.0
      %2389 = vmatprep.subr.mxu0 0.0
      %2390 = vmatpush1.msra.mxu0 0.0
      %2391 = vmatprep.subr.mxu0 0.0
      %2392 = vmatpush1.msra.mxu0 0.0
      %2393 = vmatprep.mubr.f32.mxu0 0.0
      %2394 = vmatmul.mubr.f32.gmra.mrb[0].mxu0 %v2315
      %v2395 = vpop.f32.mrb[0].mxu0
      %v2396 = vadd.f32 0.0, %v2395
      %v2397 = vpop.f32.mrb[0].mxu0
      %2398 = vmatprep.mubr.f32.mxu0 0.0
      %2399 = vmatmul.mubr.f32.gmra.mrb[0].mxu0 %v2318
      %v2400 = vpop.f32.mrb[0].mxu0
      %v2401 = vadd.f32 0.0, %v2400
      %v2402 = vpop.f32.mrb[0].mxu0
      %2403 = vmatprep.mubr.f32.mxu0 0.0
      %2404 = vmatmul.mubr.f32.gmra.mrb[0].mxu0 %v2321
      %v2405 = vpop.f32.mrb[0].mxu0
      %v2406 = vadd.f32 0.0, %v2405
      %v2407 = vpop.f32.mrb[0].mxu0
      %2408 = vmatprep.mubr.f32.mxu0 0.0
      %2409 = vmatmul.mubr.f32.gmra.mrb[0].mxu0 %v2324
      %v2410 = vpop.f32.mrb[0].mxu0
      %v2411 = vadd.f32 0.0, %v2410
      %v2412 = vpop.f32.mrb[0].mxu0
      %2413 = vmatprep.mubr.f32.mxu0 0.0
      %2414 = vmatmul.mubr.f32.gmra.mrb[0].mxu0 %v2327
      %v2415 = vpop.f32.mrb[0].mxu0
      %v2416 = vadd.f32 0.0, %v2415
      %v2417 = vpop.f32.mrb[0].mxu0
      %2418 = vdwg.mxu0
      %v2420 = vsel %vm684, %v2208, 0
      %v2423 = vsel %vm684, %v2213, 0
      %v2426 = vsel %vm684, %v2218, 0
      %v2429 = vsel %vm684, %v2223, 0
      %v2432 = vsel %vm684, %v2228, 0
      %2434 = vmatprep.subr.mxu0 0.0
      %2435 = vmatpush1.msra.mxu0 %v2306
      %2436 = vmatprep.subr.mxu0 0.0
      %2437 = vmatpush1.msra.mxu0 %v2307
      %2438 = vmatprep.subr.mxu0 0.0
      %2439 = vmatpush1.msra.mxu0 %v2308
      %2440 = vmatprep.subr.mxu0 0.0
      %2441 = vmatpush1.msra.mxu0 %v2309
      %2442 = vmatprep.subr.mxu0 0.0
      %2443 = vmatpush1.msra.mxu0 0.0
      %2444 = vmatprep.subr.mxu0 0.0
      %2445 = vmatpush1.msra.mxu0 0.0
      %2446 = vmatprep.subr.mxu0 0.0
      %2447 = vmatpush1.msra.mxu0 0.0
      %2448 = vmatprep.subr.mxu0 0.0
      %2449 = vmatpush1.msra.mxu0 0.0
      %2450 = vmatprep.subr.mxu0 0.0
      %2451 = vmatpush1.msra.mxu0 0.0
      %2452 = vmatprep.subr.mxu0 0.0
      %2453 = vmatpush1.msra.mxu0 0.0
      %2454 = vmatprep.subr.mxu0 0.0
      %2455 = vmatpush1.msra.mxu0 0.0
      %2456 = vmatprep.subr.mxu0 0.0
      %2457 = vmatpush1.msra.mxu0 0.0
      %2458 = vmatprep.subr.mxu0 0.0
      %2459 = vmatpush1.msra.mxu0 0.0
      %2460 = vmatprep.subr.mxu0 0.0
      %2461 = vmatpush1.msra.mxu0 0.0
      %2462 = vmatprep.subr.mxu0 0.0
      %2463 = vmatpush1.msra.mxu0 0.0
      %2464 = vmatprep.subr.mxu0 0.0
      %2465 = vmatpush1.msra.mxu0 0.0
      %2466 = vmatprep.subr.mxu0 0.0
      %2467 = vmatpush1.msra.mxu0 0.0
      %2468 = vmatprep.subr.mxu0 0.0
      %2469 = vmatpush1.msra.mxu0 0.0
      %2470 = vmatprep.subr.mxu0 0.0
      %2471 = vmatpush1.msra.mxu0 0.0
      %2472 = vmatprep.subr.mxu0 0.0
      %2473 = vmatpush1.msra.mxu0 0.0
      %2474 = vmatprep.subr.mxu0 0.0
      %2475 = vmatpush1.msra.mxu0 0.0
      %2476 = vmatprep.subr.mxu0 0.0
      %2477 = vmatpush1.msra.mxu0 0.0
      %2478 = vmatprep.subr.mxu0 0.0
      %2479 = vmatpush1.msra.mxu0 0.0
      %2480 = vmatprep.subr.mxu0 0.0
      %2481 = vmatpush1.msra.mxu0 0.0
      %2482 = vmatprep.subr.mxu0 0.0
      %2483 = vmatpush1.msra.mxu0 0.0
      %2484 = vmatprep.subr.mxu0 0.0
      %2485 = vmatpush1.msra.mxu0 0.0
      %2486 = vmatprep.subr.mxu0 0.0
      %2487 = vmatpush1.msra.mxu0 0.0
      %2488 = vmatprep.subr.mxu0 0.0
      %2489 = vmatpush1.msra.mxu0 0.0
      %2490 = vmatprep.subr.mxu0 0.0
      %2491 = vmatpush1.msra.mxu0 0.0
      %2492 = vmatprep.subr.mxu0 0.0
      %2493 = vmatpush1.msra.mxu0 0.0
      %2494 = vmatprep.subr.mxu0 0.0
      %2495 = vmatpush1.msra.mxu0 0.0
      %2496 = vmatprep.subr.mxu0 0.0
      %2497 = vmatpush1.msra.mxu0 0.0
      %2498 = vmatprep.mubr.f32.mxu0 0.0
      %2499 = vmatmul.mubr.f32.gmra.mrb[0].mxu0 %v2420
      %v2500 = vpop.f32.mrb[0].mxu0
      %v2501 = vadd.f32 %v2396, %v2500
      %v2502 = vpop.f32.mrb[0].mxu0
      %2503 = vmatprep.mubr.f32.mxu0 0.0
      %2504 = vmatmul.mubr.f32.gmra.mrb[0].mxu0 %v2423
      %v2505 = vpop.f32.mrb[0].mxu0
      %v2506 = vadd.f32 %v2401, %v2505
      %v2507 = vpop.f32.mrb[0].mxu0
      %2508 = vmatprep.mubr.f32.mxu0 0.0
      %2509 = vmatmul.mubr.f32.gmra.mrb[0].mxu0 %v2426
      %v2510 = vpop.f32.mrb[0].mxu0
      %v2511 = vadd.f32 %v2406, %v2510
      %v2512 = vpop.f32.mrb[0].mxu0
      %2513 = vmatprep.mubr.f32.mxu0 0.0
      %2514 = vmatmul.mubr.f32.gmra.mrb[0].mxu0 %v2429
      %v2515 = vpop.f32.mrb[0].mxu0
      %v2516 = vadd.f32 %v2411, %v2515
      %v2517 = vpop.f32.mrb[0].mxu0
      %2518 = vmatprep.mubr.f32.mxu0 0.0
      %2519 = vmatmul.mubr.f32.gmra.mrb[0].mxu0 %v2432
      %v2520 = vpop.f32.mrb[0].mxu0
      %v2521 = vadd.f32 %v2416, %v2520
      %v2522 = vpop.f32.mrb[0].mxu0
      %2523 = vdwg.mxu0
      %v2524 = vld [vmem:[%s6] sm:$0x1]
      %v2526 = vlaneseq
      %v2527 = vshrl.u32 %v2526, 7
      %v2528 = vsub.s32 0, %v2527
      %v2529 = vrot.slane %v2524, %v2528
      %v2531 = vadd.f32 %v2501, %v2529
      %v2532 = vadd.f32 %v2506, %v2529
      %v2533 = vadd.f32 %v2511, %v2529
      %v2534 = vadd.f32 %v2516, %v2529
      %v2535 = vadd.f32 %v2521, %v2529
      %v2536 = vmax.f32 %v2531, 0.0
      %v2537 = vmax.f32 %v2532, 0.0
      %v2538 = vmax.f32 %v2533, 0.0
      %v2539 = vmax.f32 %v2534, 0.0
      %v2540 = vmax.f32 %v2535, 0.0
      %v2541 = vld [vmem:[%s912] sm:$0xff]
      %v2542 = vld [vmem:[%s912 + $0x8] sm:$0xff]
      %v2543 = vld [vmem:[%s912 + $0x10] sm:$0xff]
      %v2544 = vld [vmem:[%s912 + $0x18] sm:$0xff]
      %v2545 = vld [vmem:[%s917] sm:$0x1]
      %v2547 = vlaneseq
      %v2548 = vshrl.u32 %v2547, 7
      %v2549 = vsub.s32 0, %v2548
      %v2550 = vrot.slane %v2545, %v2549
      %v2553 = vsel %vm684, %v2536, 0
      %v2556 = vsel %vm684, %v2537, 0
      %v2559 = vsel %vm684, %v2538, 0
      %v2562 = vsel %vm684, %v2539, 0
      %v2565 = vsel %vm684, %v2540, 0
      %2567 = vmatprep.subr.mxu0 0.0
      %2568 = vmatpush1.msra.mxu0 %v2541
      %2569 = vmatprep.subr.mxu0 0.0
      %2570 = vmatpush1.msra.mxu0 %v2542
      %2571 = vmatprep.subr.mxu0 0.0
      %2572 = vmatpush1.msra.mxu0 %v2543
      %2573 = vmatprep.subr.mxu0 0.0
      %2574 = vmatpush1.msra.mxu0 %v2544
      %2575 = vmatprep.subr.mxu0 0.0
      %2576 = vmatpush1.msra.mxu0 0.0
      %2577 = vmatprep.subr.mxu0 0.0
      %2578 = vmatpush1.msra.mxu0 0.0
      %2579 = vmatprep.subr.mxu0 0.0
      %2580 = vmatpush1.msra.mxu0 0.0
      %2581 = vmatprep.subr.mxu0 0.0
      %2582 = vmatpush1.msra.mxu0 0.0
      %2583 = vmatprep.subr.mxu0 0.0
      %2584 = vmatpush1.msra.mxu0 0.0
      %2585 = vmatprep.subr.mxu0 0.0
      %2586 = vmatpush1.msra.mxu0 0.0
      %2587 = vmatprep.subr.mxu0 0.0
      %2588 = vmatpush1.msra.mxu0 0.0
      %2589 = vmatprep.subr.mxu0 0.0
      %2590 = vmatpush1.msra.mxu0 0.0
      %2591 = vmatprep.subr.mxu0 0.0
      %2592 = vmatpush1.msra.mxu0 0.0
      %2593 = vmatprep.subr.mxu0 0.0
      %2594 = vmatpush1.msra.mxu0 0.0
      %2595 = vmatprep.subr.mxu0 0.0
      %2596 = vmatpush1.msra.mxu0 0.0
      %2597 = vmatprep.subr.mxu0 0.0
      %2598 = vmatpush1.msra.mxu0 0.0
      %2599 = vmatprep.subr.mxu0 0.0
      %2600 = vmatpush1.msra.mxu0 0.0
      %2601 = vmatprep.subr.mxu0 0.0
      %2602 = vmatpush1.msra.mxu0 0.0
      %2603 = vmatprep.subr.mxu0 0.0
      %2604 = vmatpush1.msra.mxu0 0.0
      %2605 = vmatprep.subr.mxu0 0.0
      %2606 = vmatpush1.msra.mxu0 0.0
      %2607 = vmatprep.subr.mxu0 0.0
      %2608 = vmatpush1.msra.mxu0 0.0
      %2609 = vmatprep.subr.mxu0 0.0
      %2610 = vmatpush1.msra.mxu0 0.0
      %2611 = vmatprep.subr.mxu0 0.0
      %2612 = vmatpush1.msra.mxu0 0.0
      %2613 = vmatprep.subr.mxu0 0.0
      %2614 = vmatpush1.msra.mxu0 0.0
      %2615 = vmatprep.subr.mxu0 0.0
      %2616 = vmatpush1.msra.mxu0 0.0
      %2617 = vmatprep.subr.mxu0 0.0
      %2618 = vmatpush1.msra.mxu0 0.0
      %2619 = vmatprep.subr.mxu0 0.0
      %2620 = vmatpush1.msra.mxu0 0.0
      %2621 = vmatprep.subr.mxu0 0.0
      %2622 = vmatpush1.msra.mxu0 0.0
      %2623 = vmatprep.subr.mxu0 0.0
      %2624 = vmatpush1.msra.mxu0 0.0
      %2625 = vmatprep.subr.mxu0 0.0
      %2626 = vmatpush1.msra.mxu0 0.0
      %2627 = vmatprep.subr.mxu0 0.0
      %2628 = vmatpush1.msra.mxu0 0.0
      %2629 = vmatprep.subr.mxu0 0.0
      %2630 = vmatpush1.msra.mxu0 0.0
      %2631 = vmatprep.mubr.f32.mxu0 0.0
      %2632 = vmatmul.mubr.f32.gmra.mrb[0].mxu0 %v2553
      %v2633 = vpop.f32.mrb[0].mxu0
      %v2634 = vadd.f32 %v2550, %v2633
      %v2635 = vpop.f32.mrb[0].mxu0
      %2636 = vmatprep.mubr.f32.mxu0 0.0
      %2637 = vmatmul.mubr.f32.gmra.mrb[0].mxu0 %v2556
      %v2638 = vpop.f32.mrb[0].mxu0
      %v2639 = vadd.f32 %v2550, %v2638
      %v2640 = vpop.f32.mrb[0].mxu0
      %2641 = vmatprep.mubr.f32.mxu0 0.0
      %2642 = vmatmul.mubr.f32.gmra.mrb[0].mxu0 %v2559
      %v2643 = vpop.f32.mrb[0].mxu0
      %v2644 = vadd.f32 %v2550, %v2643
      %v2645 = vpop.f32.mrb[0].mxu0
      %2646 = vmatprep.mubr.f32.mxu0 0.0
      %2647 = vmatmul.mubr.f32.gmra.mrb[0].mxu0 %v2562
      %v2648 = vpop.f32.mrb[0].mxu0
      %v2649 = vadd.f32 %v2550, %v2648
      %v2650 = vpop.f32.mrb[0].mxu0
      %2651 = vmatprep.mubr.f32.mxu0 0.0
      %2652 = vmatmul.mubr.f32.gmra.mrb[0].mxu0 %v2565
      %v2653 = vpop.f32.mrb[0].mxu0
      %v2654 = vadd.f32 %v2550, %v2653
      %v2655 = vpop.f32.mrb[0].mxu0
      %2656 = vdwg.mxu0
      %v2657 = vmax.f32 %v2634, 0.0
      %v2658 = vmax.f32 %v2639, 0.0
      %v2659 = vmax.f32 %v2644, 0.0
      %v2660 = vmax.f32 %v2649, 0.0
      %v2661 = vmax.f32 %v2654, 0.0
      %v2662 = vld [vmem:[%s1035] sm:$0xff]
      %v2663 = vld [vmem:[%s1035 + $0x8] sm:$0xff]
      %v2664 = vld [vmem:[%s1035 + $0x10] sm:$0xff]
      %v2665 = vld [vmem:[%s1035 + $0x18] sm:$0xff]
      %v2666 = vld [vmem:[%s1040] sm:$0x1]
      %v2668 = vlaneseq
      %v2669 = vshrl.u32 %v2668, 7
      %v2670 = vsub.s32 0, %v2669
      %v2671 = vrot.slane %v2666, %v2670
      %v2674 = vsel %vm684, %v2657, 0
      %v2677 = vsel %vm684, %v2658, 0
      %v2680 = vsel %vm684, %v2659, 0
      %v2683 = vsel %vm684, %v2660, 0
      %v2686 = vsel %vm684, %v2661, 0
      %2688 = vmatprep.subr.mxu0 0.0
      %2689 = vmatpush1.msra.mxu0 %v2662
      %2690 = vmatprep.subr.mxu0 0.0
      %2691 = vmatpush1.msra.mxu0 %v2663
      %2692 = vmatprep.subr.mxu0 0.0
      %2693 = vmatpush1.msra.mxu0 %v2664
      %2694 = vmatprep.subr.mxu0 0.0
      %2695 = vmatpush1.msra.mxu0 %v2665
      %2696 = vmatprep.subr.mxu0 0.0
      %2697 = vmatpush1.msra.mxu0 0.0
      %2698 = vmatprep.subr.mxu0 0.0
      %2699 = vmatpush1.msra.mxu0 0.0
      %2700 = vmatprep.subr.mxu0 0.0
      %2701 = vmatpush1.msra.mxu0 0.0
      %2702 = vmatprep.subr.mxu0 0.0
      %2703 = vmatpush1.msra.mxu0 0.0
      %2704 = vmatprep.subr.mxu0 0.0
      %2705 = vmatpush1.msra.mxu0 0.0
      %2706 = vmatprep.subr.mxu0 0.0
      %2707 = vmatpush1.msra.mxu0 0.0
      %2708 = vmatprep.subr.mxu0 0.0
      %2709 = vmatpush1.msra.mxu0 0.0
      %2710 = vmatprep.subr.mxu0 0.0
      %2711 = vmatpush1.msra.mxu0 0.0
      %2712 = vmatprep.subr.mxu0 0.0
      %2713 = vmatpush1.msra.mxu0 0.0
      %2714 = vmatprep.subr.mxu0 0.0
      %2715 = vmatpush1.msra.mxu0 0.0
      %2716 = vmatprep.subr.mxu0 0.0
      %2717 = vmatpush1.msra.mxu0 0.0
      %2718 = vmatprep.subr.mxu0 0.0
      %2719 = vmatpush1.msra.mxu0 0.0
      %2720 = vmatprep.subr.mxu0 0.0
      %2721 = vmatpush1.msra.mxu0 0.0
      %2722 = vmatprep.subr.mxu0 0.0
      %2723 = vmatpush1.msra.mxu0 0.0
      %2724 = vmatprep.subr.mxu0 0.0
      %2725 = vmatpush1.msra.mxu0 0.0
      %2726 = vmatprep.subr.mxu0 0.0
      %2727 = vmatpush1.msra.mxu0 0.0
      %2728 = vmatprep.subr.mxu0 0.0
      %2729 = vmatpush1.msra.mxu0 0.0
      %2730 = vmatprep.subr.mxu0 0.0
      %2731 = vmatpush1.msra.mxu0 0.0
      %2732 = vmatprep.subr.mxu0 0.0
      %2733 = vmatpush1.msra.mxu0 0.0
      %2734 = vmatprep.subr.mxu0 0.0
      %2735 = vmatpush1.msra.mxu0 0.0
      %2736 = vmatprep.subr.mxu0 0.0
      %2737 = vmatpush1.msra.mxu0 0.0
      %2738 = vmatprep.subr.mxu0 0.0
      %2739 = vmatpush1.msra.mxu0 0.0
      %2740 = vmatprep.subr.mxu0 0.0
      %2741 = vmatpush1.msra.mxu0 0.0
      %2742 = vmatprep.subr.mxu0 0.0
      %2743 = vmatpush1.msra.mxu0 0.0
      %2744 = vmatprep.subr.mxu0 0.0
      %2745 = vmatpush1.msra.mxu0 0.0
      %2746 = vmatprep.subr.mxu0 0.0
      %2747 = vmatpush1.msra.mxu0 0.0
      %2748 = vmatprep.subr.mxu0 0.0
      %2749 = vmatpush1.msra.mxu0 0.0
      %2750 = vmatprep.subr.mxu0 0.0
      %2751 = vmatpush1.msra.mxu0 0.0
      %2752 = vmatprep.mubr.f32.mxu0 0.0
      %2753 = vmatmul.mubr.f32.gmra.mrb[0].mxu0 %v2674
      %v2754 = vpop.f32.mrb[0].mxu0
      %v2755 = vadd.f32 %v2671, %v2754
      %v2756 = vpop.f32.mrb[0].mxu0
      %2757 = vmatprep.mubr.f32.mxu0 0.0
      %2758 = vmatmul.mubr.f32.gmra.mrb[0].mxu0 %v2677
      %v2759 = vpop.f32.mrb[0].mxu0
      %v2760 = vadd.f32 %v2671, %v2759
      %v2761 = vpop.f32.mrb[0].mxu0
      %2762 = vmatprep.mubr.f32.mxu0 0.0
      %2763 = vmatmul.mubr.f32.gmra.mrb[0].mxu0 %v2680
      %v2764 = vpop.f32.mrb[0].mxu0
      %v2765 = vadd.f32 %v2671, %v2764
      %v2766 = vpop.f32.mrb[0].mxu0
      %2767 = vmatprep.mubr.f32.mxu0 0.0
      %2768 = vmatmul.mubr.f32.gmra.mrb[0].mxu0 %v2683
      %v2769 = vpop.f32.mrb[0].mxu0
      %v2770 = vadd.f32 %v2671, %v2769
      %v2771 = vpop.f32.mrb[0].mxu0
      %2772 = vmatprep.mubr.f32.mxu0 0.0
      %2773 = vmatmul.mubr.f32.gmra.mrb[0].mxu0 %v2686
      %v2774 = vpop.f32.mrb[0].mxu0
      %v2775 = vadd.f32 %v2671, %v2774
      %v2776 = vpop.f32.mrb[0].mxu0
      %2777 = vdwg.mxu0
      %v2778 = vmax.f32 %v2755, 0.0
      %v2779 = vmax.f32 %v2760, 0.0
      %v2780 = vmax.f32 %v2765, 0.0
      %v2781 = vmax.f32 %v2770, 0.0
      %v2782 = vmax.f32 %v2775, 0.0
      %v2783 = vld [vmem:[%s7] sm:$0xff]
      %v2784 = vld [vmem:[%s7 + $0x8] sm:$0xff]
      %v2785 = vld [vmem:[%s7 + $0x10] sm:$0xff]
      %v2786 = vld [vmem:[%s7 + $0x18] sm:$0xff]
      %v2788 = vsel %vm684, %v2778, 0
      %v2791 = vsel %vm684, %v2779, 0
      %v2794 = vsel %vm684, %v2780, 0
      %v2797 = vsel %vm684, %v2781, 0
      %v2800 = vsel %vm684, %v2782, 0
      %2802 = vmatprep.subr.mxu0 0.0
      %2803 = vmatpush1.msra.mxu0 %v2783
      %2804 = vmatprep.subr.mxu0 0.0
      %2805 = vmatpush1.msra.mxu0 %v2784
      %2806 = vmatprep.subr.mxu0 0.0
      %2807 = vmatpush1.msra.mxu0 %v2785
      %2808 = vmatprep.subr.mxu0 0.0
      %2809 = vmatpush1.msra.mxu0 %v2786
      %2810 = vmatprep.subr.mxu0 0.0
      %2811 = vmatpush1.msra.mxu0 0.0
      %2812 = vmatprep.subr.mxu0 0.0
      %2813 = vmatpush1.msra.mxu0 0.0
      %2814 = vmatprep.subr.mxu0 0.0
      %2815 = vmatpush1.msra.mxu0 0.0
      %2816 = vmatprep.subr.mxu0 0.0
      %2817 = vmatpush1.msra.mxu0 0.0
      %2818 = vmatprep.subr.mxu0 0.0
      %2819 = vmatpush1.msra.mxu0 0.0
      %2820 = vmatprep.subr.mxu0 0.0
      %2821 = vmatpush1.msra.mxu0 0.0
      %2822 = vmatprep.subr.mxu0 0.0
      %2823 = vmatpush1.msra.mxu0 0.0
      %2824 = vmatprep.subr.mxu0 0.0
      %2825 = vmatpush1.msra.mxu0 0.0
      %2826 = vmatprep.subr.mxu0 0.0
      %2827 = vmatpush1.msra.mxu0 0.0
      %2828 = vmatprep.subr.mxu0 0.0
      %2829 = vmatpush1.msra.mxu0 0.0
      %2830 = vmatprep.subr.mxu0 0.0
      %2831 = vmatpush1.msra.mxu0 0.0
      %2832 = vmatprep.subr.mxu0 0.0
      %2833 = vmatpush1.msra.mxu0 0.0
      %2834 = vmatprep.subr.mxu0 0.0
      %2835 = vmatpush1.msra.mxu0 0.0
      %2836 = vmatprep.subr.mxu0 0.0
      %2837 = vmatpush1.msra.mxu0 0.0
      %2838 = vmatprep.subr.mxu0 0.0
      %2839 = vmatpush1.msra.mxu0 0.0
      %2840 = vmatprep.subr.mxu0 0.0
      %2841 = vmatpush1.msra.mxu0 0.0
      %2842 = vmatprep.subr.mxu0 0.0
      %2843 = vmatpush1.msra.mxu0 0.0
      %2844 = vmatprep.subr.mxu0 0.0
      %2845 = vmatpush1.msra.mxu0 0.0
      %2846 = vmatprep.subr.mxu0 0.0
      %2847 = vmatpush1.msra.mxu0 0.0
      %2848 = vmatprep.subr.mxu0 0.0
      %2849 = vmatpush1.msra.mxu0 0.0
      %2850 = vmatprep.subr.mxu0 0.0
      %2851 = vmatpush1.msra.mxu0 0.0
      %2852 = vmatprep.subr.mxu0 0.0
      %2853 = vmatpush1.msra.mxu0 0.0
      %2854 = vmatprep.subr.mxu0 0.0
      %2855 = vmatpush1.msra.mxu0 0.0
      %2856 = vmatprep.subr.mxu0 0.0
      %2857 = vmatpush1.msra.mxu0 0.0
      %2858 = vmatprep.subr.mxu0 0.0
      %2859 = vmatpush1.msra.mxu0 0.0
      %2860 = vmatprep.subr.mxu0 0.0
      %2861 = vmatpush1.msra.mxu0 0.0
      %2862 = vmatprep.subr.mxu0 0.0
      %2863 = vmatpush1.msra.mxu0 0.0
      %2864 = vmatprep.subr.mxu0 0.0
      %2865 = vmatpush1.msra.mxu0 0.0
      %2866 = vmatprep.mubr.f32.mxu0 0.0
      %2867 = vmatmul.mubr.f32.gmra.mrb[0].mxu0 %v2788
      %v2868 = vpop.f32.mrb[0].mxu0
      %v2869 = vadd.f32 0.0, %v2868
      %v2870 = vpop.f32.mrb[0].mxu0
      %2871 = vmatprep.mubr.f32.mxu0 0.0
      %2872 = vmatmul.mubr.f32.gmra.mrb[0].mxu0 %v2791
      %v2873 = vpop.f32.mrb[0].mxu0
      %v2874 = vadd.f32 0.0, %v2873
      %v2875 = vpop.f32.mrb[0].mxu0
      %2876 = vmatprep.mubr.f32.mxu0 0.0
      %2877 = vmatmul.mubr.f32.gmra.mrb[0].mxu0 %v2794
      %v2878 = vpop.f32.mrb[0].mxu0
      %v2879 = vadd.f32 0.0, %v2878
      %v2880 = vpop.f32.mrb[0].mxu0
      %2881 = vmatprep.mubr.f32.mxu0 0.0
      %2882 = vmatmul.mubr.f32.gmra.mrb[0].mxu0 %v2797
      %v2883 = vpop.f32.mrb[0].mxu0
      %v2884 = vadd.f32 0.0, %v2883
      %v2885 = vpop.f32.mrb[0].mxu0
      %2886 = vmatprep.mubr.f32.mxu0 0.0
      %2887 = vmatmul.mubr.f32.gmra.mrb[0].mxu0 %v2800
      %v2888 = vpop.f32.mrb[0].mxu0
      %v2889 = vadd.f32 0.0, %v2888
      %v2890 = vpop.f32.mrb[0].mxu0
      %2891 = vdwg.mxu0
      %2892 = vmatprep.subr.mxu0 0.0
      %2893 = vmatpush1.msra.mxu0 %v2869
      %2894 = vmatprep.subr.mxu0 0.0
      %2895 = vmatpush1.msra.mxu0 %v2874
      %2896 = vmatprep.subr.mxu0 0.0
      %2897 = vmatpush1.msra.mxu0 %v2879
      %2898 = vmatprep.subr.mxu0 0.0
      %2899 = vmatpush1.msra.mxu0 %v2884
      %2900 = vmatprep.subr.mxu0 0.0
      %2901 = vmatpush1.msra.mxu0 %v2889
      %2902 = vmatprep.subr.mxu0 0.0
      %2903 = vmatpush1.msra.mxu0 0.0
      %2904 = vmatprep.subr.mxu0 0.0
      %2905 = vmatpush1.msra.mxu0 0.0
      %2906 = vmatprep.subr.mxu0 0.0
      %2907 = vmatpush1.msra.mxu0 0.0
      %2908 = vmatprep.subr.mxu0 0.0
      %2909 = vmatpush1.msra.mxu0 0.0
      %2910 = vmatprep.subr.mxu0 0.0
      %2911 = vmatpush1.msra.mxu0 0.0
      %2912 = vmatprep.subr.mxu0 0.0
      %2913 = vmatpush1.msra.mxu0 0.0
      %2914 = vmatprep.subr.mxu0 0.0
      %2915 = vmatpush1.msra.mxu0 0.0
      %2916 = vmatprep.subr.mxu0 0.0
      %2917 = vmatpush1.msra.mxu0 0.0
      %2918 = vmatprep.subr.mxu0 0.0
      %2919 = vmatpush1.msra.mxu0 0.0
      %2920 = vmatprep.subr.mxu0 0.0
      %2921 = vmatpush1.msra.mxu0 0.0
      %2922 = vmatprep.subr.mxu0 0.0
      %2923 = vmatpush1.msra.mxu0 0.0
      %2924 = vmatprep.subr.mxu0 0.0
      %2925 = vmatpush1.msra.mxu0 0.0
      %2926 = vmatprep.subr.mxu0 0.0
      %2927 = vmatpush1.msra.mxu0 0.0
      %2928 = vmatprep.subr.mxu0 0.0
      %2929 = vmatpush1.msra.mxu0 0.0
      %2930 = vmatprep.subr.mxu0 0.0
      %2931 = vmatpush1.msra.mxu0 0.0
      %2932 = vmatprep.subr.mxu0 0.0
      %2933 = vmatpush1.msra.mxu0 0.0
      %2934 = vmatprep.subr.mxu0 0.0
      %2935 = vmatpush1.msra.mxu0 0.0
      %2936 = vmatprep.subr.mxu0 0.0
      %2937 = vmatpush1.msra.mxu0 0.0
      %2938 = vmatprep.subr.mxu0 0.0
      %2939 = vmatpush1.msra.mxu0 0.0
      %2940 = vmatprep.subr.mxu0 0.0
      %2941 = vmatpush1.msra.mxu0 0.0
      %2942 = vmatprep.subr.mxu0 0.0
      %2943 = vmatpush1.msra.mxu0 0.0
      %2944 = vmatprep.subr.mxu0 0.0
      %2945 = vmatpush1.msra.mxu0 0.0
      %2946 = vmatprep.subr.mxu0 0.0
      %2947 = vmatpush1.msra.mxu0 0.0
      %2948 = vmatprep.subr.mxu0 0.0
      %2949 = vmatpush1.msra.mxu0 0.0
      %2950 = vmatprep.subr.mxu0 0.0
      %2951 = vmatpush1.msra.mxu0 0.0
      %2952 = vmatprep.subr.mxu0 0.0
      %2953 = vmatpush1.msra.mxu0 0.0
      %2954 = vmatprep.subr.mxu0 0.0
      %2955 = vmatpush1.msra.mxu0 0.0
      %2956 = vmatprep.mubr.f32.mxu0 0.0
      %2957 = vmatmul.mubr.f32.gmra.mrb[0].mxu0 %v1269
      %v2958 = vpop.f32.mrb[0].mxu0
      %v2959 = vadd.f32 0.0, %v2958
      %v2960 = vpop.f32.mrb[0].mxu0
      %2961 = vmatprep.mubr.f32.mxu0 0.0
      %2962 = vmatmul.mubr.f32.gmra.mrb[0].mxu0 %v1272
      %v2963 = vpop.f32.mrb[0].mxu0
      %v2964 = vadd.f32 0.0, %v2963
      %v2965 = vpop.f32.mrb[0].mxu0
      %2966 = vmatprep.mubr.f32.mxu0 0.0
      %2967 = vmatmul.mubr.f32.gmra.mrb[0].mxu0 %v1275
      %v2968 = vpop.f32.mrb[0].mxu0
      %v2969 = vadd.f32 0.0, %v2968
      %v2970 = vpop.f32.mrb[0].mxu0
      %2971 = vdwg.mxu0
      %v2972 = vadd.f32 %v416, %v2959
      %v2973 = vadd.f32 %v417, %v2964
      %v2974 = vadd.f32 %v418, %v2969
      %v2975 = vld [vmem:[%s1360] sm:$0xff]
      %v2976 = vld [vmem:[%s1360 + $0x8] sm:$0xff]
      %v2977 = vld [vmem:[%s1360 + $0x10] sm:$0xff]
      %v2978 = vld [vmem:[%s1360 + $0x18] sm:$0xff]
      %v2979 = vld [vmem:[%s1365] sm:$0xff]
      %v2980 = vld [vmem:[%s1365 + $0x8] sm:$0xff]
      %v2981 = vld [vmem:[%s1365 + $0x10] sm:$0xff]
      %v2982 = vld [vmem:[%s1365 + $0x18] sm:$0xff]
      %v2984 = vsel %vm684, %v2283, 0
      %v2987 = vsel %vm684, %v2288, 0
      %v2990 = vsel %vm684, %v2293, 0
      %v2993 = vsel %vm684, %v2298, 0
      %v2996 = vsel %vm684, %v2303, 0
      %2998 = vmatprep.subr.mxu0 0.0
      %2999 = vmatpush1.msra.mxu0 %v2979
      %3000 = vmatprep.subr.mxu0 0.0
      %3001 = vmatpush1.msra.mxu0 %v2980
      %3002 = vmatprep.subr.mxu0 0.0
      %3003 = vmatpush1.msra.mxu0 %v2981
      %3004 = vmatprep.subr.mxu0 0.0
      %3005 = vmatpush1.msra.mxu0 %v2982
      %3006 = vmatprep.subr.mxu0 0.0
      %3007 = vmatpush1.msra.mxu0 0.0
      %3008 = vmatprep.subr.mxu0 0.0
      %3009 = vmatpush1.msra.mxu0 0.0
      %3010 = vmatprep.subr.mxu0 0.0
      %3011 = vmatpush1.msra.mxu0 0.0
      %3012 = vmatprep.subr.mxu0 0.0
      %3013 = vmatpush1.msra.mxu0 0.0
      %3014 = vmatprep.subr.mxu0 0.0
      %3015 = vmatpush1.msra.mxu0 0.0
      %3016 = vmatprep.subr.mxu0 0.0
      %3017 = vmatpush1.msra.mxu0 0.0
      %3018 = vmatprep.subr.mxu0 0.0
      %3019 = vmatpush1.msra.mxu0 0.0
      %3020 = vmatprep.subr.mxu0 0.0
      %3021 = vmatpush1.msra.mxu0 0.0
      %3022 = vmatprep.subr.mxu0 0.0
      %3023 = vmatpush1.msra.mxu0 0.0
      %3024 = vmatprep.subr.mxu0 0.0
      %3025 = vmatpush1.msra.mxu0 0.0
      %3026 = vmatprep.subr.mxu0 0.0
      %3027 = vmatpush1.msra.mxu0 0.0
      %3028 = vmatprep.subr.mxu0 0.0
      %3029 = vmatpush1.msra.mxu0 0.0
      %3030 = vmatprep.subr.mxu0 0.0
      %3031 = vmatpush1.msra.mxu0 0.0
      %3032 = vmatprep.subr.mxu0 0.0
      %3033 = vmatpush1.msra.mxu0 0.0
      %3034 = vmatprep.subr.mxu0 0.0
      %3035 = vmatpush1.msra.mxu0 0.0
      %3036 = vmatprep.subr.mxu0 0.0
      %3037 = vmatpush1.msra.mxu0 0.0
      %3038 = vmatprep.subr.mxu0 0.0
      %3039 = vmatpush1.msra.mxu0 0.0
      %3040 = vmatprep.subr.mxu0 0.0
      %3041 = vmatpush1.msra.mxu0 0.0
      %3042 = vmatprep.subr.mxu0 0.0
      %3043 = vmatpush1.msra.mxu0 0.0
      %3044 = vmatprep.subr.mxu0 0.0
      %3045 = vmatpush1.msra.mxu0 0.0
      %3046 = vmatprep.subr.mxu0 0.0
      %3047 = vmatpush1.msra.mxu0 0.0
      %3048 = vmatprep.subr.mxu0 0.0
      %3049 = vmatpush1.msra.mxu0 0.0
      %3050 = vmatprep.subr.mxu0 0.0
      %3051 = vmatpush1.msra.mxu0 0.0
      %3052 = vmatprep.subr.mxu0 0.0
      %3053 = vmatpush1.msra.mxu0 0.0
      %3054 = vmatprep.subr.mxu0 0.0
      %3055 = vmatpush1.msra.mxu0 0.0
      %3056 = vmatprep.subr.mxu0 0.0
      %3057 = vmatpush1.msra.mxu0 0.0
      %3058 = vmatprep.subr.mxu0 0.0
      %3059 = vmatpush1.msra.mxu0 0.0
      %3060 = vmatprep.subr.mxu0 0.0
      %3061 = vmatpush1.msra.mxu0 0.0
      %3062 = vmatprep.mubr.f32.mxu0 0.0
      %3063 = vmatmul.mubr.f32.gmra.mrb[0].mxu0 %v2984
      %v3064 = vpop.f32.mrb[0].mxu0
      %v3065 = vadd.f32 0.0, %v3064
      %v3066 = vpop.f32.mrb[0].mxu0
      %3067 = vmatprep.mubr.f32.mxu0 0.0
      %3068 = vmatmul.mubr.f32.gmra.mrb[0].mxu0 %v2987
      %v3069 = vpop.f32.mrb[0].mxu0
      %v3070 = vadd.f32 0.0, %v3069
      %v3071 = vpop.f32.mrb[0].mxu0
      %3072 = vmatprep.mubr.f32.mxu0 0.0
      %3073 = vmatmul.mubr.f32.gmra.mrb[0].mxu0 %v2990
      %v3074 = vpop.f32.mrb[0].mxu0
      %v3075 = vadd.f32 0.0, %v3074
      %v3076 = vpop.f32.mrb[0].mxu0
      %3077 = vmatprep.mubr.f32.mxu0 0.0
      %3078 = vmatmul.mubr.f32.gmra.mrb[0].mxu0 %v2993
      %v3079 = vpop.f32.mrb[0].mxu0
      %v3080 = vadd.f32 0.0, %v3079
      %v3081 = vpop.f32.mrb[0].mxu0
      %3082 = vmatprep.mubr.f32.mxu0 0.0
      %3083 = vmatmul.mubr.f32.gmra.mrb[0].mxu0 %v2996
      %v3084 = vpop.f32.mrb[0].mxu0
      %v3085 = vadd.f32 0.0, %v3084
      %v3086 = vpop.f32.mrb[0].mxu0
      %3087 = vdwg.mxu0
      %v3089 = vsel %vm684, %v2258, 0
      %v3092 = vsel %vm684, %v2263, 0
      %v3095 = vsel %vm684, %v2268, 0
      %v3098 = vsel %vm684, %v2273, 0
      %v3101 = vsel %vm684, %v2278, 0
      %3103 = vmatprep.subr.mxu0 0.0
      %3104 = vmatpush1.msra.mxu0 %v2975
      %3105 = vmatprep.subr.mxu0 0.0
      %3106 = vmatpush1.msra.mxu0 %v2976
      %3107 = vmatprep.subr.mxu0 0.0
      %3108 = vmatpush1.msra.mxu0 %v2977
      %3109 = vmatprep.subr.mxu0 0.0
      %3110 = vmatpush1.msra.mxu0 %v2978
      %3111 = vmatprep.subr.mxu0 0.0
      %3112 = vmatpush1.msra.mxu0 0.0
      %3113 = vmatprep.subr.mxu0 0.0
      %3114 = vmatpush1.msra.mxu0 0.0
      %3115 = vmatprep.subr.mxu0 0.0
      %3116 = vmatpush1.msra.mxu0 0.0
      %3117 = vmatprep.subr.mxu0 0.0
      %3118 = vmatpush1.msra.mxu0 0.0
      %3119 = vmatprep.subr.mxu0 0.0
      %3120 = vmatpush1.msra.mxu0 0.0
      %3121 = vmatprep.subr.mxu0 0.0
      %3122 = vmatpush1.msra.mxu0 0.0
      %3123 = vmatprep.subr.mxu0 0.0
      %3124 = vmatpush1.msra.mxu0 0.0
      %3125 = vmatprep.subr.mxu0 0.0
      %3126 = vmatpush1.msra.mxu0 0.0
      %3127 = vmatprep.subr.mxu0 0.0
      %3128 = vmatpush1.msra.mxu0 0.0
      %3129 = vmatprep.subr.mxu0 0.0
      %3130 = vmatpush1.msra.mxu0 0.0
      %3131 = vmatprep.subr.mxu0 0.0
      %3132 = vmatpush1.msra.mxu0 0.0
      %3133 = vmatprep.subr.mxu0 0.0
      %3134 = vmatpush1.msra.mxu0 0.0
      %3135 = vmatprep.subr.mxu0 0.0
      %3136 = vmatpush1.msra.mxu0 0.0
      %3137 = vmatprep.subr.mxu0 0.0
      %3138 = vmatpush1.msra.mxu0 0.0
      %3139 = vmatprep.subr.mxu0 0.0
      %3140 = vmatpush1.msra.mxu0 0.0
      %3141 = vmatprep.subr.mxu0 0.0
      %3142 = vmatpush1.msra.mxu0 0.0
      %3143 = vmatprep.subr.mxu0 0.0
      %3144 = vmatpush1.msra.mxu0 0.0
      %3145 = vmatprep.subr.mxu0 0.0
      %3146 = vmatpush1.msra.mxu0 0.0
      %3147 = vmatprep.subr.mxu0 0.0
      %3148 = vmatpush1.msra.mxu0 0.0
      %3149 = vmatprep.subr.mxu0 0.0
      %3150 = vmatpush1.msra.mxu0 0.0
      %3151 = vmatprep.subr.mxu0 0.0
      %3152 = vmatpush1.msra.mxu0 0.0
      %3153 = vmatprep.subr.mxu0 0.0
      %3154 = vmatpush1.msra.mxu0 0.0
      %3155 = vmatprep.subr.mxu0 0.0
      %3156 = vmatpush1.msra.mxu0 0.0
      %3157 = vmatprep.subr.mxu0 0.0
      %3158 = vmatpush1.msra.mxu0 0.0
      %3159 = vmatprep.subr.mxu0 0.0
      %3160 = vmatpush1.msra.mxu0 0.0
      %3161 = vmatprep.subr.mxu0 0.0
      %3162 = vmatpush1.msra.mxu0 0.0
      %3163 = vmatprep.subr.mxu0 0.0
      %3164 = vmatpush1.msra.mxu0 0.0
      %3165 = vmatprep.subr.mxu0 0.0
      %3166 = vmatpush1.msra.mxu0 0.0
      %3167 = vmatprep.mubr.f32.mxu0 0.0
      %3168 = vmatmul.mubr.f32.gmra.mrb[0].mxu0 %v3089
      %v3169 = vpop.f32.mrb[0].mxu0
      %v3170 = vadd.f32 %v3065, %v3169
      %v3171 = vpop.f32.mrb[0].mxu0
      %3172 = vmatprep.mubr.f32.mxu0 0.0
      %3173 = vmatmul.mubr.f32.gmra.mrb[0].mxu0 %v3092
      %v3174 = vpop.f32.mrb[0].mxu0
      %v3175 = vadd.f32 %v3070, %v3174
      %v3176 = vpop.f32.mrb[0].mxu0
      %3177 = vmatprep.mubr.f32.mxu0 0.0
      %3178 = vmatmul.mubr.f32.gmra.mrb[0].mxu0 %v3095
      %v3179 = vpop.f32.mrb[0].mxu0
      %v3180 = vadd.f32 %v3075, %v3179
      %v3181 = vpop.f32.mrb[0].mxu0
      %3182 = vmatprep.mubr.f32.mxu0 0.0
      %3183 = vmatmul.mubr.f32.gmra.mrb[0].mxu0 %v3098
      %v3184 = vpop.f32.mrb[0].mxu0
      %v3185 = vadd.f32 %v3080, %v3184
      %v3186 = vpop.f32.mrb[0].mxu0
      %3187 = vmatprep.mubr.f32.mxu0 0.0
      %3188 = vmatmul.mubr.f32.gmra.mrb[0].mxu0 %v3101
      %v3189 = vpop.f32.mrb[0].mxu0
      %v3190 = vadd.f32 %v3085, %v3189
      %v3191 = vpop.f32.mrb[0].mxu0
      %3192 = vdwg.mxu0
      %v3193 = vld [vmem:[%s1580] sm:$0x1]
      %v3195 = vlaneseq
      %v3196 = vshrl.u32 %v3195, 7
      %v3197 = vsub.s32 0, %v3196
      %v3198 = vrot.slane %v3193, %v3197
      %v3200 = vadd.f32 %v3170, %v3198
      %v3201 = vadd.f32 %v3175, %v3198
      %v3202 = vadd.f32 %v3180, %v3198
      %v3203 = vadd.f32 %v3185, %v3198
      %v3204 = vadd.f32 %v3190, %v3198
      %v3205 = vmax.f32 %v3200, 0.0
      %v3206 = vmax.f32 %v3201, 0.0
      %v3207 = vmax.f32 %v3202, 0.0
      %v3208 = vmax.f32 %v3203, 0.0
      %v3209 = vmax.f32 %v3204, 0.0
      %v3210 = vld [vmem:[%s1598] sm:$0xff]
      %v3211 = vld [vmem:[%s1598 + $0x8] sm:$0xff]
      %v3212 = vld [vmem:[%s1598 + $0x10] sm:$0xff]
      %v3213 = vld [vmem:[%s1598 + $0x18] sm:$0xff]
      %v3214 = vld [vmem:[%s1603] sm:$0x1]
      %v3216 = vlaneseq
      %v3217 = vshrl.u32 %v3216, 7
      %v3218 = vsub.s32 0, %v3217
      %v3219 = vrot.slane %v3214, %v3218
      %v3222 = vsel %vm684, %v3205, 0
      %v3225 = vsel %vm684, %v3206, 0
      %v3228 = vsel %vm684, %v3207, 0
      %v3231 = vsel %vm684, %v3208, 0
      %v3234 = vsel %vm684, %v3209, 0
      %3236 = vmatprep.subr.mxu0 0.0
      %3237 = vmatpush1.msra.mxu0 %v3210
      %3238 = vmatprep.subr.mxu0 0.0
      %3239 = vmatpush1.msra.mxu0 %v3211
      %3240 = vmatprep.subr.mxu0 0.0
      %3241 = vmatpush1.msra.mxu0 %v3212
      %3242 = vmatprep.subr.mxu0 0.0
      %3243 = vmatpush1.msra.mxu0 %v3213
      %3244 = vmatprep.subr.mxu0 0.0
      %3245 = vmatpush1.msra.mxu0 0.0
      %3246 = vmatprep.subr.mxu0 0.0
      %3247 = vmatpush1.msra.mxu0 0.0
      %3248 = vmatprep.subr.mxu0 0.0
      %3249 = vmatpush1.msra.mxu0 0.0
      %3250 = vmatprep.subr.mxu0 0.0
      %3251 = vmatpush1.msra.mxu0 0.0
      %3252 = vmatprep.subr.mxu0 0.0
      %3253 = vmatpush1.msra.mxu0 0.0
      %3254 = vmatprep.subr.mxu0 0.0
      %3255 = vmatpush1.msra.mxu0 0.0
      %3256 = vmatprep.subr.mxu0 0.0
      %3257 = vmatpush1.msra.mxu0 0.0
      %3258 = vmatprep.subr.mxu0 0.0
      %3259 = vmatpush1.msra.mxu0 0.0
      %3260 = vmatprep.subr.mxu0 0.0
      %3261 = vmatpush1.msra.mxu0 0.0
      %3262 = vmatprep.subr.mxu0 0.0
      %3263 = vmatpush1.msra.mxu0 0.0
      %3264 = vmatprep.subr.mxu0 0.0
      %3265 = vmatpush1.msra.mxu0 0.0
      %3266 = vmatprep.subr.mxu0 0.0
      %3267 = vmatpush1.msra.mxu0 0.0
      %3268 = vmatprep.subr.mxu0 0.0
      %3269 = vmatpush1.msra.mxu0 0.0
      %3270 = vmatprep.subr.mxu0 0.0
      %3271 = vmatpush1.msra.mxu0 0.0
      %3272 = vmatprep.subr.mxu0 0.0
      %3273 = vmatpush1.msra.mxu0 0.0
      %3274 = vmatprep.subr.mxu0 0.0
      %3275 = vmatpush1.msra.mxu0 0.0
      %3276 = vmatprep.subr.mxu0 0.0
      %3277 = vmatpush1.msra.mxu0 0.0
      %3278 = vmatprep.subr.mxu0 0.0
      %3279 = vmatpush1.msra.mxu0 0.0
      %3280 = vmatprep.subr.mxu0 0.0
      %3281 = vmatpush1.msra.mxu0 0.0
      %3282 = vmatprep.subr.mxu0 0.0
      %3283 = vmatpush1.msra.mxu0 0.0
      %3284 = vmatprep.subr.mxu0 0.0
      %3285 = vmatpush1.msra.mxu0 0.0
      %3286 = vmatprep.subr.mxu0 0.0
      %3287 = vmatpush1.msra.mxu0 0.0
      %3288 = vmatprep.subr.mxu0 0.0
      %3289 = vmatpush1.msra.mxu0 0.0
      %3290 = vmatprep.subr.mxu0 0.0
      %3291 = vmatpush1.msra.mxu0 0.0
      %3292 = vmatprep.subr.mxu0 0.0
      %3293 = vmatpush1.msra.mxu0 0.0
      %3294 = vmatprep.subr.mxu0 0.0
      %3295 = vmatpush1.msra.mxu0 0.0
      %3296 = vmatprep.subr.mxu0 0.0
      %3297 = vmatpush1.msra.mxu0 0.0
      %3298 = vmatprep.subr.mxu0 0.0
      %3299 = vmatpush1.msra.mxu0 0.0
      %3300 = vmatprep.mubr.f32.mxu0 0.0
      %3301 = vmatmul.mubr.f32.gmra.mrb[0].mxu0 %v3222
      %v3302 = vpop.f32.mrb[0].mxu0
      %v3303 = vadd.f32 %v3219, %v3302
      %v3304 = vpop.f32.mrb[0].mxu0
      %3305 = vmatprep.mubr.f32.mxu0 0.0
      %3306 = vmatmul.mubr.f32.gmra.mrb[0].mxu0 %v3225
      %v3307 = vpop.f32.mrb[0].mxu0
      %v3308 = vadd.f32 %v3219, %v3307
      %v3309 = vpop.f32.mrb[0].mxu0
      %3310 = vmatprep.mubr.f32.mxu0 0.0
      %3311 = vmatmul.mubr.f32.gmra.mrb[0].mxu0 %v3228
      %v3312 = vpop.f32.mrb[0].mxu0
      %v3313 = vadd.f32 %v3219, %v3312
      %v3314 = vpop.f32.mrb[0].mxu0
      %3315 = vmatprep.mubr.f32.mxu0 0.0
      %3316 = vmatmul.mubr.f32.gmra.mrb[0].mxu0 %v3231
      %v3317 = vpop.f32.mrb[0].mxu0
      %v3318 = vadd.f32 %v3219, %v3317
      %v3319 = vpop.f32.mrb[0].mxu0
      %3320 = vmatprep.mubr.f32.mxu0 0.0
      %3321 = vmatmul.mubr.f32.gmra.mrb[0].mxu0 %v3234
      %v3322 = vpop.f32.mrb[0].mxu0
      %v3323 = vadd.f32 %v3219, %v3322
      %v3324 = vpop.f32.mrb[0].mxu0
      %3325 = vdwg.mxu0
      %v3326 = vmax.f32 %v3303, 0.0
      %v3327 = vmax.f32 %v3308, 0.0
      %v3328 = vmax.f32 %v3313, 0.0
      %v3329 = vmax.f32 %v3318, 0.0
      %v3330 = vmax.f32 %v3323, 0.0
      %v3331 = vld [vmem:[%s1721] sm:$0xff]
      %v3332 = vld [vmem:[%s1721 + $0x8] sm:$0xff]
      %v3333 = vld [vmem:[%s1721 + $0x10] sm:$0xff]
      %v3334 = vld [vmem:[%s1721 + $0x18] sm:$0xff]
      %v3335 = vld [vmem:[%s1726] sm:$0x1]
      %v3337 = vlaneseq
      %v3338 = vshrl.u32 %v3337, 7
      %v3339 = vsub.s32 0, %v3338
      %v3340 = vrot.slane %v3335, %v3339
      %v3343 = vsel %vm684, %v3326, 0
      %v3346 = vsel %vm684, %v3327, 0
      %v3349 = vsel %vm684, %v3328, 0
      %v3352 = vsel %vm684, %v3329, 0
      %v3355 = vsel %vm684, %v3330, 0
      %3357 = vmatprep.subr.mxu0 0.0
      %3358 = vmatpush1.msra.mxu0 %v3331
      %3359 = vmatprep.subr.mxu0 0.0
      %3360 = vmatpush1.msra.mxu0 %v3332
      %3361 = vmatprep.subr.mxu0 0.0
      %3362 = vmatpush1.msra.mxu0 %v3333
      %3363 = vmatprep.subr.mxu0 0.0
      %3364 = vmatpush1.msra.mxu0 %v3334
      %3365 = vmatprep.subr.mxu0 0.0
      %3366 = vmatpush1.msra.mxu0 0.0
      %3367 = vmatprep.subr.mxu0 0.0
      %3368 = vmatpush1.msra.mxu0 0.0
      %3369 = vmatprep.subr.mxu0 0.0
      %3370 = vmatpush1.msra.mxu0 0.0
      %3371 = vmatprep.subr.mxu0 0.0
      %3372 = vmatpush1.msra.mxu0 0.0
      %3373 = vmatprep.subr.mxu0 0.0
      %3374 = vmatpush1.msra.mxu0 0.0
      %3375 = vmatprep.subr.mxu0 0.0
      %3376 = vmatpush1.msra.mxu0 0.0
      %3377 = vmatprep.subr.mxu0 0.0
      %3378 = vmatpush1.msra.mxu0 0.0
      %3379 = vmatprep.subr.mxu0 0.0
      %3380 = vmatpush1.msra.mxu0 0.0
      %3381 = vmatprep.subr.mxu0 0.0
      %3382 = vmatpush1.msra.mxu0 0.0
      %3383 = vmatprep.subr.mxu0 0.0
      %3384 = vmatpush1.msra.mxu0 0.0
      %3385 = vmatprep.subr.mxu0 0.0
      %3386 = vmatpush1.msra.mxu0 0.0
      %3387 = vmatprep.subr.mxu0 0.0
      %3388 = vmatpush1.msra.mxu0 0.0
      %3389 = vmatprep.subr.mxu0 0.0
      %3390 = vmatpush1.msra.mxu0 0.0
      %3391 = vmatprep.subr.mxu0 0.0
      %3392 = vmatpush1.msra.mxu0 0.0
      %3393 = vmatprep.subr.mxu0 0.0
      %3394 = vmatpush1.msra.mxu0 0.0
      %3395 = vmatprep.subr.mxu0 0.0
      %3396 = vmatpush1.msra.mxu0 0.0
      %3397 = vmatprep.subr.mxu0 0.0
      %3398 = vmatpush1.msra.mxu0 0.0
      %3399 = vmatprep.subr.mxu0 0.0
      %3400 = vmatpush1.msra.mxu0 0.0
      %3401 = vmatprep.subr.mxu0 0.0
      %3402 = vmatpush1.msra.mxu0 0.0
      %3403 = vmatprep.subr.mxu0 0.0
      %3404 = vmatpush1.msra.mxu0 0.0
      %3405 = vmatprep.subr.mxu0 0.0
      %3406 = vmatpush1.msra.mxu0 0.0
      %3407 = vmatprep.subr.mxu0 0.0
      %3408 = vmatpush1.msra.mxu0 0.0
      %3409 = vmatprep.subr.mxu0 0.0
      %3410 = vmatpush1.msra.mxu0 0.0
      %3411 = vmatprep.subr.mxu0 0.0
      %3412 = vmatpush1.msra.mxu0 0.0
      %3413 = vmatprep.subr.mxu0 0.0
      %3414 = vmatpush1.msra.mxu0 0.0
      %3415 = vmatprep.subr.mxu0 0.0
      %3416 = vmatpush1.msra.mxu0 0.0
      %3417 = vmatprep.subr.mxu0 0.0
      %3418 = vmatpush1.msra.mxu0 0.0
      %3419 = vmatprep.subr.mxu0 0.0
      %3420 = vmatpush1.msra.mxu0 0.0
      %3421 = vmatprep.mubr.f32.mxu0 0.0
      %3422 = vmatmul.mubr.f32.gmra.mrb[0].mxu0 %v3343
      %v3423 = vpop.f32.mrb[0].mxu0
      %v3424 = vadd.f32 %v3340, %v3423
      %v3425 = vpop.f32.mrb[0].mxu0
      %3426 = vmatprep.mubr.f32.mxu0 0.0
      %3427 = vmatmul.mubr.f32.gmra.mrb[0].mxu0 %v3346
      %v3428 = vpop.f32.mrb[0].mxu0
      %v3429 = vadd.f32 %v3340, %v3428
      %v3430 = vpop.f32.mrb[0].mxu0
      %3431 = vmatprep.mubr.f32.mxu0 0.0
      %3432 = vmatmul.mubr.f32.gmra.mrb[0].mxu0 %v3349
      %v3433 = vpop.f32.mrb[0].mxu0
      %v3434 = vadd.f32 %v3340, %v3433
      %v3435 = vpop.f32.mrb[0].mxu0
      %3436 = vmatprep.mubr.f32.mxu0 0.0
      %3437 = vmatmul.mubr.f32.gmra.mrb[0].mxu0 %v3352
      %v3438 = vpop.f32.mrb[0].mxu0
      %v3439 = vadd.f32 %v3340, %v3438
      %v3440 = vpop.f32.mrb[0].mxu0
      %3441 = vmatprep.mubr.f32.mxu0 0.0
      %3442 = vmatmul.mubr.f32.gmra.mrb[0].mxu0 %v3355
      %v3443 = vpop.f32.mrb[0].mxu0
      %v3444 = vadd.f32 %v3340, %v3443
      %v3445 = vpop.f32.mrb[0].mxu0
      %3446 = vdwg.mxu0
      %v3447 = vmax.f32 %v3424, 0.0
      %v3448 = vmax.f32 %v3429, 0.0
      %v3449 = vmax.f32 %v3434, 0.0
      %v3450 = vmax.f32 %v3439, 0.0
      %v3451 = vmax.f32 %v3444, 0.0
      %v3452 = vld [vmem:[%s1844] sm:$0xff]
      %v3453 = vld [vmem:[%s1844 + $0x8] sm:$0xff]
      %v3454 = vld [vmem:[%s1844 + $0x10] sm:$0xff]
      %v3455 = vld [vmem:[%s1844 + $0x18] sm:$0xff]
      %v3457 = vsel %vm684, %v3447, 0
      %v3460 = vsel %vm684, %v3448, 0
      %v3463 = vsel %vm684, %v3449, 0
      %v3466 = vsel %vm684, %v3450, 0
      %v3469 = vsel %vm684, %v3451, 0
      %3471 = vmatprep.subr.mxu0 0.0
      %3472 = vmatpush1.msra.mxu0 %v3452
      %3473 = vmatprep.subr.mxu0 0.0
      %3474 = vmatpush1.msra.mxu0 %v3453
      %3475 = vmatprep.subr.mxu0 0.0
      %3476 = vmatpush1.msra.mxu0 %v3454
      %3477 = vmatprep.subr.mxu0 0.0
      %3478 = vmatpush1.msra.mxu0 %v3455
      %3479 = vmatprep.subr.mxu0 0.0
      %3480 = vmatpush1.msra.mxu0 0.0
      %3481 = vmatprep.subr.mxu0 0.0
      %3482 = vmatpush1.msra.mxu0 0.0
      %3483 = vmatprep.subr.mxu0 0.0
      %3484 = vmatpush1.msra.mxu0 0.0
      %3485 = vmatprep.subr.mxu0 0.0
      %3486 = vmatpush1.msra.mxu0 0.0
      %3487 = vmatprep.subr.mxu0 0.0
      %3488 = vmatpush1.msra.mxu0 0.0
      %3489 = vmatprep.subr.mxu0 0.0
      %3490 = vmatpush1.msra.mxu0 0.0
      %3491 = vmatprep.subr.mxu0 0.0
      %3492 = vmatpush1.msra.mxu0 0.0
      %3493 = vmatprep.subr.mxu0 0.0
      %3494 = vmatpush1.msra.mxu0 0.0
      %3495 = vmatprep.subr.mxu0 0.0
      %3496 = vmatpush1.msra.mxu0 0.0
      %3497 = vmatprep.subr.mxu0 0.0
      %3498 = vmatpush1.msra.mxu0 0.0
      %3499 = vmatprep.subr.mxu0 0.0
      %3500 = vmatpush1.msra.mxu0 0.0
      %3501 = vmatprep.subr.mxu0 0.0
      %3502 = vmatpush1.msra.mxu0 0.0
      %3503 = vmatprep.subr.mxu0 0.0
      %3504 = vmatpush1.msra.mxu0 0.0
      %3505 = vmatprep.subr.mxu0 0.0
      %3506 = vmatpush1.msra.mxu0 0.0
      %3507 = vmatprep.subr.mxu0 0.0
      %3508 = vmatpush1.msra.mxu0 0.0
      %3509 = vmatprep.subr.mxu0 0.0
      %3510 = vmatpush1.msra.mxu0 0.0
      %3511 = vmatprep.subr.mxu0 0.0
      %3512 = vmatpush1.msra.mxu0 0.0
      %3513 = vmatprep.subr.mxu0 0.0
      %3514 = vmatpush1.msra.mxu0 0.0
      %3515 = vmatprep.subr.mxu0 0.0
      %3516 = vmatpush1.msra.mxu0 0.0
      %3517 = vmatprep.subr.mxu0 0.0
      %3518 = vmatpush1.msra.mxu0 0.0
      %3519 = vmatprep.subr.mxu0 0.0
      %3520 = vmatpush1.msra.mxu0 0.0
      %3521 = vmatprep.subr.mxu0 0.0
      %3522 = vmatpush1.msra.mxu0 0.0
      %3523 = vmatprep.subr.mxu0 0.0
      %3524 = vmatpush1.msra.mxu0 0.0
      %3525 = vmatprep.subr.mxu0 0.0
      %3526 = vmatpush1.msra.mxu0 0.0
      %3527 = vmatprep.subr.mxu0 0.0
      %3528 = vmatpush1.msra.mxu0 0.0
      %3529 = vmatprep.subr.mxu0 0.0
      %3530 = vmatpush1.msra.mxu0 0.0
      %3531 = vmatprep.subr.mxu0 0.0
      %3532 = vmatpush1.msra.mxu0 0.0
      %3533 = vmatprep.subr.mxu0 0.0
      %3534 = vmatpush1.msra.mxu0 0.0
      %3535 = vmatprep.mubr.f32.mxu0 0.0
      %3536 = vmatmul.mubr.f32.gmra.mrb[0].mxu0 %v3457
      %v3537 = vpop.f32.mrb[0].mxu0
      %v3538 = vadd.f32 0.0, %v3537
      %v3539 = vpop.f32.mrb[0].mxu0
      %3540 = vmatprep.mubr.f32.mxu0 0.0
      %3541 = vmatmul.mubr.f32.gmra.mrb[0].mxu0 %v3460
      %v3542 = vpop.f32.mrb[0].mxu0
      %v3543 = vadd.f32 0.0, %v3542
      %v3544 = vpop.f32.mrb[0].mxu0
      %3545 = vmatprep.mubr.f32.mxu0 0.0
      %3546 = vmatmul.mubr.f32.gmra.mrb[0].mxu0 %v3463
      %v3547 = vpop.f32.mrb[0].mxu0
      %v3548 = vadd.f32 0.0, %v3547
      %v3549 = vpop.f32.mrb[0].mxu0
      %3550 = vmatprep.mubr.f32.mxu0 0.0
      %3551 = vmatmul.mubr.f32.gmra.mrb[0].mxu0 %v3466
      %v3552 = vpop.f32.mrb[0].mxu0
      %v3553 = vadd.f32 0.0, %v3552
      %v3554 = vpop.f32.mrb[0].mxu0
      %3555 = vmatprep.mubr.f32.mxu0 0.0
      %3556 = vmatmul.mubr.f32.gmra.mrb[0].mxu0 %v3469
      %v3557 = vpop.f32.mrb[0].mxu0
      %v3558 = vadd.f32 0.0, %v3557
      %v3559 = vpop.f32.mrb[0].mxu0
      %3560 = vdwg.mxu0
      %3561 = vmatprep.subr.mxu0 0.0
      %3562 = vmatpush1.msra.mxu0 %v3538
      %3563 = vmatprep.subr.mxu0 0.0
      %3564 = vmatpush1.msra.mxu0 %v3543
      %3565 = vmatprep.subr.mxu0 0.0
      %3566 = vmatpush1.msra.mxu0 %v3548
      %3567 = vmatprep.subr.mxu0 0.0
      %3568 = vmatpush1.msra.mxu0 %v3553
      %3569 = vmatprep.subr.mxu0 0.0
      %3570 = vmatpush1.msra.mxu0 %v3558
      %3571 = vmatprep.subr.mxu0 0.0
      %3572 = vmatpush1.msra.mxu0 0.0
      %3573 = vmatprep.subr.mxu0 0.0
      %3574 = vmatpush1.msra.mxu0 0.0
      %3575 = vmatprep.subr.mxu0 0.0
      %3576 = vmatpush1.msra.mxu0 0.0
      %3577 = vmatprep.subr.mxu0 0.0
      %3578 = vmatpush1.msra.mxu0 0.0
      %3579 = vmatprep.subr.mxu0 0.0
      %3580 = vmatpush1.msra.mxu0 0.0
      %3581 = vmatprep.subr.mxu0 0.0
      %3582 = vmatpush1.msra.mxu0 0.0
      %3583 = vmatprep.subr.mxu0 0.0
      %3584 = vmatpush1.msra.mxu0 0.0
      %3585 = vmatprep.subr.mxu0 0.0
      %3586 = vmatpush1.msra.mxu0 0.0
      %3587 = vmatprep.subr.mxu0 0.0
      %3588 = vmatpush1.msra.mxu0 0.0
      %3589 = vmatprep.subr.mxu0 0.0
      %3590 = vmatpush1.msra.mxu0 0.0
      %3591 = vmatprep.subr.mxu0 0.0
      %3592 = vmatpush1.msra.mxu0 0.0
      %3593 = vmatprep.subr.mxu0 0.0
      %3594 = vmatpush1.msra.mxu0 0.0
      %3595 = vmatprep.subr.mxu0 0.0
      %3596 = vmatpush1.msra.mxu0 0.0
      %3597 = vmatprep.subr.mxu0 0.0
      %3598 = vmatpush1.msra.mxu0 0.0
      %3599 = vmatprep.subr.mxu0 0.0
      %3600 = vmatpush1.msra.mxu0 0.0
      %3601 = vmatprep.subr.mxu0 0.0
      %3602 = vmatpush1.msra.mxu0 0.0
      %3603 = vmatprep.subr.mxu0 0.0
      %3604 = vmatpush1.msra.mxu0 0.0
      %3605 = vmatprep.subr.mxu0 0.0
      %3606 = vmatpush1.msra.mxu0 0.0
      %3607 = vmatprep.subr.mxu0 0.0
      %3608 = vmatpush1.msra.mxu0 0.0
      %3609 = vmatprep.subr.mxu0 0.0
      %3610 = vmatpush1.msra.mxu0 0.0
      %3611 = vmatprep.subr.mxu0 0.0
      %3612 = vmatpush1.msra.mxu0 0.0
      %3613 = vmatprep.subr.mxu0 0.0
      %3614 = vmatpush1.msra.mxu0 0.0
      %3615 = vmatprep.subr.mxu0 0.0
      %3616 = vmatpush1.msra.mxu0 0.0
      %3617 = vmatprep.subr.mxu0 0.0
      %3618 = vmatpush1.msra.mxu0 0.0
      %3619 = vmatprep.subr.mxu0 0.0
      %3620 = vmatpush1.msra.mxu0 0.0
      %3621 = vmatprep.subr.mxu0 0.0
      %3622 = vmatpush1.msra.mxu0 0.0
      %3623 = vmatprep.subr.mxu0 0.0
      %3624 = vmatpush1.msra.mxu0 0.0
      %3625 = vmatprep.mubr.f32.mxu0 0.0
      %3626 = vmatmul.mubr.f32.gmra.mrb[0].mxu0 %v1955
      %v3627 = vpop.f32.mrb[0].mxu0
      %v3628 = vadd.f32 0.0, %v3627
      %v3629 = vpop.f32.mrb[0].mxu0
      %3630 = vmatprep.mubr.f32.mxu0 0.0
      %3631 = vmatmul.mubr.f32.gmra.mrb[0].mxu0 %v1958
      %v3632 = vpop.f32.mrb[0].mxu0
      %v3633 = vadd.f32 0.0, %v3632
      %v3634 = vpop.f32.mrb[0].mxu0
      %3635 = vmatprep.mubr.f32.mxu0 0.0
      %3636 = vmatmul.mubr.f32.gmra.mrb[0].mxu0 %v1961
      %v3637 = vpop.f32.mrb[0].mxu0
      %v3638 = vadd.f32 0.0, %v3637
      %v3639 = vpop.f32.mrb[0].mxu0
      %3640 = vdwg.mxu0
      %v3641 = vadd.f32 %v2972, %v3628
      %v3642 = vadd.f32 %v2973, %v3633
      %v3643 = vadd.f32 %v2974, %v3638
      %v3644 = vsel %vm684, %v2130, 0
      %v3646 = vsel %vm684, %v2132, 0
      %v3648 = vsel %vm684, %v2134, 0
      %3650 = vmatprep.subr.mxu0 0.0
      %3651 = vmatpush1.msra.mxu0 %v445
      %3652 = vmatprep.subr.mxu0 0.0
      %3653 = vmatpush1.msra.mxu0 %v446
      %3654 = vmatprep.subr.mxu0 0.0
      %3655 = vmatpush1.msra.mxu0 %v447
      %3656 = vmatprep.subr.mxu0 0.0
      %3657 = vmatpush1.msra.mxu0 %v448
      %3658 = vmatprep.subr.mxu0 0.0
      %3659 = vmatpush1.msra.mxu0 0.0
      %3660 = vmatprep.subr.mxu0 0.0
      %3661 = vmatpush1.msra.mxu0 0.0
      %3662 = vmatprep.subr.mxu0 0.0
      %3663 = vmatpush1.msra.mxu0 0.0
      %3664 = vmatprep.subr.mxu0 0.0
      %3665 = vmatpush1.msra.mxu0 0.0
      %3666 = vmatprep.subr.mxu0 0.0
      %3667 = vmatpush1.msra.mxu0 0.0
      %3668 = vmatprep.subr.mxu0 0.0
      %3669 = vmatpush1.msra.mxu0 0.0
      %3670 = vmatprep.subr.mxu0 0.0
      %3671 = vmatpush1.msra.mxu0 0.0
      %3672 = vmatprep.subr.mxu0 0.0
      %3673 = vmatpush1.msra.mxu0 0.0
      %3674 = vmatprep.subr.mxu0 0.0
      %3675 = vmatpush1.msra.mxu0 0.0
      %3676 = vmatprep.subr.mxu0 0.0
      %3677 = vmatpush1.msra.mxu0 0.0
      %3678 = vmatprep.subr.mxu0 0.0
      %3679 = vmatpush1.msra.mxu0 0.0
      %3680 = vmatprep.subr.mxu0 0.0
      %3681 = vmatpush1.msra.mxu0 0.0
      %3682 = vmatprep.subr.mxu0 0.0
      %3683 = vmatpush1.msra.mxu0 0.0
      %3684 = vmatprep.subr.mxu0 0.0
      %3685 = vmatpush1.msra.mxu0 0.0
      %3686 = vmatprep.subr.mxu0 0.0
      %3687 = vmatpush1.msra.mxu0 0.0
      %3688 = vmatprep.subr.mxu0 0.0
      %3689 = vmatpush1.msra.mxu0 0.0
      %3690 = vmatprep.subr.mxu0 0.0
      %3691 = vmatpush1.msra.mxu0 0.0
      %3692 = vmatprep.subr.mxu0 0.0
      %3693 = vmatpush1.msra.mxu0 0.0
      %3694 = vmatprep.subr.mxu0 0.0
      %3695 = vmatpush1.msra.mxu0 0.0
      %3696 = vmatprep.subr.mxu0 0.0
      %3697 = vmatpush1.msra.mxu0 0.0
      %3698 = vmatprep.subr.mxu0 0.0
      %3699 = vmatpush1.msra.mxu0 0.0
      %3700 = vmatprep.subr.mxu0 0.0
      %3701 = vmatpush1.msra.mxu0 0.0
      %3702 = vmatprep.subr.mxu0 0.0
      %3703 = vmatpush1.msra.mxu0 0.0
      %3704 = vmatprep.subr.mxu0 0.0
      %3705 = vmatpush1.msra.mxu0 0.0
      %3706 = vmatprep.subr.mxu0 0.0
      %3707 = vmatpush1.msra.mxu0 0.0
      %3708 = vmatprep.subr.mxu0 0.0
      %3709 = vmatpush1.msra.mxu0 0.0
      %3710 = vmatprep.subr.mxu0 0.0
      %3711 = vmatpush1.msra.mxu0 0.0
      %3712 = vmatprep.subr.mxu0 0.0
      %3713 = vmatpush1.msra.mxu0 0.0
      %3714 = vmatprep.mubr.f32.mxu0 0.0
      %3715 = vmatmul.mubr.f32.gmra.mrb[0].mxu0 %v3644
      %v3716 = vpop.f32.mrb[0].mxu0
      %v3717 = vadd.f32 0.0, %v3716
      %v3718 = vpop.f32.mrb[0].mxu0
      %3719 = vmatprep.mubr.f32.mxu0 0.0
      %3720 = vmatmul.mubr.f32.gmra.mrb[0].mxu0 %v3646
      %v3721 = vpop.f32.mrb[0].mxu0
      %v3722 = vadd.f32 0.0, %v3721
      %v3723 = vpop.f32.mrb[0].mxu0
      %3724 = vmatprep.mubr.f32.mxu0 0.0
      %3725 = vmatmul.mubr.f32.gmra.mrb[0].mxu0 %v3648
      %v3726 = vpop.f32.mrb[0].mxu0
      %v3727 = vadd.f32 0.0, %v3726
      %v3728 = vpop.f32.mrb[0].mxu0
      %3729 = vdwg.mxu0
      %v3730 = vadd.f32 %v3641, %v3717
      %v3731 = vadd.f32 %v3642, %v3722
      %v3732 = vadd.f32 %v3643, %v3727
      %v3733 = vtanh.pop %v3730
      %v3734 = vtanh.pop %v3731
      %v3735 = vtanh.pop %v3732
      %v3736 = vxor.u32 %v3730, 2147483648
      %v3737 = vxor.u32 %v3731, 2147483648
      %v3738 = vxor.u32 %v3732, 2147483648
      %v3739 = vmul.f32 %v3736, 1.442695
      %v3740 = vpow.pop %v3739
      %v3741 = vmul.f32 %v3737, 1.442695
      %v3742 = vpow.pop %v3741
      %v3743 = vmul.f32 %v3738, 1.442695
      %v3744 = vpow.pop %v3743
      %v3745 = vadd.f32 %v3740, 1.0
      %v3746 = vadd.f32 %v3742, 1.0
      %v3747 = vadd.f32 %v3744, 1.0
      %v3748 = vrcp.pop %v3745
      %v3749 = vmul.f32 1.0, %v3748
      %v3750 = vrcp.pop %v3746
      %v3751 = vmul.f32 1.0, %v3750
      %v3752 = vrcp.pop %v3747
      %v3753 = vmul.f32 1.0, %v3752
      %v3754 = vsel %vm2050, %v3733, %v3749
      %v3755 = vsel %vm2050, %v3734, %v3751
      %v3756 = vsel %vm2050, %v3735, %v3753
      %v3757 = vmul.f32 %v3754, %v2105
      %v3758 = vmul.f32 %v3755, %v2106
      %v3759 = vmul.f32 %v3756, %v2107
      %3763 = vrot.lane.b32.xlu0 %v3754, 64
      %v3764 = vpop.permute.xlu0 %3763
      %3765 = vrot.lane.b32.xlu0 %v3755, 64
      %v3766 = vpop.permute.xlu0 %3765
      %3767 = vrot.lane.b32.xlu0 %v3756, 64
      %v3768 = vpop.permute.xlu0 %3767
      %v3772 = vmul.f32 %v3754, %v3764
      %v3773 = vmul.f32 %v3755, %v3766
      %v3774 = vmul.f32 %v3756, %v3768
      %3778 = vrot.lane.b32.xlu0 %v3772, 32
      %v3779 = vpop.permute.xlu0 %3778
      %3780 = vrot.lane.b32.xlu0 %v3773, 32
      %v3781 = vpop.permute.xlu0 %3780
      %3782 = vrot.lane.b32.xlu0 %v3774, 32
      %v3783 = vpop.permute.xlu0 %3782
      %v3787 = vadd.f32 %v3757, %v3779
      %v3788 = vadd.f32 %v3758, %v3781
      %v3789 = vadd.f32 %v3759, %v3783
      %v3790 = vtanh.pop %v3787
      %v3791 = vtanh.pop %v3788
      %v3792 = vtanh.pop %v3789
      %3796 = vrot.lane.b32.xlu0 %v3790, 64
      %v3797 = vpop.permute.xlu0 %3796
      %3798 = vrot.lane.b32.xlu0 %v3791, 64
      %v3799 = vpop.permute.xlu0 %3798
      %3800 = vrot.lane.b32.xlu0 %v3792, 64
      %v3801 = vpop.permute.xlu0 %3800
      %v3805 = vmul.f32 %v3754, %v3797
      %v3806 = vmul.f32 %v3755, %v3799
      %v3807 = vmul.f32 %v3756, %v3801
      %3811 = vrot.lane.b32.xlu0 %v3805, 32
      %v3812 = vpop.permute.xlu0 %3811
      %3813 = vrot.lane.b32.xlu0 %v3806, 32
      %v3814 = vpop.permute.xlu0 %3813
      %3815 = vrot.lane.b32.xlu0 %v3807, 32
      %v3816 = vpop.permute.xlu0 %3815
      %s3820 = scalar_lea.vmem %s412, 24
      %3821 = vst.msk [vmem:[%s3820] sm:$0xff] %vm684, %v3812
      %3822 = vst.msk [vmem:[%s3820 + $0x8] sm:$0xff] %vm684, %v3814
      %3823 = vst.msk [vmem:[%s3820 + $0x10] sm:$0xff] %vm684, %v3816
      %3824 = vmatprep.subr.mxu0 0.0
      %3825 = vmatpush1.msra.mxu0 %v3812
      %3826 = vmatprep.subr.mxu0 0.0
      %3827 = vmatpush1.msra.mxu0 %v3814
      %3828 = vmatprep.subr.mxu0 0.0
      %3829 = vmatpush1.msra.mxu0 %v3816
      %3830 = vmatprep.subr.mxu0 0.0
      %3831 = vmatpush1.msra.mxu0 0.0
      %3832 = vmatprep.subr.mxu0 0.0
      %3833 = vmatpush1.msra.mxu0 0.0
      %3834 = vmatprep.subr.mxu0 0.0
      %3835 = vmatpush1.msra.mxu0 0.0
      %3836 = vmatprep.subr.mxu0 0.0
      %3837 = vmatpush1.msra.mxu0 0.0
      %3838 = vmatprep.subr.mxu0 0.0
      %3839 = vmatpush1.msra.mxu0 0.0
      %3840 = vmatprep.subr.mxu0 0.0
      %3841 = vmatpush1.msra.mxu0 0.0
      %3842 = vmatprep.subr.mxu0 0.0
      %3843 = vmatpush1.msra.mxu0 0.0
      %3844 = vmatprep.subr.mxu0 0.0
      %3845 = vmatpush1.msra.mxu0 0.0
      %3846 = vmatprep.subr.mxu0 0.0
      %3847 = vmatpush1.msra.mxu0 0.0
      %3848 = vmatprep.subr.mxu0 0.0
      %3849 = vmatpush1.msra.mxu0 0.0
      %3850 = vmatprep.subr.mxu0 0.0
      %3851 = vmatpush1.msra.mxu0 0.0
      %3852 = vmatprep.subr.mxu0 0.0
      %3853 = vmatpush1.msra.mxu0 0.0
      %3854 = vmatprep.subr.mxu0 0.0
      %3855 = vmatpush1.msra.mxu0 0.0
      %3856 = vmatprep.subr.mxu0 0.0
      %3857 = vmatpush1.msra.mxu0 0.0
      %3858 = vmatprep.subr.mxu0 0.0
      %3859 = vmatpush1.msra.mxu0 0.0
      %3860 = vmatprep.subr.mxu0 0.0
      %3861 = vmatpush1.msra.mxu0 0.0
      %3862 = vmatprep.subr.mxu0 0.0
      %3863 = vmatpush1.msra.mxu0 0.0
      %3864 = vmatprep.subr.mxu0 0.0
      %3865 = vmatpush1.msra.mxu0 0.0
      %3866 = vmatprep.subr.mxu0 0.0
      %3867 = vmatpush1.msra.mxu0 0.0
      %3868 = vmatprep.subr.mxu0 0.0
      %3869 = vmatpush1.msra.mxu0 0.0
      %3870 = vmatprep.subr.mxu0 0.0
      %3871 = vmatpush1.msra.mxu0 0.0
      %3872 = vmatprep.subr.mxu0 0.0
      %3873 = vmatpush1.msra.mxu0 0.0
      %3874 = vmatprep.subr.mxu0 0.0
      %3875 = vmatpush1.msra.mxu0 0.0
      %3876 = vmatprep.subr.mxu0 0.0
      %3877 = vmatpush1.msra.mxu0 0.0
      %3878 = vmatprep.subr.mxu0 0.0
      %3879 = vmatpush1.msra.mxu0 0.0
      %3880 = vmatprep.subr.mxu0 0.0
      %3881 = vmatpush1.msra.mxu0 0.0
      %3882 = vmatprep.subr.mxu0 0.0
      %3883 = vmatpush1.msra.mxu0 0.0
      %3884 = vmatprep.subr.mxu0 0.0
      %3885 = vmatpush1.msra.mxu0 0.0
      %3886 = vmatprep.subr.mxu0 0.0
      %3887 = vmatpush1.msra.mxu0 0.0
      %3888 = vmatprep.mubr.f32.mxu0 0.0
      %3889 = vmatmul.mubr.f32.gmra.mrb[0].mxu0 %v451
      %v3890 = vpop.f32.mrb[0].mxu0
      %v3891 = vadd.f32 0.0, %v3890
      %v3892 = vpop.f32.mrb[0].mxu0
      %3893 = vmatprep.mubr.f32.mxu0 0.0
      %3894 = vmatmul.mubr.f32.gmra.mrb[0].mxu0 %v454
      %v3895 = vpop.f32.mrb[0].mxu0
      %v3896 = vadd.f32 0.0, %v3895
      %v3897 = vpop.f32.mrb[0].mxu0
      %3898 = vmatprep.mubr.f32.mxu0 0.0
      %3899 = vmatmul.mubr.f32.gmra.mrb[0].mxu0 %v457
      %v3900 = vpop.f32.mrb[0].mxu0
      %v3901 = vadd.f32 0.0, %v3900
      %v3902 = vpop.f32.mrb[0].mxu0
      %3903 = vmatprep.mubr.f32.mxu0 0.0
      %3904 = vmatmul.mubr.f32.gmra.mrb[0].mxu0 %v460
      %v3905 = vpop.f32.mrb[0].mxu0
      %v3906 = vadd.f32 0.0, %v3905
      %v3907 = vpop.f32.mrb[0].mxu0
      %3908 = vmatprep.mubr.f32.mxu0 0.0
      %3909 = vmatmul.mubr.f32.gmra.mrb[0].mxu0 %v463
      %v3910 = vpop.f32.mrb[0].mxu0
      %v3911 = vadd.f32 0.0, %v3910
      %v3912 = vpop.f32.mrb[0].mxu0
      %3913 = vmatprep.mubr.f32.mxu0 0.0
      %3914 = vmatmul.mubr.f32.gmra.mrb[0].mxu0 %v466
      %v3915 = vpop.f32.mrb[0].mxu0
      %v3916 = vadd.f32 0.0, %v3915
      %v3917 = vpop.f32.mrb[0].mxu0
      %3918 = vmatprep.mubr.f32.mxu0 0.0
      %3919 = vmatmul.mubr.f32.gmra.mrb[0].mxu0 %v469
      %v3920 = vpop.f32.mrb[0].mxu0
      %v3921 = vadd.f32 0.0, %v3920
      %v3922 = vpop.f32.mrb[0].mxu0
      %3923 = vmatprep.mubr.f32.mxu0 0.0
      %3924 = vmatmul.mubr.f32.gmra.mrb[0].mxu0 %v472
      %v3925 = vpop.f32.mrb[0].mxu0
      %v3926 = vadd.f32 0.0, %v3925
      %v3927 = vpop.f32.mrb[0].mxu0
      %3928 = vmatprep.mubr.f32.mxu0 0.0
      %3929 = vmatmul.mubr.f32.gmra.mrb[0].mxu0 %v475
      %v3930 = vpop.f32.mrb[0].mxu0
      %v3931 = vadd.f32 0.0, %v3930
      %v3932 = vpop.f32.mrb[0].mxu0
      %3933 = vmatprep.mubr.f32.mxu0 0.0
      %3934 = vmatmul.mubr.f32.gmra.mrb[0].mxu0 %v478
      %v3935 = vpop.f32.mrb[0].mxu0
      %v3936 = vadd.f32 0.0, %v3935
      %v3937 = vpop.f32.mrb[0].mxu0
      %3938 = vmatprep.mubr.f32.mxu0 0.0
      %3939 = vmatmul.mubr.f32.gmra.mrb[0].mxu0 %v481
      %v3940 = vpop.f32.mrb[0].mxu0
      %v3941 = vadd.f32 0.0, %v3940
      %v3942 = vpop.f32.mrb[0].mxu0
      %3943 = vmatprep.mubr.f32.mxu0 0.0
      %3944 = vmatmul.mubr.f32.gmra.mrb[0].mxu0 %v484
      %v3945 = vpop.f32.mrb[0].mxu0
      %v3946 = vadd.f32 0.0, %v3945
      %v3947 = vpop.f32.mrb[0].mxu0
      %3948 = vmatprep.mubr.f32.mxu0 0.0
      %3949 = vmatmul.mubr.f32.gmra.mrb[0].mxu0 %v487
      %v3950 = vpop.f32.mrb[0].mxu0
      %v3951 = vadd.f32 0.0, %v3950
      %v3952 = vpop.f32.mrb[0].mxu0
      %3953 = vmatprep.mubr.f32.mxu0 0.0
      %3954 = vmatmul.mubr.f32.gmra.mrb[0].mxu0 %v490
      %v3955 = vpop.f32.mrb[0].mxu0
      %v3956 = vadd.f32 0.0, %v3955
      %v3957 = vpop.f32.mrb[0].mxu0
      %3958 = vmatprep.mubr.f32.mxu0 0.0
      %3959 = vmatmul.mubr.f32.gmra.mrb[0].mxu0 %v493
      %v3960 = vpop.f32.mrb[0].mxu0
      %v3961 = vadd.f32 0.0, %v3960
      %v3962 = vpop.f32.mrb[0].mxu0
      %3963 = vmatprep.mubr.f32.mxu0 0.0
      %3964 = vmatmul.mubr.f32.gmra.mrb[0].mxu0 %v496
      %v3965 = vpop.f32.mrb[0].mxu0
      %v3966 = vadd.f32 0.0, %v3965
      %v3967 = vpop.f32.mrb[0].mxu0
      %3968 = vmatprep.mubr.f32.mxu0 0.0
      %3969 = vmatmul.mubr.f32.gmra.mrb[0].mxu0 %v499
      %v3970 = vpop.f32.mrb[0].mxu0
      %v3971 = vadd.f32 0.0, %v3970
      %v3972 = vpop.f32.mrb[0].mxu0
      %3973 = vmatprep.mubr.f32.mxu0 0.0
      %3974 = vmatmul.mubr.f32.gmra.mrb[0].mxu0 %v502
      %v3975 = vpop.f32.mrb[0].mxu0
      %v3976 = vadd.f32 0.0, %v3975
      %v3977 = vpop.f32.mrb[0].mxu0
      %3978 = vmatprep.mubr.f32.mxu0 0.0
      %3979 = vmatmul.mubr.f32.gmra.mrb[0].mxu0 %v505
      %v3980 = vpop.f32.mrb[0].mxu0
      %v3981 = vadd.f32 0.0, %v3980
      %v3982 = vpop.f32.mrb[0].mxu0
      %3983 = vmatprep.mubr.f32.mxu0 0.0
      %3984 = vmatmul.mubr.f32.gmra.mrb[0].mxu0 %v508
      %v3985 = vpop.f32.mrb[0].mxu0
      %v3986 = vadd.f32 0.0, %v3985
      %v3987 = vpop.f32.mrb[0].mxu0
      %3988 = vdwg.mxu0
      %v3989 = vld [vmem:[%s5] sm:$0xff]
      %v3990 = vld [vmem:[%s5 + $0x8] sm:$0xff]
      %v3991 = vld [vmem:[%s5 + $0x10] sm:$0xff]
      %v3992 = vld [vmem:[%s5 + $0x18] sm:$0xff]
      %v3993 = vld [vmem:[%s679] sm:$0xff]
      %v3994 = vld [vmem:[%s679 + $0x8] sm:$0xff]
      %v3995 = vld [vmem:[%s679 + $0x10] sm:$0xff]
      %v3996 = vld [vmem:[%s679 + $0x18] sm:$0xff]
      %v3998 = vsel %vm684, %v3916, 0
      %v4001 = vsel %vm684, %v3921, 0
      %v4004 = vsel %vm684, %v3926, 0
      %v4007 = vsel %vm684, %v3931, 0
      %v4010 = vsel %vm684, %v3936, 0
      %4012 = vmatprep.subr.mxu0 0.0
      %4013 = vmatpush1.msra.mxu0 %v3993
      %4014 = vmatprep.subr.mxu0 0.0
      %4015 = vmatpush1.msra.mxu0 %v3994
      %4016 = vmatprep.subr.mxu0 0.0
      %4017 = vmatpush1.msra.mxu0 %v3995
      %4018 = vmatprep.subr.mxu0 0.0
      %4019 = vmatpush1.msra.mxu0 %v3996
      %4020 = vmatprep.subr.mxu0 0.0
      %4021 = vmatpush1.msra.mxu0 0.0
      %4022 = vmatprep.subr.mxu0 0.0
      %4023 = vmatpush1.msra.mxu0 0.0
      %4024 = vmatprep.subr.mxu0 0.0
      %4025 = vmatpush1.msra.mxu0 0.0
      %4026 = vmatprep.subr.mxu0 0.0
      %4027 = vmatpush1.msra.mxu0 0.0
      %4028 = vmatprep.subr.mxu0 0.0
      %4029 = vmatpush1.msra.mxu0 0.0
      %4030 = vmatprep.subr.mxu0 0.0
      %4031 = vmatpush1.msra.mxu0 0.0
      %4032 = vmatprep.subr.mxu0 0.0
      %4033 = vmatpush1.msra.mxu0 0.0
      %4034 = vmatprep.subr.mxu0 0.0
      %4035 = vmatpush1.msra.mxu0 0.0
      %4036 = vmatprep.subr.mxu0 0.0
      %4037 = vmatpush1.msra.mxu0 0.0
      %4038 = vmatprep.subr.mxu0 0.0
      %4039 = vmatpush1.msra.mxu0 0.0
      %4040 = vmatprep.subr.mxu0 0.0
      %4041 = vmatpush1.msra.mxu0 0.0
      %4042 = vmatprep.subr.mxu0 0.0
      %4043 = vmatpush1.msra.mxu0 0.0
      %4044 = vmatprep.subr.mxu0 0.0
      %4045 = vmatpush1.msra.mxu0 0.0
      %4046 = vmatprep.subr.mxu0 0.0
      %4047 = vmatpush1.msra.mxu0 0.0
      %4048 = vmatprep.subr.mxu0 0.0
      %4049 = vmatpush1.msra.mxu0 0.0
      %4050 = vmatprep.subr.mxu0 0.0
      %4051 = vmatpush1.msra.mxu0 0.0
      %4052 = vmatprep.subr.mxu0 0.0
      %4053 = vmatpush1.msra.mxu0 0.0
      %4054 = vmatprep.subr.mxu0 0.0
      %4055 = vmatpush1.msra.mxu0 0.0
      %4056 = vmatprep.subr.mxu0 0.0
      %4057 = vmatpush1.msra.mxu0 0.0
      %4058 = vmatprep.subr.mxu0 0.0
      %4059 = vmatpush1.msra.mxu0 0.0
      %4060 = vmatprep.subr.mxu0 0.0
      %4061 = vmatpush1.msra.mxu0 0.0
      %4062 = vmatprep.subr.mxu0 0.0
      %4063 = vmatpush1.msra.mxu0 0.0
      %4064 = vmatprep.subr.mxu0 0.0
      %4065 = vmatpush1.msra.mxu0 0.0
      %4066 = vmatprep.subr.mxu0 0.0
      %4067 = vmatpush1.msra.mxu0 0.0
      %4068 = vmatprep.subr.mxu0 0.0
      %4069 = vmatpush1.msra.mxu0 0.0
      %4070 = vmatprep.subr.mxu0 0.0
      %4071 = vmatpush1.msra.mxu0 0.0
      %4072 = vmatprep.subr.mxu0 0.0
      %4073 = vmatpush1.msra.mxu0 0.0
      %4074 = vmatprep.subr.mxu0 0.0
      %4075 = vmatpush1.msra.mxu0 0.0
      %4076 = vmatprep.mubr.f32.mxu0 0.0
      %4077 = vmatmul.mubr.f32.gmra.mrb[0].mxu0 %v3998
      %v4078 = vpop.f32.mrb[0].mxu0
      %v4079 = vadd.f32 0.0, %v4078
      %v4080 = vpop.f32.mrb[0].mxu0
      %4081 = vmatprep.mubr.f32.mxu0 0.0
      %4082 = vmatmul.mubr.f32.gmra.mrb[0].mxu0 %v4001
      %v4083 = vpop.f32.mrb[0].mxu0
      %v4084 = vadd.f32 0.0, %v4083
      %v4085 = vpop.f32.mrb[0].mxu0
      %4086 = vmatprep.mubr.f32.mxu0 0.0
      %4087 = vmatmul.mubr.f32.gmra.mrb[0].mxu0 %v4004
      %v4088 = vpop.f32.mrb[0].mxu0
      %v4089 = vadd.f32 0.0, %v4088
      %v4090 = vpop.f32.mrb[0].mxu0
      %4091 = vmatprep.mubr.f32.mxu0 0.0
      %4092 = vmatmul.mubr.f32.gmra.mrb[0].mxu0 %v4007
      %v4093 = vpop.f32.mrb[0].mxu0
      %v4094 = vadd.f32 0.0, %v4093
      %v4095 = vpop.f32.mrb[0].mxu0
      %4096 = vmatprep.mubr.f32.mxu0 0.0
      %4097 = vmatmul.mubr.f32.gmra.mrb[0].mxu0 %v4010
      %v4098 = vpop.f32.mrb[0].mxu0
      %v4099 = vadd.f32 0.0, %v4098
      %v4100 = vpop.f32.mrb[0].mxu0
      %4101 = vdwg.mxu0
      %v4103 = vsel %vm684, %v3891, 0
      %v4106 = vsel %vm684, %v3896, 0
      %v4109 = vsel %vm684, %v3901, 0
      %v4112 = vsel %vm684, %v3906, 0
      %v4115 = vsel %vm684, %v3911, 0
      %4117 = vmatprep.subr.mxu0 0.0
      %4118 = vmatpush1.msra.mxu0 %v3989
      %4119 = vmatprep.subr.mxu0 0.0
      %4120 = vmatpush1.msra.mxu0 %v3990
      %4121 = vmatprep.subr.mxu0 0.0
      %4122 = vmatpush1.msra.mxu0 %v3991
      %4123 = vmatprep.subr.mxu0 0.0
      %4124 = vmatpush1.msra.mxu0 %v3992
      %4125 = vmatprep.subr.mxu0 0.0
      %4126 = vmatpush1.msra.mxu0 0.0
      %4127 = vmatprep.subr.mxu0 0.0
      %4128 = vmatpush1.msra.mxu0 0.0
      %4129 = vmatprep.subr.mxu0 0.0
      %4130 = vmatpush1.msra.mxu0 0.0
      %4131 = vmatprep.subr.mxu0 0.0
      %4132 = vmatpush1.msra.mxu0 0.0
      %4133 = vmatprep.subr.mxu0 0.0
      %4134 = vmatpush1.msra.mxu0 0.0
      %4135 = vmatprep.subr.mxu0 0.0
      %4136 = vmatpush1.msra.mxu0 0.0
      %4137 = vmatprep.subr.mxu0 0.0
      %4138 = vmatpush1.msra.mxu0 0.0
      %4139 = vmatprep.subr.mxu0 0.0
      %4140 = vmatpush1.msra.mxu0 0.0
      %4141 = vmatprep.subr.mxu0 0.0
      %4142 = vmatpush1.msra.mxu0 0.0
      %4143 = vmatprep.subr.mxu0 0.0
      %4144 = vmatpush1.msra.mxu0 0.0
      %4145 = vmatprep.subr.mxu0 0.0
      %4146 = vmatpush1.msra.mxu0 0.0
      %4147 = vmatprep.subr.mxu0 0.0
      %4148 = vmatpush1.msra.mxu0 0.0
      %4149 = vmatprep.subr.mxu0 0.0
      %4150 = vmatpush1.msra.mxu0 0.0
      %4151 = vmatprep.subr.mxu0 0.0
      %4152 = vmatpush1.msra.mxu0 0.0
      %4153 = vmatprep.subr.mxu0 0.0
      %4154 = vmatpush1.msra.mxu0 0.0
      %4155 = vmatprep.subr.mxu0 0.0
      %4156 = vmatpush1.msra.mxu0 0.0
      %4157 = vmatprep.subr.mxu0 0.0
      %4158 = vmatpush1.msra.mxu0 0.0
      %4159 = vmatprep.subr.mxu0 0.0
      %4160 = vmatpush1.msra.mxu0 0.0
      %4161 = vmatprep.subr.mxu0 0.0
      %4162 = vmatpush1.msra.mxu0 0.0
      %4163 = vmatprep.subr.mxu0 0.0
      %4164 = vmatpush1.msra.mxu0 0.0
      %4165 = vmatprep.subr.mxu0 0.0
      %4166 = vmatpush1.msra.mxu0 0.0
      %4167 = vmatprep.subr.mxu0 0.0
      %4168 = vmatpush1.msra.mxu0 0.0
      %4169 = vmatprep.subr.mxu0 0.0
      %4170 = vmatpush1.msra.mxu0 0.0
      %4171 = vmatprep.subr.mxu0 0.0
      %4172 = vmatpush1.msra.mxu0 0.0
      %4173 = vmatprep.subr.mxu0 0.0
      %4174 = vmatpush1.msra.mxu0 0.0
      %4175 = vmatprep.subr.mxu0 0.0
      %4176 = vmatpush1.msra.mxu0 0.0
      %4177 = vmatprep.subr.mxu0 0.0
      %4178 = vmatpush1.msra.mxu0 0.0
      %4179 = vmatprep.subr.mxu0 0.0
      %4180 = vmatpush1.msra.mxu0 0.0
      %4181 = vmatprep.mubr.f32.mxu0 0.0
      %4182 = vmatmul.mubr.f32.gmra.mrb[0].mxu0 %v4103
      %v4183 = vpop.f32.mrb[0].mxu0
      %v4184 = vadd.f32 %v4079, %v4183
      %v4185 = vpop.f32.mrb[0].mxu0
      %4186 = vmatprep.mubr.f32.mxu0 0.0
      %4187 = vmatmul.mubr.f32.gmra.mrb[0].mxu0 %v4106
      %v4188 = vpop.f32.mrb[0].mxu0
      %v4189 = vadd.f32 %v4084, %v4188
      %v4190 = vpop.f32.mrb[0].mxu0
      %4191 = vmatprep.mubr.f32.mxu0 0.0
      %4192 = vmatmul.mubr.f32.gmra.mrb[0].mxu0 %v4109
      %v4193 = vpop.f32.mrb[0].mxu0
      %v4194 = vadd.f32 %v4089, %v4193
      %v4195 = vpop.f32.mrb[0].mxu0
      %4196 = vmatprep.mubr.f32.mxu0 0.0
      %4197 = vmatmul.mubr.f32.gmra.mrb[0].mxu0 %v4112
      %v4198 = vpop.f32.mrb[0].mxu0
      %v4199 = vadd.f32 %v4094, %v4198
      %v4200 = vpop.f32.mrb[0].mxu0
      %4201 = vmatprep.mubr.f32.mxu0 0.0
      %4202 = vmatmul.mubr.f32.gmra.mrb[0].mxu0 %v4115
      %v4203 = vpop.f32.mrb[0].mxu0
      %v4204 = vadd.f32 %v4099, %v4203
      %v4205 = vpop.f32.mrb[0].mxu0
      %4206 = vdwg.mxu0
      %v4207 = vld [vmem:[%s6] sm:$0x1]
      %v4209 = vlaneseq
      %v4210 = vshrl.u32 %v4209, 7
      %v4211 = vsub.s32 0, %v4210
      %v4212 = vrot.slane %v4207, %v4211
      %v4214 = vadd.f32 %v4184, %v4212
      %v4215 = vadd.f32 %v4189, %v4212
      %v4216 = vadd.f32 %v4194, %v4212
      %v4217 = vadd.f32 %v4199, %v4212
      %v4218 = vadd.f32 %v4204, %v4212
      %v4219 = vmax.f32 %v4214, 0.0
      %v4220 = vmax.f32 %v4215, 0.0
      %v4221 = vmax.f32 %v4216, 0.0
      %v4222 = vmax.f32 %v4217, 0.0
      %v4223 = vmax.f32 %v4218, 0.0
      %v4224 = vld [vmem:[%s912] sm:$0xff]
      %v4225 = vld [vmem:[%s912 + $0x8] sm:$0xff]
      %v4226 = vld [vmem:[%s912 + $0x10] sm:$0xff]
      %v4227 = vld [vmem:[%s912 + $0x18] sm:$0xff]
      %v4228 = vld [vmem:[%s917] sm:$0x1]
      %v4230 = vlaneseq
      %v4231 = vshrl.u32 %v4230, 7
      %v4232 = vsub.s32 0, %v4231
      %v4233 = vrot.slane %v4228, %v4232
      %v4236 = vsel %vm684, %v4219, 0
      %v4239 = vsel %vm684, %v4220, 0
      %v4242 = vsel %vm684, %v4221, 0
      %v4245 = vsel %vm684, %v4222, 0
      %v4248 = vsel %vm684, %v4223, 0
      %4250 = vmatprep.subr.mxu0 0.0
      %4251 = vmatpush1.msra.mxu0 %v4224
      %4252 = vmatprep.subr.mxu0 0.0
      %4253 = vmatpush1.msra.mxu0 %v4225
      %4254 = vmatprep.subr.mxu0 0.0
      %4255 = vmatpush1.msra.mxu0 %v4226
      %4256 = vmatprep.subr.mxu0 0.0
      %4257 = vmatpush1.msra.mxu0 %v4227
      %4258 = vmatprep.subr.mxu0 0.0
      %4259 = vmatpush1.msra.mxu0 0.0
      %4260 = vmatprep.subr.mxu0 0.0
      %4261 = vmatpush1.msra.mxu0 0.0
      %4262 = vmatprep.subr.mxu0 0.0
      %4263 = vmatpush1.msra.mxu0 0.0
      %4264 = vmatprep.subr.mxu0 0.0
      %4265 = vmatpush1.msra.mxu0 0.0
      %4266 = vmatprep.subr.mxu0 0.0
      %4267 = vmatpush1.msra.mxu0 0.0
      %4268 = vmatprep.subr.mxu0 0.0
      %4269 = vmatpush1.msra.mxu0 0.0
      %4270 = vmatprep.subr.mxu0 0.0
      %4271 = vmatpush1.msra.mxu0 0.0
      %4272 = vmatprep.subr.mxu0 0.0
      %4273 = vmatpush1.msra.mxu0 0.0
      %4274 = vmatprep.subr.mxu0 0.0
      %4275 = vmatpush1.msra.mxu0 0.0
      %4276 = vmatprep.subr.mxu0 0.0
      %4277 = vmatpush1.msra.mxu0 0.0
      %4278 = vmatprep.subr.mxu0 0.0
      %4279 = vmatpush1.msra.mxu0 0.0
      %4280 = vmatprep.subr.mxu0 0.0
      %4281 = vmatpush1.msra.mxu0 0.0
      %4282 = vmatprep.subr.mxu0 0.0
      %4283 = vmatpush1.msra.mxu0 0.0
      %4284 = vmatprep.subr.mxu0 0.0
      %4285 = vmatpush1.msra.mxu0 0.0
      %4286 = vmatprep.subr.mxu0 0.0
      %4287 = vmatpush1.msra.mxu0 0.0
      %4288 = vmatprep.subr.mxu0 0.0
      %4289 = vmatpush1.msra.mxu0 0.0
      %4290 = vmatprep.subr.mxu0 0.0
      %4291 = vmatpush1.msra.mxu0 0.0
      %4292 = vmatprep.subr.mxu0 0.0
      %4293 = vmatpush1.msra.mxu0 0.0
      %4294 = vmatprep.subr.mxu0 0.0
      %4295 = vmatpush1.msra.mxu0 0.0
      %4296 = vmatprep.subr.mxu0 0.0
      %4297 = vmatpush1.msra.mxu0 0.0
      %4298 = vmatprep.subr.mxu0 0.0
      %4299 = vmatpush1.msra.mxu0 0.0
      %4300 = vmatprep.subr.mxu0 0.0
      %4301 = vmatpush1.msra.mxu0 0.0
      %4302 = vmatprep.subr.mxu0 0.0
      %4303 = vmatpush1.msra.mxu0 0.0
      %4304 = vmatprep.subr.mxu0 0.0
      %4305 = vmatpush1.msra.mxu0 0.0
      %4306 = vmatprep.subr.mxu0 0.0
      %4307 = vmatpush1.msra.mxu0 0.0
      %4308 = vmatprep.subr.mxu0 0.0
      %4309 = vmatpush1.msra.mxu0 0.0
      %4310 = vmatprep.subr.mxu0 0.0
      %4311 = vmatpush1.msra.mxu0 0.0
      %4312 = vmatprep.subr.mxu0 0.0
      %4313 = vmatpush1.msra.mxu0 0.0
      %4314 = vmatprep.mubr.f32.mxu0 0.0
      %4315 = vmatmul.mubr.f32.gmra.mrb[0].mxu0 %v4236
      %v4316 = vpop.f32.mrb[0].mxu0
      %v4317 = vadd.f32 %v4233, %v4316
      %v4318 = vpop.f32.mrb[0].mxu0
      %4319 = vmatprep.mubr.f32.mxu0 0.0
      %4320 = vmatmul.mubr.f32.gmra.mrb[0].mxu0 %v4239
      %v4321 = vpop.f32.mrb[0].mxu0
      %v4322 = vadd.f32 %v4233, %v4321
      %v4323 = vpop.f32.mrb[0].mxu0
      %4324 = vmatprep.mubr.f32.mxu0 0.0
      %4325 = vmatmul.mubr.f32.gmra.mrb[0].mxu0 %v4242
      %v4326 = vpop.f32.mrb[0].mxu0
      %v4327 = vadd.f32 %v4233, %v4326
      %v4328 = vpop.f32.mrb[0].mxu0
      %4329 = vmatprep.mubr.f32.mxu0 0.0
      %4330 = vmatmul.mubr.f32.gmra.mrb[0].mxu0 %v4245
      %v4331 = vpop.f32.mrb[0].mxu0
      %v4332 = vadd.f32 %v4233, %v4331
      %v4333 = vpop.f32.mrb[0].mxu0
      %4334 = vmatprep.mubr.f32.mxu0 0.0
      %4335 = vmatmul.mubr.f32.gmra.mrb[0].mxu0 %v4248
      %v4336 = vpop.f32.mrb[0].mxu0
      %v4337 = vadd.f32 %v4233, %v4336
      %v4338 = vpop.f32.mrb[0].mxu0
      %4339 = vdwg.mxu0
      %v4340 = vmax.f32 %v4317, 0.0
      %v4341 = vmax.f32 %v4322, 0.0
      %v4342 = vmax.f32 %v4327, 0.0
      %v4343 = vmax.f32 %v4332, 0.0
      %v4344 = vmax.f32 %v4337, 0.0
      %v4345 = vld [vmem:[%s1035] sm:$0xff]
      %v4346 = vld [vmem:[%s1035 + $0x8] sm:$0xff]
      %v4347 = vld [vmem:[%s1035 + $0x10] sm:$0xff]
      %v4348 = vld [vmem:[%s1035 + $0x18] sm:$0xff]
      %v4349 = vld [vmem:[%s1040] sm:$0x1]
      %v4351 = vlaneseq
      %v4352 = vshrl.u32 %v4351, 7
      %v4353 = vsub.s32 0, %v4352
      %v4354 = vrot.slane %v4349, %v4353
      %v4357 = vsel %vm684, %v4340, 0
      %v4360 = vsel %vm684, %v4341, 0
      %v4363 = vsel %vm684, %v4342, 0
      %v4366 = vsel %vm684, %v4343, 0
      %v4369 = vsel %vm684, %v4344, 0
      %4371 = vmatprep.subr.mxu0 0.0
      %4372 = vmatpush1.msra.mxu0 %v4345
      %4373 = vmatprep.subr.mxu0 0.0
      %4374 = vmatpush1.msra.mxu0 %v4346
      %4375 = vmatprep.subr.mxu0 0.0
      %4376 = vmatpush1.msra.mxu0 %v4347
      %4377 = vmatprep.subr.mxu0 0.0
      %4378 = vmatpush1.msra.mxu0 %v4348
      %4379 = vmatprep.subr.mxu0 0.0
      %4380 = vmatpush1.msra.mxu0 0.0
      %4381 = vmatprep.subr.mxu0 0.0
      %4382 = vmatpush1.msra.mxu0 0.0
      %4383 = vmatprep.subr.mxu0 0.0
      %4384 = vmatpush1.msra.mxu0 0.0
      %4385 = vmatprep.subr.mxu0 0.0
      %4386 = vmatpush1.msra.mxu0 0.0
      %4387 = vmatprep.subr.mxu0 0.0
      %4388 = vmatpush1.msra.mxu0 0.0
      %4389 = vmatprep.subr.mxu0 0.0
      %4390 = vmatpush1.msra.mxu0 0.0
      %4391 = vmatprep.subr.mxu0 0.0
      %4392 = vmatpush1.msra.mxu0 0.0
      %4393 = vmatprep.subr.mxu0 0.0
      %4394 = vmatpush1.msra.mxu0 0.0
      %4395 = vmatprep.subr.mxu0 0.0
      %4396 = vmatpush1.msra.mxu0 0.0
      %4397 = vmatprep.subr.mxu0 0.0
      %4398 = vmatpush1.msra.mxu0 0.0
      %4399 = vmatprep.subr.mxu0 0.0
      %4400 = vmatpush1.msra.mxu0 0.0
      %4401 = vmatprep.subr.mxu0 0.0
      %4402 = vmatpush1.msra.mxu0 0.0
      %4403 = vmatprep.subr.mxu0 0.0
      %4404 = vmatpush1.msra.mxu0 0.0
      %4405 = vmatprep.subr.mxu0 0.0
      %4406 = vmatpush1.msra.mxu0 0.0
      %4407 = vmatprep.subr.mxu0 0.0
      %4408 = vmatpush1.msra.mxu0 0.0
      %4409 = vmatprep.subr.mxu0 0.0
      %4410 = vmatpush1.msra.mxu0 0.0
      %4411 = vmatprep.subr.mxu0 0.0
      %4412 = vmatpush1.msra.mxu0 0.0
      %4413 = vmatprep.subr.mxu0 0.0
      %4414 = vmatpush1.msra.mxu0 0.0
      %4415 = vmatprep.subr.mxu0 0.0
      %4416 = vmatpush1.msra.mxu0 0.0
      %4417 = vmatprep.subr.mxu0 0.0
      %4418 = vmatpush1.msra.mxu0 0.0
      %4419 = vmatprep.subr.mxu0 0.0
      %4420 = vmatpush1.msra.mxu0 0.0
      %4421 = vmatprep.subr.mxu0 0.0
      %4422 = vmatpush1.msra.mxu0 0.0
      %4423 = vmatprep.subr.mxu0 0.0
      %4424 = vmatpush1.msra.mxu0 0.0
      %4425 = vmatprep.subr.mxu0 0.0
      %4426 = vmatpush1.msra.mxu0 0.0
      %4427 = vmatprep.subr.mxu0 0.0
      %4428 = vmatpush1.msra.mxu0 0.0
      %4429 = vmatprep.subr.mxu0 0.0
      %4430 = vmatpush1.msra.mxu0 0.0
      %4431 = vmatprep.subr.mxu0 0.0
      %4432 = vmatpush1.msra.mxu0 0.0
      %4433 = vmatprep.subr.mxu0 0.0
      %4434 = vmatpush1.msra.mxu0 0.0
      %4435 = vmatprep.mubr.f32.mxu0 0.0
      %4436 = vmatmul.mubr.f32.gmra.mrb[0].mxu0 %v4357
      %v4437 = vpop.f32.mrb[0].mxu0
      %v4438 = vadd.f32 %v4354, %v4437
      %v4439 = vpop.f32.mrb[0].mxu0
      %4440 = vmatprep.mubr.f32.mxu0 0.0
      %4441 = vmatmul.mubr.f32.gmra.mrb[0].mxu0 %v4360
      %v4442 = vpop.f32.mrb[0].mxu0
      %v4443 = vadd.f32 %v4354, %v4442
      %v4444 = vpop.f32.mrb[0].mxu0
      %4445 = vmatprep.mubr.f32.mxu0 0.0
      %4446 = vmatmul.mubr.f32.gmra.mrb[0].mxu0 %v4363
      %v4447 = vpop.f32.mrb[0].mxu0
      %v4448 = vadd.f32 %v4354, %v4447
      %v4449 = vpop.f32.mrb[0].mxu0
      %4450 = vmatprep.mubr.f32.mxu0 0.0
      %4451 = vmatmul.mubr.f32.gmra.mrb[0].mxu0 %v4366
      %v4452 = vpop.f32.mrb[0].mxu0
      %v4453 = vadd.f32 %v4354, %v4452
      %v4454 = vpop.f32.mrb[0].mxu0
      %4455 = vmatprep.mubr.f32.mxu0 0.0
      %4456 = vmatmul.mubr.f32.gmra.mrb[0].mxu0 %v4369
      %v4457 = vpop.f32.mrb[0].mxu0
      %v4458 = vadd.f32 %v4354, %v4457
      %v4459 = vpop.f32.mrb[0].mxu0
      %4460 = vdwg.mxu0
      %v4461 = vmax.f32 %v4438, 0.0
      %v4462 = vmax.f32 %v4443, 0.0
      %v4463 = vmax.f32 %v4448, 0.0
      %v4464 = vmax.f32 %v4453, 0.0
      %v4465 = vmax.f32 %v4458, 0.0
      %v4466 = vld [vmem:[%s7] sm:$0xff]
      %v4467 = vld [vmem:[%s7 + $0x8] sm:$0xff]
      %v4468 = vld [vmem:[%s7 + $0x10] sm:$0xff]
      %v4469 = vld [vmem:[%s7 + $0x18] sm:$0xff]
      %v4471 = vsel %vm684, %v4461, 0
      %v4474 = vsel %vm684, %v4462, 0
      %v4477 = vsel %vm684, %v4463, 0
      %v4480 = vsel %vm684, %v4464, 0
      %v4483 = vsel %vm684, %v4465, 0
      %4485 = vmatprep.subr.mxu0 0.0
      %4486 = vmatpush1.msra.mxu0 %v4466
      %4487 = vmatprep.subr.mxu0 0.0
      %4488 = vmatpush1.msra.mxu0 %v4467
      %4489 = vmatprep.subr.mxu0 0.0
      %4490 = vmatpush1.msra.mxu0 %v4468
      %4491 = vmatprep.subr.mxu0 0.0
      %4492 = vmatpush1.msra.mxu0 %v4469
      %4493 = vmatprep.subr.mxu0 0.0
      %4494 = vmatpush1.msra.mxu0 0.0
      %4495 = vmatprep.subr.mxu0 0.0
      %4496 = vmatpush1.msra.mxu0 0.0
      %4497 = vmatprep.subr.mxu0 0.0
      %4498 = vmatpush1.msra.mxu0 0.0
      %4499 = vmatprep.subr.mxu0 0.0
      %4500 = vmatpush1.msra.mxu0 0.0
      %4501 = vmatprep.subr.mxu0 0.0
      %4502 = vmatpush1.msra.mxu0 0.0
      %4503 = vmatprep.subr.mxu0 0.0
      %4504 = vmatpush1.msra.mxu0 0.0
      %4505 = vmatprep.subr.mxu0 0.0
      %4506 = vmatpush1.msra.mxu0 0.0
      %4507 = vmatprep.subr.mxu0 0.0
      %4508 = vmatpush1.msra.mxu0 0.0
      %4509 = vmatprep.subr.mxu0 0.0
      %4510 = vmatpush1.msra.mxu0 0.0
      %4511 = vmatprep.subr.mxu0 0.0
      %4512 = vmatpush1.msra.mxu0 0.0
      %4513 = vmatprep.subr.mxu0 0.0
      %4514 = vmatpush1.msra.mxu0 0.0
      %4515 = vmatprep.subr.mxu0 0.0
      %4516 = vmatpush1.msra.mxu0 0.0
      %4517 = vmatprep.subr.mxu0 0.0
      %4518 = vmatpush1.msra.mxu0 0.0
      %4519 = vmatprep.subr.mxu0 0.0
      %4520 = vmatpush1.msra.mxu0 0.0
      %4521 = vmatprep.subr.mxu0 0.0
      %4522 = vmatpush1.msra.mxu0 0.0
      %4523 = vmatprep.subr.mxu0 0.0
      %4524 = vmatpush1.msra.mxu0 0.0
      %4525 = vmatprep.subr.mxu0 0.0
      %4526 = vmatpush1.msra.mxu0 0.0
      %4527 = vmatprep.subr.mxu0 0.0
      %4528 = vmatpush1.msra.mxu0 0.0
      %4529 = vmatprep.subr.mxu0 0.0
      %4530 = vmatpush1.msra.mxu0 0.0
      %4531 = vmatprep.subr.mxu0 0.0
      %4532 = vmatpush1.msra.mxu0 0.0
      %4533 = vmatprep.subr.mxu0 0.0
      %4534 = vmatpush1.msra.mxu0 0.0
      %4535 = vmatprep.subr.mxu0 0.0
      %4536 = vmatpush1.msra.mxu0 0.0
      %4537 = vmatprep.subr.mxu0 0.0
      %4538 = vmatpush1.msra.mxu0 0.0
      %4539 = vmatprep.subr.mxu0 0.0
      %4540 = vmatpush1.msra.mxu0 0.0
      %4541 = vmatprep.subr.mxu0 0.0
      %4542 = vmatpush1.msra.mxu0 0.0
      %4543 = vmatprep.subr.mxu0 0.0
      %4544 = vmatpush1.msra.mxu0 0.0
      %4545 = vmatprep.subr.mxu0 0.0
      %4546 = vmatpush1.msra.mxu0 0.0
      %4547 = vmatprep.subr.mxu0 0.0
      %4548 = vmatpush1.msra.mxu0 0.0
      %4549 = vmatprep.mubr.f32.mxu0 0.0
      %4550 = vmatmul.mubr.f32.gmra.mrb[0].mxu0 %v4471
      %v4551 = vpop.f32.mrb[0].mxu0
      %v4552 = vadd.f32 0.0, %v4551
      %v4553 = vpop.f32.mrb[0].mxu0
      %4554 = vmatprep.mubr.f32.mxu0 0.0
      %4555 = vmatmul.mubr.f32.gmra.mrb[0].mxu0 %v4474
      %v4556 = vpop.f32.mrb[0].mxu0
      %v4557 = vadd.f32 0.0, %v4556
      %v4558 = vpop.f32.mrb[0].mxu0
      %4559 = vmatprep.mubr.f32.mxu0 0.0
      %4560 = vmatmul.mubr.f32.gmra.mrb[0].mxu0 %v4477
      %v4561 = vpop.f32.mrb[0].mxu0
      %v4562 = vadd.f32 0.0, %v4561
      %v4563 = vpop.f32.mrb[0].mxu0
      %4564 = vmatprep.mubr.f32.mxu0 0.0
      %4565 = vmatmul.mubr.f32.gmra.mrb[0].mxu0 %v4480
      %v4566 = vpop.f32.mrb[0].mxu0
      %v4567 = vadd.f32 0.0, %v4566
      %v4568 = vpop.f32.mrb[0].mxu0
      %4569 = vmatprep.mubr.f32.mxu0 0.0
      %4570 = vmatmul.mubr.f32.gmra.mrb[0].mxu0 %v4483
      %v4571 = vpop.f32.mrb[0].mxu0
      %v4572 = vadd.f32 0.0, %v4571
      %v4573 = vpop.f32.mrb[0].mxu0
      %4574 = vdwg.mxu0
      %4575 = vmatprep.subr.mxu0 0.0
      %4576 = vmatpush1.msra.mxu0 %v4552
      %4577 = vmatprep.subr.mxu0 0.0
      %4578 = vmatpush1.msra.mxu0 %v4557
      %4579 = vmatprep.subr.mxu0 0.0
      %4580 = vmatpush1.msra.mxu0 %v4562
      %4581 = vmatprep.subr.mxu0 0.0
      %4582 = vmatpush1.msra.mxu0 %v4567
      %4583 = vmatprep.subr.mxu0 0.0
      %4584 = vmatpush1.msra.mxu0 %v4572
      %4585 = vmatprep.subr.mxu0 0.0
      %4586 = vmatpush1.msra.mxu0 0.0
      %4587 = vmatprep.subr.mxu0 0.0
      %4588 = vmatpush1.msra.mxu0 0.0
      %4589 = vmatprep.subr.mxu0 0.0
      %4590 = vmatpush1.msra.mxu0 0.0
      %4591 = vmatprep.subr.mxu0 0.0
      %4592 = vmatpush1.msra.mxu0 0.0
      %4593 = vmatprep.subr.mxu0 0.0
      %4594 = vmatpush1.msra.mxu0 0.0
      %4595 = vmatprep.subr.mxu0 0.0
      %4596 = vmatpush1.msra.mxu0 0.0
      %4597 = vmatprep.subr.mxu0 0.0
      %4598 = vmatpush1.msra.mxu0 0.0
      %4599 = vmatprep.subr.mxu0 0.0
      %4600 = vmatpush1.msra.mxu0 0.0
      %4601 = vmatprep.subr.mxu0 0.0
      %4602 = vmatpush1.msra.mxu0 0.0
      %4603 = vmatprep.subr.mxu0 0.0
      %4604 = vmatpush1.msra.mxu0 0.0
      %4605 = vmatprep.subr.mxu0 0.0
      %4606 = vmatpush1.msra.mxu0 0.0
      %4607 = vmatprep.subr.mxu0 0.0
      %4608 = vmatpush1.msra.mxu0 0.0
      %4609 = vmatprep.subr.mxu0 0.0
      %4610 = vmatpush1.msra.mxu0 0.0
      %4611 = vmatprep.subr.mxu0 0.0
      %4612 = vmatpush1.msra.mxu0 0.0
      %4613 = vmatprep.subr.mxu0 0.0
      %4614 = vmatpush1.msra.mxu0 0.0
      %4615 = vmatprep.subr.mxu0 0.0
      %4616 = vmatpush1.msra.mxu0 0.0
      %4617 = vmatprep.subr.mxu0 0.0
      %4618 = vmatpush1.msra.mxu0 0.0
      %4619 = vmatprep.subr.mxu0 0.0
      %4620 = vmatpush1.msra.mxu0 0.0
      %4621 = vmatprep.subr.mxu0 0.0
      %4622 = vmatpush1.msra.mxu0 0.0
      %4623 = vmatprep.subr.mxu0 0.0
      %4624 = vmatpush1.msra.mxu0 0.0
      %4625 = vmatprep.subr.mxu0 0.0
      %4626 = vmatpush1.msra.mxu0 0.0
      %4627 = vmatprep.subr.mxu0 0.0
      %4628 = vmatpush1.msra.mxu0 0.0
      %4629 = vmatprep.subr.mxu0 0.0
      %4630 = vmatpush1.msra.mxu0 0.0
      %4631 = vmatprep.subr.mxu0 0.0
      %4632 = vmatpush1.msra.mxu0 0.0
      %4633 = vmatprep.subr.mxu0 0.0
      %4634 = vmatpush1.msra.mxu0 0.0
      %4635 = vmatprep.subr.mxu0 0.0
      %4636 = vmatpush1.msra.mxu0 0.0
      %4637 = vmatprep.subr.mxu0 0.0
      %4638 = vmatpush1.msra.mxu0 0.0
      %4639 = vmatprep.mubr.f32.mxu0 0.0
      %4640 = vmatmul.mubr.f32.gmra.mrb[0].mxu0 %v1269
      %v4641 = vpop.f32.mrb[0].mxu0
      %v4642 = vadd.f32 0.0, %v4641
      %v4643 = vpop.f32.mrb[0].mxu0
      %4644 = vmatprep.mubr.f32.mxu0 0.0
      %4645 = vmatmul.mubr.f32.gmra.mrb[0].mxu0 %v1272
      %v4646 = vpop.f32.mrb[0].mxu0
      %v4647 = vadd.f32 0.0, %v4646
      %v4648 = vpop.f32.mrb[0].mxu0
      %4649 = vmatprep.mubr.f32.mxu0 0.0
      %4650 = vmatmul.mubr.f32.gmra.mrb[0].mxu0 %v1275
      %v4651 = vpop.f32.mrb[0].mxu0
      %v4652 = vadd.f32 0.0, %v4651
      %v4653 = vpop.f32.mrb[0].mxu0
      %4654 = vdwg.mxu0
      %v4655 = vadd.f32 %v416, %v4642
      %v4656 = vadd.f32 %v417, %v4647
      %v4657 = vadd.f32 %v418, %v4652
      %v4658 = vld [vmem:[%s1360] sm:$0xff]
      %v4659 = vld [vmem:[%s1360 + $0x8] sm:$0xff]
      %v4660 = vld [vmem:[%s1360 + $0x10] sm:$0xff]
      %v4661 = vld [vmem:[%s1360 + $0x18] sm:$0xff]
      %v4662 = vld [vmem:[%s1365] sm:$0xff]
      %v4663 = vld [vmem:[%s1365 + $0x8] sm:$0xff]
      %v4664 = vld [vmem:[%s1365 + $0x10] sm:$0xff]
      %v4665 = vld [vmem:[%s1365 + $0x18] sm:$0xff]
      %v4667 = vsel %vm684, %v3966, 0
      %v4670 = vsel %vm684, %v3971, 0
      %v4673 = vsel %vm684, %v3976, 0
      %v4676 = vsel %vm684, %v3981, 0
      %v4679 = vsel %vm684, %v3986, 0
      %4681 = vmatprep.subr.mxu0 0.0
      %4682 = vmatpush1.msra.mxu0 %v4662
      %4683 = vmatprep.subr.mxu0 0.0
      %4684 = vmatpush1.msra.mxu0 %v4663
      %4685 = vmatprep.subr.mxu0 0.0
      %4686 = vmatpush1.msra.mxu0 %v4664
      %4687 = vmatprep.subr.mxu0 0.0
      %4688 = vmatpush1.msra.mxu0 %v4665
      %4689 = vmatprep.subr.mxu0 0.0
      %4690 = vmatpush1.msra.mxu0 0.0
      %4691 = vmatprep.subr.mxu0 0.0
      %4692 = vmatpush1.msra.mxu0 0.0
      %4693 = vmatprep.subr.mxu0 0.0
      %4694 = vmatpush1.msra.mxu0 0.0
      %4695 = vmatprep.subr.mxu0 0.0
      %4696 = vmatpush1.msra.mxu0 0.0
      %4697 = vmatprep.subr.mxu0 0.0
      %4698 = vmatpush1.msra.mxu0 0.0
      %4699 = vmatprep.subr.mxu0 0.0
      %4700 = vmatpush1.msra.mxu0 0.0
      %4701 = vmatprep.subr.mxu0 0.0
      %4702 = vmatpush1.msra.mxu0 0.0
      %4703 = vmatprep.subr.mxu0 0.0
      %4704 = vmatpush1.msra.mxu0 0.0
      %4705 = vmatprep.subr.mxu0 0.0
      %4706 = vmatpush1.msra.mxu0 0.0
      %4707 = vmatprep.subr.mxu0 0.0
      %4708 = vmatpush1.msra.mxu0 0.0
      %4709 = vmatprep.subr.mxu0 0.0
      %4710 = vmatpush1.msra.mxu0 0.0
      %4711 = vmatprep.subr.mxu0 0.0
      %4712 = vmatpush1.msra.mxu0 0.0
      %4713 = vmatprep.subr.mxu0 0.0
      %4714 = vmatpush1.msra.mxu0 0.0
      %4715 = vmatprep.subr.mxu0 0.0
      %4716 = vmatpush1.msra.mxu0 0.0
      %4717 = vmatprep.subr.mxu0 0.0
      %4718 = vmatpush1.msra.mxu0 0.0
      %4719 = vmatprep.subr.mxu0 0.0
      %4720 = vmatpush1.msra.mxu0 0.0
      %4721 = vmatprep.subr.mxu0 0.0
      %4722 = vmatpush1.msra.mxu0 0.0
      %4723 = vmatprep.subr.mxu0 0.0
      %4724 = vmatpush1.msra.mxu0 0.0
      %4725 = vmatprep.subr.mxu0 0.0
      %4726 = vmatpush1.msra.mxu0 0.0
      %4727 = vmatprep.subr.mxu0 0.0
      %4728 = vmatpush1.msra.mxu0 0.0
      %4729 = vmatprep.subr.mxu0 0.0
      %4730 = vmatpush1.msra.mxu0 0.0
      %4731 = vmatprep.subr.mxu0 0.0
      %4732 = vmatpush1.msra.mxu0 0.0
      %4733 = vmatprep.subr.mxu0 0.0
      %4734 = vmatpush1.msra.mxu0 0.0
      %4735 = vmatprep.subr.mxu0 0.0
      %4736 = vmatpush1.msra.mxu0 0.0
      %4737 = vmatprep.subr.mxu0 0.0
      %4738 = vmatpush1.msra.mxu0 0.0
      %4739 = vmatprep.subr.mxu0 0.0
      %4740 = vmatpush1.msra.mxu0 0.0
      %4741 = vmatprep.subr.mxu0 0.0
      %4742 = vmatpush1.msra.mxu0 0.0
      %4743 = vmatprep.subr.mxu0 0.0
      %4744 = vmatpush1.msra.mxu0 0.0
      %4745 = vmatprep.mubr.f32.mxu0 0.0
      %4746 = vmatmul.mubr.f32.gmra.mrb[0].mxu0 %v4667
      %v4747 = vpop.f32.mrb[0].mxu0
      %v4748 = vadd.f32 0.0, %v4747
      %v4749 = vpop.f32.mrb[0].mxu0
      %4750 = vmatprep.mubr.f32.mxu0 0.0
      %4751 = vmatmul.mubr.f32.gmra.mrb[0].mxu0 %v4670
      %v4752 = vpop.f32.mrb[0].mxu0
      %v4753 = vadd.f32 0.0, %v4752
      %v4754 = vpop.f32.mrb[0].mxu0
      %4755 = vmatprep.mubr.f32.mxu0 0.0
      %4756 = vmatmul.mubr.f32.gmra.mrb[0].mxu0 %v4673
      %v4757 = vpop.f32.mrb[0].mxu0
      %v4758 = vadd.f32 0.0, %v4757
      %v4759 = vpop.f32.mrb[0].mxu0
      %4760 = vmatprep.mubr.f32.mxu0 0.0
      %4761 = vmatmul.mubr.f32.gmra.mrb[0].mxu0 %v4676
      %v4762 = vpop.f32.mrb[0].mxu0
      %v4763 = vadd.f32 0.0, %v4762
      %v4764 = vpop.f32.mrb[0].mxu0
      %4765 = vmatprep.mubr.f32.mxu0 0.0
      %4766 = vmatmul.mubr.f32.gmra.mrb[0].mxu0 %v4679
      %v4767 = vpop.f32.mrb[0].mxu0
      %v4768 = vadd.f32 0.0, %v4767
      %v4769 = vpop.f32.mrb[0].mxu0
      %4770 = vdwg.mxu0
      %v4772 = vsel %vm684, %v3941, 0
      %v4775 = vsel %vm684, %v3946, 0
      %v4778 = vsel %vm684, %v3951, 0
      %v4781 = vsel %vm684, %v3956, 0
      %v4784 = vsel %vm684, %v3961, 0
      %4786 = vmatprep.subr.mxu0 0.0
      %4787 = vmatpush1.msra.mxu0 %v4658
      %4788 = vmatprep.subr.mxu0 0.0
      %4789 = vmatpush1.msra.mxu0 %v4659
      %4790 = vmatprep.subr.mxu0 0.0
      %4791 = vmatpush1.msra.mxu0 %v4660
      %4792 = vmatprep.subr.mxu0 0.0
      %4793 = vmatpush1.msra.mxu0 %v4661
      %4794 = vmatprep.subr.mxu0 0.0
      %4795 = vmatpush1.msra.mxu0 0.0
      %4796 = vmatprep.subr.mxu0 0.0
      %4797 = vmatpush1.msra.mxu0 0.0
      %4798 = vmatprep.subr.mxu0 0.0
      %4799 = vmatpush1.msra.mxu0 0.0
      %4800 = vmatprep.subr.mxu0 0.0
      %4801 = vmatpush1.msra.mxu0 0.0
      %4802 = vmatprep.subr.mxu0 0.0
      %4803 = vmatpush1.msra.mxu0 0.0
      %4804 = vmatprep.subr.mxu0 0.0
      %4805 = vmatpush1.msra.mxu0 0.0
      %4806 = vmatprep.subr.mxu0 0.0
      %4807 = vmatpush1.msra.mxu0 0.0
      %4808 = vmatprep.subr.mxu0 0.0
      %4809 = vmatpush1.msra.mxu0 0.0
      %4810 = vmatprep.subr.mxu0 0.0
      %4811 = vmatpush1.msra.mxu0 0.0
      %4812 = vmatprep.subr.mxu0 0.0
      %4813 = vmatpush1.msra.mxu0 0.0
      %4814 = vmatprep.subr.mxu0 0.0
      %4815 = vmatpush1.msra.mxu0 0.0
      %4816 = vmatprep.subr.mxu0 0.0
      %4817 = vmatpush1.msra.mxu0 0.0
      %4818 = vmatprep.subr.mxu0 0.0
      %4819 = vmatpush1.msra.mxu0 0.0
      %4820 = vmatprep.subr.mxu0 0.0
      %4821 = vmatpush1.msra.mxu0 0.0
      %4822 = vmatprep.subr.mxu0 0.0
      %4823 = vmatpush1.msra.mxu0 0.0
      %4824 = vmatprep.subr.mxu0 0.0
      %4825 = vmatpush1.msra.mxu0 0.0
      %4826 = vmatprep.subr.mxu0 0.0
      %4827 = vmatpush1.msra.mxu0 0.0
      %4828 = vmatprep.subr.mxu0 0.0
      %4829 = vmatpush1.msra.mxu0 0.0
      %4830 = vmatprep.subr.mxu0 0.0
      %4831 = vmatpush1.msra.mxu0 0.0
      %4832 = vmatprep.subr.mxu0 0.0
      %4833 = vmatpush1.msra.mxu0 0.0
      %4834 = vmatprep.subr.mxu0 0.0
      %4835 = vmatpush1.msra.mxu0 0.0
      %4836 = vmatprep.subr.mxu0 0.0
      %4837 = vmatpush1.msra.mxu0 0.0
      %4838 = vmatprep.subr.mxu0 0.0
      %4839 = vmatpush1.msra.mxu0 0.0
      %4840 = vmatprep.subr.mxu0 0.0
      %4841 = vmatpush1.msra.mxu0 0.0
      %4842 = vmatprep.subr.mxu0 0.0
      %4843 = vmatpush1.msra.mxu0 0.0
      %4844 = vmatprep.subr.mxu0 0.0
      %4845 = vmatpush1.msra.mxu0 0.0
      %4846 = vmatprep.subr.mxu0 0.0
      %4847 = vmatpush1.msra.mxu0 0.0
      %4848 = vmatprep.subr.mxu0 0.0
      %4849 = vmatpush1.msra.mxu0 0.0
      %4850 = vmatprep.mubr.f32.mxu0 0.0
      %4851 = vmatmul.mubr.f32.gmra.mrb[0].mxu0 %v4772
      %v4852 = vpop.f32.mrb[0].mxu0
      %v4853 = vadd.f32 %v4748, %v4852
      %v4854 = vpop.f32.mrb[0].mxu0
      %4855 = vmatprep.mubr.f32.mxu0 0.0
      %4856 = vmatmul.mubr.f32.gmra.mrb[0].mxu0 %v4775
      %v4857 = vpop.f32.mrb[0].mxu0
      %v4858 = vadd.f32 %v4753, %v4857
      %v4859 = vpop.f32.mrb[0].mxu0
      %4860 = vmatprep.mubr.f32.mxu0 0.0
      %4861 = vmatmul.mubr.f32.gmra.mrb[0].mxu0 %v4778
      %v4862 = vpop.f32.mrb[0].mxu0
      %v4863 = vadd.f32 %v4758, %v4862
      %v4864 = vpop.f32.mrb[0].mxu0
      %4865 = vmatprep.mubr.f32.mxu0 0.0
      %4866 = vmatmul.mubr.f32.gmra.mrb[0].mxu0 %v4781
      %v4867 = vpop.f32.mrb[0].mxu0
      %v4868 = vadd.f32 %v4763, %v4867
      %v4869 = vpop.f32.mrb[0].mxu0
      %4870 = vmatprep.mubr.f32.mxu0 0.0
      %4871 = vmatmul.mubr.f32.gmra.mrb[0].mxu0 %v4784
      %v4872 = vpop.f32.mrb[0].mxu0
      %v4873 = vadd.f32 %v4768, %v4872
      %v4874 = vpop.f32.mrb[0].mxu0
      %4875 = vdwg.mxu0
      %v4876 = vld [vmem:[%s1580] sm:$0x1]
      %v4878 = vlaneseq
      %v4879 = vshrl.u32 %v4878, 7
      %v4880 = vsub.s32 0, %v4879
      %v4881 = vrot.slane %v4876, %v4880
      %v4883 = vadd.f32 %v4853, %v4881
      %v4884 = vadd.f32 %v4858, %v4881
      %v4885 = vadd.f32 %v4863, %v4881
      %v4886 = vadd.f32 %v4868, %v4881
      %v4887 = vadd.f32 %v4873, %v4881
      %v4888 = vmax.f32 %v4883, 0.0
      %v4889 = vmax.f32 %v4884, 0.0
      %v4890 = vmax.f32 %v4885, 0.0
      %v4891 = vmax.f32 %v4886, 0.0
      %v4892 = vmax.f32 %v4887, 0.0
      %v4893 = vld [vmem:[%s1598] sm:$0xff]
      %v4894 = vld [vmem:[%s1598 + $0x8] sm:$0xff]
      %v4895 = vld [vmem:[%s1598 + $0x10] sm:$0xff]
      %v4896 = vld [vmem:[%s1598 + $0x18] sm:$0xff]
      %v4897 = vld [vmem:[%s1603] sm:$0x1]
      %v4899 = vlaneseq
      %v4900 = vshrl.u32 %v4899, 7
      %v4901 = vsub.s32 0, %v4900
      %v4902 = vrot.slane %v4897, %v4901
      %v4905 = vsel %vm684, %v4888, 0
      %v4908 = vsel %vm684, %v4889, 0
      %v4911 = vsel %vm684, %v4890, 0
      %v4914 = vsel %vm684, %v4891, 0
      %v4917 = vsel %vm684, %v4892, 0
      %4919 = vmatprep.subr.mxu0 0.0
      %4920 = vmatpush1.msra.mxu0 %v4893
      %4921 = vmatprep.subr.mxu0 0.0
      %4922 = vmatpush1.msra.mxu0 %v4894
      %4923 = vmatprep.subr.mxu0 0.0
      %4924 = vmatpush1.msra.mxu0 %v4895
      %4925 = vmatprep.subr.mxu0 0.0
      %4926 = vmatpush1.msra.mxu0 %v4896
      %4927 = vmatprep.subr.mxu0 0.0
      %4928 = vmatpush1.msra.mxu0 0.0
      %4929 = vmatprep.subr.mxu0 0.0
      %4930 = vmatpush1.msra.mxu0 0.0
      %4931 = vmatprep.subr.mxu0 0.0
      %4932 = vmatpush1.msra.mxu0 0.0
      %4933 = vmatprep.subr.mxu0 0.0
      %4934 = vmatpush1.msra.mxu0 0.0
      %4935 = vmatprep.subr.mxu0 0.0
      %4936 = vmatpush1.msra.mxu0 0.0
      %4937 = vmatprep.subr.mxu0 0.0
      %4938 = vmatpush1.msra.mxu0 0.0
      %4939 = vmatprep.subr.mxu0 0.0
      %4940 = vmatpush1.msra.mxu0 0.0
      %4941 = vmatprep.subr.mxu0 0.0
      %4942 = vmatpush1.msra.mxu0 0.0
      %4943 = vmatprep.subr.mxu0 0.0
      %4944 = vmatpush1.msra.mxu0 0.0
      %4945 = vmatprep.subr.mxu0 0.0
      %4946 = vmatpush1.msra.mxu0 0.0
      %4947 = vmatprep.subr.mxu0 0.0
      %4948 = vmatpush1.msra.mxu0 0.0
      %4949 = vmatprep.subr.mxu0 0.0
      %4950 = vmatpush1.msra.mxu0 0.0
      %4951 = vmatprep.subr.mxu0 0.0
      %4952 = vmatpush1.msra.mxu0 0.0
      %4953 = vmatprep.subr.mxu0 0.0
      %4954 = vmatpush1.msra.mxu0 0.0
      %4955 = vmatprep.subr.mxu0 0.0
      %4956 = vmatpush1.msra.mxu0 0.0
      %4957 = vmatprep.subr.mxu0 0.0
      %4958 = vmatpush1.msra.mxu0 0.0
      %4959 = vmatprep.subr.mxu0 0.0
      %4960 = vmatpush1.msra.mxu0 0.0
      %4961 = vmatprep.subr.mxu0 0.0
      %4962 = vmatpush1.msra.mxu0 0.0
      %4963 = vmatprep.subr.mxu0 0.0
      %4964 = vmatpush1.msra.mxu0 0.0
      %4965 = vmatprep.subr.mxu0 0.0
      %4966 = vmatpush1.msra.mxu0 0.0
      %4967 = vmatprep.subr.mxu0 0.0
      %4968 = vmatpush1.msra.mxu0 0.0
      %4969 = vmatprep.subr.mxu0 0.0
      %4970 = vmatpush1.msra.mxu0 0.0
      %4971 = vmatprep.subr.mxu0 0.0
      %4972 = vmatpush1.msra.mxu0 0.0
      %4973 = vmatprep.subr.mxu0 0.0
      %4974 = vmatpush1.msra.mxu0 0.0
      %4975 = vmatprep.subr.mxu0 0.0
      %4976 = vmatpush1.msra.mxu0 0.0
      %4977 = vmatprep.subr.mxu0 0.0
      %4978 = vmatpush1.msra.mxu0 0.0
      %4979 = vmatprep.subr.mxu0 0.0
      %4980 = vmatpush1.msra.mxu0 0.0
      %4981 = vmatprep.subr.mxu0 0.0
      %4982 = vmatpush1.msra.mxu0 0.0
      %4983 = vmatprep.mubr.f32.mxu0 0.0
      %4984 = vmatmul.mubr.f32.gmra.mrb[0].mxu0 %v4905
      %v4985 = vpop.f32.mrb[0].mxu0
      %v4986 = vadd.f32 %v4902, %v4985
      %v4987 = vpop.f32.mrb[0].mxu0
      %4988 = vmatprep.mubr.f32.mxu0 0.0
      %4989 = vmatmul.mubr.f32.gmra.mrb[0].mxu0 %v4908
      %v4990 = vpop.f32.mrb[0].mxu0
      %v4991 = vadd.f32 %v4902, %v4990
      %v4992 = vpop.f32.mrb[0].mxu0
      %4993 = vmatprep.mubr.f32.mxu0 0.0
      %4994 = vmatmul.mubr.f32.gmra.mrb[0].mxu0 %v4911
      %v4995 = vpop.f32.mrb[0].mxu0
      %v4996 = vadd.f32 %v4902, %v4995
      %v4997 = vpop.f32.mrb[0].mxu0
      %4998 = vmatprep.mubr.f32.mxu0 0.0
      %4999 = vmatmul.mubr.f32.gmra.mrb[0].mxu0 %v4914
      %v5000 = vpop.f32.mrb[0].mxu0
      %v5001 = vadd.f32 %v4902, %v5000
      %v5002 = vpop.f32.mrb[0].mxu0
      %5003 = vmatprep.mubr.f32.mxu0 0.0
      %5004 = vmatmul.mubr.f32.gmra.mrb[0].mxu0 %v4917
      %v5005 = vpop.f32.mrb[0].mxu0
      %v5006 = vadd.f32 %v4902, %v5005
      %v5007 = vpop.f32.mrb[0].mxu0
      %5008 = vdwg.mxu0
      %v5009 = vmax.f32 %v4986, 0.0
      %v5010 = vmax.f32 %v4991, 0.0
      %v5011 = vmax.f32 %v4996, 0.0
      %v5012 = vmax.f32 %v5001, 0.0
      %v5013 = vmax.f32 %v5006, 0.0
      %v5014 = vld [vmem:[%s1721] sm:$0xff]
      %v5015 = vld [vmem:[%s1721 + $0x8] sm:$0xff]
      %v5016 = vld [vmem:[%s1721 + $0x10] sm:$0xff]
      %v5017 = vld [vmem:[%s1721 + $0x18] sm:$0xff]
      %v5018 = vld [vmem:[%s1726] sm:$0x1]
      %v5020 = vlaneseq
      %v5021 = vshrl.u32 %v5020, 7
      %v5022 = vsub.s32 0, %v5021
      %v5023 = vrot.slane %v5018, %v5022
      %v5026 = vsel %vm684, %v5009, 0
      %v5029 = vsel %vm684, %v5010, 0
      %v5032 = vsel %vm684, %v5011, 0
      %v5035 = vsel %vm684, %v5012, 0
      %v5038 = vsel %vm684, %v5013, 0
      %5040 = vmatprep.subr.mxu0 0.0
      %5041 = vmatpush1.msra.mxu0 %v5014
      %5042 = vmatprep.subr.mxu0 0.0
      %5043 = vmatpush1.msra.mxu0 %v5015
      %5044 = vmatprep.subr.mxu0 0.0
      %5045 = vmatpush1.msra.mxu0 %v5016
      %5046 = vmatprep.subr.mxu0 0.0
      %5047 = vmatpush1.msra.mxu0 %v5017
      %5048 = vmatprep.subr.mxu0 0.0
      %5049 = vmatpush1.msra.mxu0 0.0
      %5050 = vmatprep.subr.mxu0 0.0
      %5051 = vmatpush1.msra.mxu0 0.0
      %5052 = vmatprep.subr.mxu0 0.0
      %5053 = vmatpush1.msra.mxu0 0.0
      %5054 = vmatprep.subr.mxu0 0.0
      %5055 = vmatpush1.msra.mxu0 0.0
      %5056 = vmatprep.subr.mxu0 0.0
      %5057 = vmatpush1.msra.mxu0 0.0
      %5058 = vmatprep.subr.mxu0 0.0
      %5059 = vmatpush1.msra.mxu0 0.0
      %5060 = vmatprep.subr.mxu0 0.0
      %5061 = vmatpush1.msra.mxu0 0.0
      %5062 = vmatprep.subr.mxu0 0.0
      %5063 = vmatpush1.msra.mxu0 0.0
      %5064 = vmatprep.subr.mxu0 0.0
      %5065 = vmatpush1.msra.mxu0 0.0
      %5066 = vmatprep.subr.mxu0 0.0
      %5067 = vmatpush1.msra.mxu0 0.0
      %5068 = vmatprep.subr.mxu0 0.0
      %5069 = vmatpush1.msra.mxu0 0.0
      %5070 = vmatprep.subr.mxu0 0.0
      %5071 = vmatpush1.msra.mxu0 0.0
      %5072 = vmatprep.subr.mxu0 0.0
      %5073 = vmatpush1.msra.mxu0 0.0
      %5074 = vmatprep.subr.mxu0 0.0
      %5075 = vmatpush1.msra.mxu0 0.0
      %5076 = vmatprep.subr.mxu0 0.0
      %5077 = vmatpush1.msra.mxu0 0.0
      %5078 = vmatprep.subr.mxu0 0.0
      %5079 = vmatpush1.msra.mxu0 0.0
      %5080 = vmatprep.subr.mxu0 0.0
      %5081 = vmatpush1.msra.mxu0 0.0
      %5082 = vmatprep.subr.mxu0 0.0
      %5083 = vmatpush1.msra.mxu0 0.0
      %5084 = vmatprep.subr.mxu0 0.0
      %5085 = vmatpush1.msra.mxu0 0.0
      %5086 = vmatprep.subr.mxu0 0.0
      %5087 = vmatpush1.msra.mxu0 0.0
      %5088 = vmatprep.subr.mxu0 0.0
      %5089 = vmatpush1.msra.mxu0 0.0
      %5090 = vmatprep.subr.mxu0 0.0
      %5091 = vmatpush1.msra.mxu0 0.0
      %5092 = vmatprep.subr.mxu0 0.0
      %5093 = vmatpush1.msra.mxu0 0.0
      %5094 = vmatprep.subr.mxu0 0.0
      %5095 = vmatpush1.msra.mxu0 0.0
      %5096 = vmatprep.subr.mxu0 0.0
      %5097 = vmatpush1.msra.mxu0 0.0
      %5098 = vmatprep.subr.mxu0 0.0
      %5099 = vmatpush1.msra.mxu0 0.0
      %5100 = vmatprep.subr.mxu0 0.0
      %5101 = vmatpush1.msra.mxu0 0.0
      %5102 = vmatprep.subr.mxu0 0.0
      %5103 = vmatpush1.msra.mxu0 0.0
      %5104 = vmatprep.mubr.f32.mxu0 0.0
      %5105 = vmatmul.mubr.f32.gmra.mrb[0].mxu0 %v5026
      %v5106 = vpop.f32.mrb[0].mxu0
      %v5107 = vadd.f32 %v5023, %v5106
      %v5108 = vpop.f32.mrb[0].mxu0
      %5109 = vmatprep.mubr.f32.mxu0 0.0
      %5110 = vmatmul.mubr.f32.gmra.mrb[0].mxu0 %v5029
      %v5111 = vpop.f32.mrb[0].mxu0
      %v5112 = vadd.f32 %v5023, %v5111
      %v5113 = vpop.f32.mrb[0].mxu0
      %5114 = vmatprep.mubr.f32.mxu0 0.0
      %5115 = vmatmul.mubr.f32.gmra.mrb[0].mxu0 %v5032
      %v5116 = vpop.f32.mrb[0].mxu0
      %v5117 = vadd.f32 %v5023, %v5116
      %v5118 = vpop.f32.mrb[0].mxu0
      %5119 = vmatprep.mubr.f32.mxu0 0.0
      %5120 = vmatmul.mubr.f32.gmra.mrb[0].mxu0 %v5035
      %v5121 = vpop.f32.mrb[0].mxu0
      %v5122 = vadd.f32 %v5023, %v5121
      %v5123 = vpop.f32.mrb[0].mxu0
      %5124 = vmatprep.mubr.f32.mxu0 0.0
      %5125 = vmatmul.mubr.f32.gmra.mrb[0].mxu0 %v5038
      %v5126 = vpop.f32.mrb[0].mxu0
      %v5127 = vadd.f32 %v5023, %v5126
      %v5128 = vpop.f32.mrb[0].mxu0
      %5129 = vdwg.mxu0
      %v5130 = vmax.f32 %v5107, 0.0
      %v5131 = vmax.f32 %v5112, 0.0
      %v5132 = vmax.f32 %v5117, 0.0
      %v5133 = vmax.f32 %v5122, 0.0
      %v5134 = vmax.f32 %v5127, 0.0
      %v5135 = vld [vmem:[%s1844] sm:$0xff]
      %v5136 = vld [vmem:[%s1844 + $0x8] sm:$0xff]
      %v5137 = vld [vmem:[%s1844 + $0x10] sm:$0xff]
      %v5138 = vld [vmem:[%s1844 + $0x18] sm:$0xff]
      %v5140 = vsel %vm684, %v5130, 0
      %v5143 = vsel %vm684, %v5131, 0
      %v5146 = vsel %vm684, %v5132, 0
      %v5149 = vsel %vm684, %v5133, 0
      %v5152 = vsel %vm684, %v5134, 0
      %5154 = vmatprep.subr.mxu0 0.0
      %5155 = vmatpush1.msra.mxu0 %v5135
      %5156 = vmatprep.subr.mxu0 0.0
      %5157 = vmatpush1.msra.mxu0 %v5136
      %5158 = vmatprep.subr.mxu0 0.0
      %5159 = vmatpush1.msra.mxu0 %v5137
      %5160 = vmatprep.subr.mxu0 0.0
      %5161 = vmatpush1.msra.mxu0 %v5138
      %5162 = vmatprep.subr.mxu0 0.0
      %5163 = vmatpush1.msra.mxu0 0.0
      %5164 = vmatprep.subr.mxu0 0.0
      %5165 = vmatpush1.msra.mxu0 0.0
      %5166 = vmatprep.subr.mxu0 0.0
      %5167 = vmatpush1.msra.mxu0 0.0
      %5168 = vmatprep.subr.mxu0 0.0
      %5169 = vmatpush1.msra.mxu0 0.0
      %5170 = vmatprep.subr.mxu0 0.0
      %5171 = vmatpush1.msra.mxu0 0.0
      %5172 = vmatprep.subr.mxu0 0.0
      %5173 = vmatpush1.msra.mxu0 0.0
      %5174 = vmatprep.subr.mxu0 0.0
      %5175 = vmatpush1.msra.mxu0 0.0
      %5176 = vmatprep.subr.mxu0 0.0
      %5177 = vmatpush1.msra.mxu0 0.0
      %5178 = vmatprep.subr.mxu0 0.0
      %5179 = vmatpush1.msra.mxu0 0.0
      %5180 = vmatprep.subr.mxu0 0.0
      %5181 = vmatpush1.msra.mxu0 0.0
      %5182 = vmatprep.subr.mxu0 0.0
      %5183 = vmatpush1.msra.mxu0 0.0
      %5184 = vmatprep.subr.mxu0 0.0
      %5185 = vmatpush1.msra.mxu0 0.0
      %5186 = vmatprep.subr.mxu0 0.0
      %5187 = vmatpush1.msra.mxu0 0.0
      %5188 = vmatprep.subr.mxu0 0.0
      %5189 = vmatpush1.msra.mxu0 0.0
      %5190 = vmatprep.subr.mxu0 0.0
      %5191 = vmatpush1.msra.mxu0 0.0
      %5192 = vmatprep.subr.mxu0 0.0
      %5193 = vmatpush1.msra.mxu0 0.0
      %5194 = vmatprep.subr.mxu0 0.0
      %5195 = vmatpush1.msra.mxu0 0.0
      %5196 = vmatprep.subr.mxu0 0.0
      %5197 = vmatpush1.msra.mxu0 0.0
      %5198 = vmatprep.subr.mxu0 0.0
      %5199 = vmatpush1.msra.mxu0 0.0
      %5200 = vmatprep.subr.mxu0 0.0
      %5201 = vmatpush1.msra.mxu0 0.0
      %5202 = vmatprep.subr.mxu0 0.0
      %5203 = vmatpush1.msra.mxu0 0.0
      %5204 = vmatprep.subr.mxu0 0.0
      %5205 = vmatpush1.msra.mxu0 0.0
      %5206 = vmatprep.subr.mxu0 0.0
      %5207 = vmatpush1.msra.mxu0 0.0
      %5208 = vmatprep.subr.mxu0 0.0
      %5209 = vmatpush1.msra.mxu0 0.0
      %5210 = vmatprep.subr.mxu0 0.0
      %5211 = vmatpush1.msra.mxu0 0.0
      %5212 = vmatprep.subr.mxu0 0.0
      %5213 = vmatpush1.msra.mxu0 0.0
      %5214 = vmatprep.subr.mxu0 0.0
      %5215 = vmatpush1.msra.mxu0 0.0
      %5216 = vmatprep.subr.mxu0 0.0
      %5217 = vmatpush1.msra.mxu0 0.0
      %5218 = vmatprep.mubr.f32.mxu0 0.0
      %5219 = vmatmul.mubr.f32.gmra.mrb[0].mxu0 %v5140
      %v5220 = vpop.f32.mrb[0].mxu0
      %v5221 = vadd.f32 0.0, %v5220
      %v5222 = vpop.f32.mrb[0].mxu0
      %5223 = vmatprep.mubr.f32.mxu0 0.0
      %5224 = vmatmul.mubr.f32.gmra.mrb[0].mxu0 %v5143
      %v5225 = vpop.f32.mrb[0].mxu0
      %v5226 = vadd.f32 0.0, %v5225
      %v5227 = vpop.f32.mrb[0].mxu0
      %5228 = vmatprep.mubr.f32.mxu0 0.0
      %5229 = vmatmul.mubr.f32.gmra.mrb[0].mxu0 %v5146
      %v5230 = vpop.f32.mrb[0].mxu0
      %v5231 = vadd.f32 0.0, %v5230
      %v5232 = vpop.f32.mrb[0].mxu0
      %5233 = vmatprep.mubr.f32.mxu0 0.0
      %5234 = vmatmul.mubr.f32.gmra.mrb[0].mxu0 %v5149
      %v5235 = vpop.f32.mrb[0].mxu0
      %v5236 = vadd.f32 0.0, %v5235
      %v5237 = vpop.f32.mrb[0].mxu0
      %5238 = vmatprep.mubr.f32.mxu0 0.0
      %5239 = vmatmul.mubr.f32.gmra.mrb[0].mxu0 %v5152
      %v5240 = vpop.f32.mrb[0].mxu0
      %v5241 = vadd.f32 0.0, %v5240
      %v5242 = vpop.f32.mrb[0].mxu0
      %5243 = vdwg.mxu0
      %5244 = vmatprep.subr.mxu0 0.0
      %5245 = vmatpush1.msra.mxu0 %v5221
      %5246 = vmatprep.subr.mxu0 0.0
      %5247 = vmatpush1.msra.mxu0 %v5226
      %5248 = vmatprep.subr.mxu0 0.0
      %5249 = vmatpush1.msra.mxu0 %v5231
      %5250 = vmatprep.subr.mxu0 0.0
      %5251 = vmatpush1.msra.mxu0 %v5236
      %5252 = vmatprep.subr.mxu0 0.0
      %5253 = vmatpush1.msra.mxu0 %v5241
      %5254 = vmatprep.subr.mxu0 0.0
      %5255 = vmatpush1.msra.mxu0 0.0
      %5256 = vmatprep.subr.mxu0 0.0
      %5257 = vmatpush1.msra.mxu0 0.0
      %5258 = vmatprep.subr.mxu0 0.0
      %5259 = vmatpush1.msra.mxu0 0.0
      %5260 = vmatprep.subr.mxu0 0.0
      %5261 = vmatpush1.msra.mxu0 0.0
      %5262 = vmatprep.subr.mxu0 0.0
      %5263 = vmatpush1.msra.mxu0 0.0
      %5264 = vmatprep.subr.mxu0 0.0
      %5265 = vmatpush1.msra.mxu0 0.0
      %5266 = vmatprep.subr.mxu0 0.0
      %5267 = vmatpush1.msra.mxu0 0.0
      %5268 = vmatprep.subr.mxu0 0.0
      %5269 = vmatpush1.msra.mxu0 0.0
      %5270 = vmatprep.subr.mxu0 0.0
      %5271 = vmatpush1.msra.mxu0 0.0
      %5272 = vmatprep.subr.mxu0 0.0
      %5273 = vmatpush1.msra.mxu0 0.0
      %5274 = vmatprep.subr.mxu0 0.0
      %5275 = vmatpush1.msra.mxu0 0.0
      %5276 = vmatprep.subr.mxu0 0.0
      %5277 = vmatpush1.msra.mxu0 0.0
      %5278 = vmatprep.subr.mxu0 0.0
      %5279 = vmatpush1.msra.mxu0 0.0
      %5280 = vmatprep.subr.mxu0 0.0
      %5281 = vmatpush1.msra.mxu0 0.0
      %5282 = vmatprep.subr.mxu0 0.0
      %5283 = vmatpush1.msra.mxu0 0.0
      %5284 = vmatprep.subr.mxu0 0.0
      %5285 = vmatpush1.msra.mxu0 0.0
      %5286 = vmatprep.subr.mxu0 0.0
      %5287 = vmatpush1.msra.mxu0 0.0
      %5288 = vmatprep.subr.mxu0 0.0
      %5289 = vmatpush1.msra.mxu0 0.0
      %5290 = vmatprep.subr.mxu0 0.0
      %5291 = vmatpush1.msra.mxu0 0.0
      %5292 = vmatprep.subr.mxu0 0.0
      %5293 = vmatpush1.msra.mxu0 0.0
      %5294 = vmatprep.subr.mxu0 0.0
      %5295 = vmatpush1.msra.mxu0 0.0
      %5296 = vmatprep.subr.mxu0 0.0
      %5297 = vmatpush1.msra.mxu0 0.0
      %5298 = vmatprep.subr.mxu0 0.0
      %5299 = vmatpush1.msra.mxu0 0.0
      %5300 = vmatprep.subr.mxu0 0.0
      %5301 = vmatpush1.msra.mxu0 0.0
      %5302 = vmatprep.subr.mxu0 0.0
      %5303 = vmatpush1.msra.mxu0 0.0
      %5304 = vmatprep.subr.mxu0 0.0
      %5305 = vmatpush1.msra.mxu0 0.0
      %5306 = vmatprep.subr.mxu0 0.0
      %5307 = vmatpush1.msra.mxu0 0.0
      %5308 = vmatprep.mubr.f32.mxu0 0.0
      %5309 = vmatmul.mubr.f32.gmra.mrb[0].mxu0 %v1955
      %v5310 = vpop.f32.mrb[0].mxu0
      %v5311 = vadd.f32 0.0, %v5310
      %v5312 = vpop.f32.mrb[0].mxu0
      %5313 = vmatprep.mubr.f32.mxu0 0.0
      %5314 = vmatmul.mubr.f32.gmra.mrb[0].mxu0 %v1958
      %v5315 = vpop.f32.mrb[0].mxu0
      %v5316 = vadd.f32 0.0, %v5315
      %v5317 = vpop.f32.mrb[0].mxu0
      %5318 = vmatprep.mubr.f32.mxu0 0.0
      %5319 = vmatmul.mubr.f32.gmra.mrb[0].mxu0 %v1961
      %v5320 = vpop.f32.mrb[0].mxu0
      %v5321 = vadd.f32 0.0, %v5320
      %v5322 = vpop.f32.mrb[0].mxu0
      %5323 = vdwg.mxu0
      %v5324 = vadd.f32 %v4655, %v5311
      %v5325 = vadd.f32 %v4656, %v5316
      %v5326 = vadd.f32 %v4657, %v5321
      %v5327 = vsel %vm684, %v3812, 0
      %v5329 = vsel %vm684, %v3814, 0
      %v5331 = vsel %vm684, %v3816, 0
      %5333 = vmatprep.subr.mxu0 0.0
      %5334 = vmatpush1.msra.mxu0 %v445
      %5335 = vmatprep.subr.mxu0 0.0
      %5336 = vmatpush1.msra.mxu0 %v446
      %5337 = vmatprep.subr.mxu0 0.0
      %5338 = vmatpush1.msra.mxu0 %v447
      %5339 = vmatprep.subr.mxu0 0.0
      %5340 = vmatpush1.msra.mxu0 %v448
      %5341 = vmatprep.subr.mxu0 0.0
      %5342 = vmatpush1.msra.mxu0 0.0
      %5343 = vmatprep.subr.mxu0 0.0
      %5344 = vmatpush1.msra.mxu0 0.0
      %5345 = vmatprep.subr.mxu0 0.0
      %5346 = vmatpush1.msra.mxu0 0.0
      %5347 = vmatprep.subr.mxu0 0.0
      %5348 = vmatpush1.msra.mxu0 0.0
      %5349 = vmatprep.subr.mxu0 0.0
      %5350 = vmatpush1.msra.mxu0 0.0
      %5351 = vmatprep.subr.mxu0 0.0
      %5352 = vmatpush1.msra.mxu0 0.0
      %5353 = vmatprep.subr.mxu0 0.0
      %5354 = vmatpush1.msra.mxu0 0.0
      %5355 = vmatprep.subr.mxu0 0.0
      %5356 = vmatpush1.msra.mxu0 0.0
      %5357 = vmatprep.subr.mxu0 0.0
      %5358 = vmatpush1.msra.mxu0 0.0
      %5359 = vmatprep.subr.mxu0 0.0
      %5360 = vmatpush1.msra.mxu0 0.0
      %5361 = vmatprep.subr.mxu0 0.0
      %5362 = vmatpush1.msra.mxu0 0.0
      %5363 = vmatprep.subr.mxu0 0.0
      %5364 = vmatpush1.msra.mxu0 0.0
      %5365 = vmatprep.subr.mxu0 0.0
      %5366 = vmatpush1.msra.mxu0 0.0
      %5367 = vmatprep.subr.mxu0 0.0
      %5368 = vmatpush1.msra.mxu0 0.0
      %5369 = vmatprep.subr.mxu0 0.0
      %5370 = vmatpush1.msra.mxu0 0.0
      %5371 = vmatprep.subr.mxu0 0.0
      %5372 = vmatpush1.msra.mxu0 0.0
      %5373 = vmatprep.subr.mxu0 0.0
      %5374 = vmatpush1.msra.mxu0 0.0
      %5375 = vmatprep.subr.mxu0 0.0
      %5376 = vmatpush1.msra.mxu0 0.0
      %5377 = vmatprep.subr.mxu0 0.0
      %5378 = vmatpush1.msra.mxu0 0.0
      %5379 = vmatprep.subr.mxu0 0.0
      %5380 = vmatpush1.msra.mxu0 0.0
      %5381 = vmatprep.subr.mxu0 0.0
      %5382 = vmatpush1.msra.mxu0 0.0
      %5383 = vmatprep.subr.mxu0 0.0
      %5384 = vmatpush1.msra.mxu0 0.0
      %5385 = vmatprep.subr.mxu0 0.0
      %5386 = vmatpush1.msra.mxu0 0.0
      %5387 = vmatprep.subr.mxu0 0.0
      %5388 = vmatpush1.msra.mxu0 0.0
      %5389 = vmatprep.subr.mxu0 0.0
      %5390 = vmatpush1.msra.mxu0 0.0
      %5391 = vmatprep.subr.mxu0 0.0
      %5392 = vmatpush1.msra.mxu0 0.0
      %5393 = vmatprep.subr.mxu0 0.0
      %5394 = vmatpush1.msra.mxu0 0.0
      %5395 = vmatprep.subr.mxu0 0.0
      %5396 = vmatpush1.msra.mxu0 0.0
      %5397 = vmatprep.mubr.f32.mxu0 0.0
      %5398 = vmatmul.mubr.f32.gmra.mrb[0].mxu0 %v5327
      %v5399 = vpop.f32.mrb[0].mxu0
      %v5400 = vadd.f32 0.0, %v5399
      %v5401 = vpop.f32.mrb[0].mxu0
      %5402 = vmatprep.mubr.f32.mxu0 0.0
      %5403 = vmatmul.mubr.f32.gmra.mrb[0].mxu0 %v5329
      %v5404 = vpop.f32.mrb[0].mxu0
      %v5405 = vadd.f32 0.0, %v5404
      %v5406 = vpop.f32.mrb[0].mxu0
      %5407 = vmatprep.mubr.f32.mxu0 0.0
      %5408 = vmatmul.mubr.f32.gmra.mrb[0].mxu0 %v5331
      %v5409 = vpop.f32.mrb[0].mxu0
      %v5410 = vadd.f32 0.0, %v5409
      %v5411 = vpop.f32.mrb[0].mxu0
      %5412 = vdwg.mxu0
      %v5413 = vadd.f32 %v5324, %v5400
      %v5414 = vadd.f32 %v5325, %v5405
      %v5415 = vadd.f32 %v5326, %v5410
      %v5416 = vtanh.pop %v5413
      %v5417 = vtanh.pop %v5414
      %v5418 = vtanh.pop %v5415
      %v5419 = vxor.u32 %v5413, 2147483648
      %v5420 = vxor.u32 %v5414, 2147483648
      %v5421 = vxor.u32 %v5415, 2147483648
      %v5422 = vmul.f32 %v5419, 1.442695
      %v5423 = vpow.pop %v5422
      %v5424 = vmul.f32 %v5420, 1.442695
      %v5425 = vpow.pop %v5424
      %v5426 = vmul.f32 %v5421, 1.442695
      %v5427 = vpow.pop %v5426
      %v5428 = vadd.f32 %v5423, 1.0
      %v5429 = vadd.f32 %v5425, 1.0
      %v5430 = vadd.f32 %v5427, 1.0
      %v5431 = vrcp.pop %v5428
      %v5432 = vmul.f32 1.0, %v5431
      %v5433 = vrcp.pop %v5429
      %v5434 = vmul.f32 1.0, %v5433
      %v5435 = vrcp.pop %v5430
      %v5436 = vmul.f32 1.0, %v5435
      %v5437 = vsel %vm2050, %v5416, %v5432
      %v5438 = vsel %vm2050, %v5417, %v5434
      %v5439 = vsel %vm2050, %v5418, %v5436
      %v5440 = vmul.f32 %v5437, %v3787
      %v5441 = vmul.f32 %v5438, %v3788
      %v5442 = vmul.f32 %v5439, %v3789
      %5446 = vrot.lane.b32.xlu0 %v5437, 64
      %v5447 = vpop.permute.xlu0 %5446
      %5448 = vrot.lane.b32.xlu0 %v5438, 64
      %v5449 = vpop.permute.xlu0 %5448
      %5450 = vrot.lane.b32.xlu0 %v5439, 64
      %v5451 = vpop.permute.xlu0 %5450
      %v5455 = vmul.f32 %v5437, %v5447
      %v5456 = vmul.f32 %v5438, %v5449
      %v5457 = vmul.f32 %v5439, %v5451
      %5461 = vrot.lane.b32.xlu0 %v5455, 32
      %v5462 = vpop.permute.xlu0 %5461
      %5463 = vrot.lane.b32.xlu0 %v5456, 32
      %v5464 = vpop.permute.xlu0 %5463
      %5465 = vrot.lane.b32.xlu0 %v5457, 32
      %v5466 = vpop.permute.xlu0 %5465
      %v5470 = vadd.f32 %v5440, %v5462
      %v5471 = vadd.f32 %v5441, %v5464
      %v5472 = vadd.f32 %v5442, %v5466
      %v5473 = vtanh.pop %v5470
      %v5474 = vtanh.pop %v5471
      %v5475 = vtanh.pop %v5472
      %5479 = vrot.lane.b32.xlu0 %v5473, 64
      %v5480 = vpop.permute.xlu0 %5479
      %5481 = vrot.lane.b32.xlu0 %v5474, 64
      %v5482 = vpop.permute.xlu0 %5481
      %5483 = vrot.lane.b32.xlu0 %v5475, 64
      %v5484 = vpop.permute.xlu0 %5483
      %v5488 = vmul.f32 %v5437, %v5480
      %v5489 = vmul.f32 %v5438, %v5482
      %v5490 = vmul.f32 %v5439, %v5484
      %5494 = vrot.lane.b32.xlu0 %v5488, 32
      %v5495 = vpop.permute.xlu0 %5494
      %5496 = vrot.lane.b32.xlu0 %v5489, 32
      %v5497 = vpop.permute.xlu0 %5496
      %5498 = vrot.lane.b32.xlu0 %v5490, 32
      %v5499 = vpop.permute.xlu0 %5498
      %s5503 = scalar_lea.vmem %s412, 48
      %5504 = vst.msk [vmem:[%s5503] sm:$0xff] %vm684, %v5495
      %5505 = vst.msk [vmem:[%s5503 + $0x8] sm:$0xff] %vm684, %v5497
      %5506 = vst.msk [vmem:[%s5503 + $0x10] sm:$0xff] %vm684, %v5499
      %p5507 = scmp.lt.s32.totalorder %s20, 1
      %s5508 = scalar_select %p5507, %s20, 1
      %s5509 = smul.addr %s5508, 9
      %s5510 = smul.addr %s5509, 8
      %s5511 = scalar_lea.vmem %s9, %s5510
      // Predicated region
      $region57: #{run_rrcn.1} parent=55 // pred_check
        %p5512 = pneg %p252
      $region58: #{run_rrcn.1} parent=55 // pred_check_branch
        %5514 = sbr.rel (%p5512) target = $region60
      $region59: #{run_rrcn.1} parent=55 // pred_region
        _
      $region60: #{run_rrcn.1} parent=55 // pred_fallthru
        _
    $region56: #{run_rrcn.1} parent=5 // pred_fallthru
      _
    %p5515 = scmp.le.s32.totalorder 2, %s15
    // Predicated region
    $region61: #{run_rrcn.1} parent=5 // pred_check
      %p5516 = pneg %p5515
    $region62: #{run_rrcn.1} parent=5 // pred_check_branch
      %5518 = sbr.rel (%p5516) target = $region64
    $region63: #{run_rrcn.1} parent=5 // pred_region
      %s5519 = ssub.s32 %s15, 2
      // Predicated region
      $region65: #{run_rrcn.1} parent=63 // pred_check
        %p5520 = pneg %p258
      $region66: #{run_rrcn.1} parent=63 // pred_check_branch
        %5522 = sbr.rel (%p5520) target = $region68
      $region67: #{run_rrcn.1} parent=63 // pred_region
        %p5523 = scmp.lt.s32.totalorder %s21, 1
        %s5524 = scalar_select %p5523, %s21, 1
        %s5525 = smul.addr %s5524, 9
        %s5526 = smul.addr %s5525, 8
        %s5527 = scalar_lea.vmem %s9, %s5526
      $region68: #{run_rrcn.1} parent=63 // pred_fallthru
        _
    $region64: #{run_rrcn.1} parent=5 // pred_fallthru
      _
  $region6: #{run_rrcn.1} parent=0 // loop_footer
    %s19 = sadd.s32 1, %s15
  $region7: #{run_rrcn.1} parent=0 // loop_footer_branch
    %14 = sbr.rel target = $region3
  $region8: #{run_rrcn.1} parent=0 // loop_exit
    _

</llo_original>
